<compile_context>
chip_gen: v7x
topology: tpu7x:2x2x1
jax: 0.10.0
libtpu: 0.0.40
codegen_flags: <defaults>
</compile_context>

<pallas_src>
import functools

import jax
import jax.numpy as jnp
from jax.experimental import pallas as pl
from jax.experimental.pallas import tpu as pltpu

WBIT = 4          # weight bits  (clamp_conv2d(nbit=4, mode='mean', k=2))
ABIT = 4          # activation bits (ClippedHardTanh(num_bits=4))
K_SAWB = 2.0
BN_EPS = 1e-5
LANE = 128

_QLEVELS = float(2 ** ABIT - 1)
_QSCALE = _QLEVELS / 2.0          # pre-folded quant constants (epilogue simplification)
_QINV = 2.0 / _QLEVELS


def _round_up(x, m):
    return (x + m - 1) // m * m


# ----------------------------- quantizers (glue + in-kernel) -----------------------------

def quantize_weight(w):
    """clamp_conv2d-style weight quant: alpha = k*mean(|w|), clamp, symmetric uniform."""
    # TODO(synk): exact clamp_conv2d / SAWB statistics from the repo are approximated.
    alpha = K_SAWB * jnp.mean(jnp.abs(w))
    levels = float(2 ** (WBIT - 1) - 1)
    wc = jnp.clip(w, -alpha, alpha) / alpha
    return jnp.round(wc * levels) / levels * alpha


def _act_quant_hardtanh(y):
    """ClippedHardTanh(num_bits=ABIT): hardtanh to [-1,1] + uniform quant (in-kernel)."""
    # TODO(synk): exact ClippedHardTanh quant grid approximated (uniform over [-1, 1]).
    y = jnp.clip(y, -1.0, 1.0)
    return jnp.round(y * _QSCALE + _QSCALE) * _QINV - 1.0


# ----------------------------------- Pallas kernels --------------------------------------

def _build_patches(x_ref, patch_ref, row_offs, chan_offs, cp, r_out, g):
    """im2col in VMEM: gather 9 shifted (r_out, cp) slices per image of the group into
    the (g*r_out, 9*cp) patch scratch.  Activation is read from HBM only once."""
    for i in range(g):
        for t in range(9):
            patch_ref[pl.ds(i * r_out, r_out), pl.ds(t * cp, cp)] = (
                x_ref[i, pl.ds(row_offs[t], r_out), pl.ds(chan_offs[t], cp)])


def conv_bn_act_kernel(x_ref, w_ref, b_ref, m_ref, o_ref, patch_ref, *,
                       row_offs, chan_offs, cp, r_out, g):
    """out1 = mask * ClippedHardTanh(BN(conv3x3(x)))   [conv1 -> bn1 -> relu1].
    The mask writes the zero border of the padded layout conv2 consumes directly."""
    _build_patches(x_ref, patch_ref, row_offs, chan_offs, cp, r_out, g)
    y = jnp.dot(patch_ref[...], w_ref[...], preferred_element_type=jnp.float32)
    y = _act_quant_hardtanh(y + b_ref[...])
    for i in range(g):
        o_ref[i] = (y[i * r_out:(i + 1) * r_out, :] * m_ref[...]).astype(o_ref.dtype)


def conv_bn_addres_act_kernel(x_ref, w_ref, b_ref, res_ref, o_ref, patch_ref, *,
                              row_offs, chan_offs, cp, r_out, g):
    """out = ClippedHardTanh(BN(conv3x3(out1)) + x)   [identity shortcut: epilogue add]."""
    _build_patches(x_ref, patch_ref, row_offs, chan_offs, cp, r_out, g)
    y = jnp.dot(patch_ref[...], w_ref[...], preferred_element_type=jnp.float32) + b_ref[...]
    for i in range(g):
        yi = y[i * r_out:(i + 1) * r_out, :] + res_ref[i].astype(jnp.float32)
        o_ref[i] = _act_quant_hardtanh(yi).astype(o_ref.dtype)


def conv_bn_proj_act_kernel(x_ref, w_ref, b_ref, rx_ref, rw_ref, o_ref, patch_ref, *,
                            row_offs, chan_offs, cp, r_out, g):
    """out = ClippedHardTanh(BN(conv3x3(out1)) + BN_s(conv1x1_s(x)))  [projection shortcut]."""
    _build_patches(x_ref, patch_ref, row_offs, chan_offs, cp, r_out, g)
    y = jnp.dot(patch_ref[...], w_ref[...], preferred_element_type=jnp.float32) + b_ref[...]
    for i in range(g):
        proj = jnp.dot(rx_ref[i], rw_ref[...], preferred_element_type=jnp.float32)
        o_ref[i] = _act_quant_hardtanh(y[i * r_out:(i + 1) * r_out, :] + proj
                                       ).astype(o_ref.dtype)


# ----------------------------- pallas_call wrapper ---------------------------------------

def _conv_pallas_call(kernel_fn, x_flat, w_mat, bias, extra_arrays, extra_specs,
                      r_out, n_pad, g, tap_k, out_dtype):
    b_pad, r_in, c_tot = x_flat.shape
    in_specs = [
        pl.BlockSpec((g, r_in, c_tot), lambda b: (b, 0, 0)),   # activation, read once/image
        pl.BlockSpec(w_mat.shape, lambda b: (0, 0)),           # BN-folded weights: resident
        pl.BlockSpec(bias.shape, lambda b: (0, 0)),            # folded BN bias: resident
    ] + list(extra_specs)
    return pl.pallas_call(
        kernel_fn,
        out_shape=jax.ShapeDtypeStruct((b_pad, r_out, n_pad), out_dtype),
        grid_spec=pltpu.PrefetchScalarGridSpec(
            num_scalar_prefetch=0,
            grid=(b_pad // g,),
            in_specs=in_specs,
            out_specs=pl.BlockSpec((g, r_out, n_pad), lambda b: (b, 0, 0)),
            scratch_shapes=[pltpu.VMEM((g * r_out, tap_k), jnp.bfloat16)],  # VMEM im2col tile
        ),
        compiler_params=pltpu.CompilerParams(
            dimension_semantics=("parallel",),        # megacore / v7x 2-TC sharding over images
            vmem_limit_bytes=48 * 1024 * 1024,        # safe on v5e/v6e (128 MiB) and v7x (64 MiB)
        ),
    )(x_flat, w_mat, bias, *extra_arrays)


# --------------------------------------- glue --------------------------------------------

def bn_fold(gamma, beta, mean, var):
    # TODO(synk): BatchNorm modeled in eval mode (folded running stats), not batch statistics.
    scale = gamma / jnp.sqrt(var + BN_EPS)
    bias = beta - mean * scale
    return scale.astype(jnp.float32), bias.astype(jnp.float32)


def weight_taps_to_mat(w_oihw, scale, cp, n_pad):
    """PyTorch [Cout, Cin, 3, 3] -> (9*cp, n_pad), tap-major / channel-minor, BN scale folded."""
    cout, cin = w_oihw.shape[0], w_oihw.shape[1]
    wt = jnp.transpose(w_oihw, (2, 3, 1, 0)).reshape(9, cin, cout) * scale.reshape(1, 1, cout)
    wt = jnp.pad(wt, ((0, 0), (0, cp - cin), (0, n_pad - cout)))
    return wt.reshape(9 * cp, n_pad).astype(jnp.bfloat16)


def _pad_bias(bias, n_pad):
    return jnp.pad(bias.reshape(1, -1), ((0, 0), (0, n_pad - bias.shape[-1])))


def _interior_mask(r_out, wow, ho, wo):
    q = jnp.arange(r_out)
    hp, wp = q // wow, q % wow
    m = (hp >= 1) & (hp <= ho) & (wp >= 1) & (wp <= wo)
    return m.astype(jnp.float32).reshape(r_out, 1)


def _tap_offsets_stride1(wow):
    rows = tuple(ky * wow + kx for ky in range(3) for kx in range(3))
    return rows, (0,) * 9


def _tap_offsets_stride2(wow, cp):
    rows, chans = [], []
    for ky in range(3):
        for kx in range(3):
            rows.append((ky // 2) * wow + (kx // 2))
            chans.append(((ky % 2) * 2 + (kx % 2)) * cp)
    return tuple(rows), tuple(chans)


def _pad_rows(flat, lead, data_rows, r_in):
    return jnp.pad(flat, ((0, 0), (lead, r_in - lead - data_rows), (0, 0)))


def prep_input_stride1(x, cp, r_out, wow):
    """NHWC -> zero-bordered, flattened wide layout (leading pad) for a stride-1 3x3 conv."""
    B, H, W, C = x.shape
    xp = jnp.pad(x, ((0, 0), (1, 1), (1, 1), (0, cp - C)))          # (B, H+2, wow, cp)
    data_rows = (H + 2) * wow
    lead = wow + 1
    r_in = _round_up(max(lead + data_rows, r_out + 2 * wow + 2), 8)
    return _pad_rows(xp.reshape(B, data_rows, cp), lead, data_rows, r_in).astype(jnp.bfloat16)


def prep_input_stride2(x, cp, r_out, ho, wo, wow):
    """NHWC -> 4 stride-2 phases stacked on channels, flattened wide layout (stride-2 3x3)."""
    B, H, W, C = x.shape
    xp = jnp.pad(x, ((0, 0), (1, 2 * ho + 1 - H), (1, 2 * wo + 1 - W), (0, cp - C)))
    phases = []
    for py in range(2):
        for px in range(2):
            ph = xp[:, py::2, px::2, :][:, :ho + 1, :wo + 1, :]
            phases.append(jnp.pad(ph, ((0, 0), (0, 0), (0, wow - (wo + 1)), (0, 0))))
    xc = jnp.concatenate(phases, axis=-1)                           # (B, ho+1, wow, 4*cp)
    data_rows = (ho + 1) * wow
    lead = wow + 1
    r_in = _round_up(max(lead + data_rows, r_out + wow + 2), 8)
    return _pad_rows(xc.reshape(B, data_rows, 4 * cp), lead, data_rows, r_in).astype(jnp.bfloat16)


def prep_residual_wide(xs, wow, r_out, c_pad, dtype):
    """Shortcut input laid out row-aligned with the conv2 output (width wow, channels c_pad)."""
    B, Ho, Wo, C = xs.shape
    r = jnp.pad(xs, ((0, 0), (0, 0), (0, wow - Wo), (0, c_pad - C)))
    r = r.reshape(B, Ho * wow, c_pad)
    return jnp.pad(r, ((0, 0), (0, r_out - Ho * wow), (0, 0))).astype(dtype)


def _pick_group(batch, r_out):
    """Images per grid step: target >= 512 MXU rows / step, keep >= 2 steps for v7x's 2 TCs."""
    g_target = max(1, -(-512 // r_out))
    g_max = max(1, batch // 2)
    return min(g_target, g_max)


def basic_block_forward(x_nchw, params, stride):
    x = jnp.transpose(x_nchw, (0, 2, 3, 1)).astype(jnp.float32)     # NCHW -> NHWC
    B, H, W, cin = x.shape
    cout = params["w1"].shape[0]
    n_pad = _round_up(cout, LANE)                                    # lane-dense output columns
    cp1 = _round_up(cin, LANE)
    cp2 = n_pad

    ho = (H - 1) // stride + 1
    wo = (W - 1) // stride + 1
    wow = wo + 2                                                     # wide row width (zero border)

    r_out2 = _round_up(ho * wow, 16)                                 # conv2 output rows / image
    r_out1 = _round_up(r_out2 + 2 * wow + 2, 16)                     # conv1 out rows = conv2 in rows

    g = _pick_group(B, r_out2)
    b_pad = _round_up(B, g)
    if b_pad != B:
        x = jnp.pad(x, ((0, b_pad - B), (0, 0), (0, 0), (0, 0)))

    # ---- conv1 -> bn1 -> relu1 (quantized hardtanh) ----
    s1, b1 = bn_fold(params["bn1_gamma"], params["bn1_beta"],
                     params["bn1_mean"], params["bn1_var"])
    w1m = weight_taps_to_mat(quantize_weight(params["w1"]), s1, cp1, n_pad)
    b1p = _pad_bias(b1, n_pad)
    mask1 = _interior_mask(r_out1, wow, ho, wo)
    if stride == 1:
        x1 = prep_input_stride1(x, cp1, r_out1, wow)
        rows1, chans1 = _tap_offsets_stride1(wow)
    else:
        x1 = prep_input_stride2(x, cp1, r_out1, ho, wo, wow)
        rows1, chans1 = _tap_offsets_stride2(wow, cp1)

    k1 = functools.partial(conv_bn_act_kernel, row_offs=rows1, chan_offs=chans1,
                           cp=cp1, r_out=r_out1, g=g)
    out1 = _conv_pallas_call(
        k1, x1, w1m, b1p,
        extra_arrays=[mask1],
        extra_specs=[pl.BlockSpec(mask1.shape, lambda b: (0, 0))],
        r_out=r_out1, n_pad=n_pad, g=g, tap_k=9 * cp1, out_dtype=jnp.bfloat16)

    # ---- conv2 -> bn2 -> (+ shortcut) -> relu2 (quantized hardtanh) ----
    # TODO(synk): conv1+conv2 could be fused into a single kernel to also remove out1's
    # single HBM round trip (needs halo exchange between row groups).
    s2, b2 = bn_fold(params["bn2_gamma"], params["bn2_beta"],
                     params["bn2_mean"], params["bn2_var"])
    w2m = weight_taps_to_mat(quantize_weight(params["w2"]), s2, cp2, n_pad)
    rows2, chans2 = _tap_offsets_stride1(wow)

    if stride != 1 or cin != cout:
        # projection shortcut: 1x1 conv + BN, fused as a second matmul into the same sum.
        ss, bs = bn_fold(params["bns_gamma"], params["bns_beta"],
                         params["bns_mean"], params["bns_var"])
        ws = quantize_weight(params["ws"]).reshape(cout, cin)
        cin_p = _round_up(cin, LANE)
        wsm = jnp.pad(jnp.transpose(ws) * ss.reshape(1, cout),
                      ((0, cin_p - cin), (0, n_pad - cout))).astype(jnp.bfloat16)
        xs = x[:, ::stride, ::stride, :][:, :ho, :wo, :]
        rsw = prep_residual_wide(xs, wow, r_out2, cin_p, jnp.bfloat16)
        b2p = _pad_bias(b2 + bs, n_pad)
        k2 = functools.partial(conv_bn_proj_act_kernel, row_offs=rows2, chan_offs=chans2,
                               cp=cp2, r_out=r_out2, g=g)
        out2 = _conv_pallas_call(
            k2, out1, w2m, b2p,
            extra_arrays=[rsw, wsm],
            extra_specs=[pl.BlockSpec((g, r_out2, cin_p), lambda b: (b, 0, 0)),
                         pl.BlockSpec(wsm.shape, lambda b: (0, 0))],
            r_out=r_out2, n_pad=n_pad, g=g, tap_k=9 * cp2, out_dtype=jnp.bfloat16)
    else:
        # identity shortcut: plain residual add in the epilogue (kept f32 for precision).
        resw = prep_residual_wide(x[:, :ho, :wo, :], wow, r_out2, n_pad, jnp.float32)
        b2p = _pad_bias(b2, n_pad)
        k2 = functools.partial(conv_bn_addres_act_kernel, row_offs=rows2, chan_offs=chans2,
                               cp=cp2, r_out=r_out2, g=g)
        out2 = _conv_pallas_call(
            k2, out1, w2m, b2p,
            extra_arrays=[resw],
            extra_specs=[pl.BlockSpec((g, r_out2, n_pad), lambda b: (b, 0, 0))],
            r_out=r_out2, n_pad=n_pad, g=g, tap_k=9 * cp2, out_dtype=jnp.bfloat16)

    out = out2[:B, :ho * wow, :].reshape(B, ho, wow, n_pad)[:, :, :wo, :cout]
    return jnp.transpose(out, (0, 3, 1, 2)).astype(jnp.float32)     # NHWC -> NCHW


def init_params(key, in_planes, planes):
    ks = jax.random.split(key, 6)
    f32 = jnp.float32

    def bn(k, c):
        kg, kb, km, kv = jax.random.split(k, 4)
        return (1.0 + 0.05 * jax.random.normal(kg, (c,), f32),
                0.05 * jax.random.normal(kb, (c,), f32),
                0.1 * jax.random.normal(km, (c,), f32),
                1.0 + 0.1 * jnp.abs(jax.random.normal(kv, (c,), f32)))

    g1, b1, m1, v1 = bn(ks[3], planes)
    g2, b2, m2, v2 = bn(ks[4], planes)
    gs, bs, ms, vs = bn(ks[5], planes)
    return {
        "w1": 0.1 * jax.random.normal(ks[0], (planes, in_planes, 3, 3), f32),
        "w2": 0.1 * jax.random.normal(ks[1], (planes, planes, 3, 3), f32),
        "ws": 0.1 * jax.random.normal(ks[2], (planes, in_planes, 1, 1), f32),
        "bn1_gamma": g1, "bn1_beta": b1, "bn1_mean": m1, "bn1_var": v1,
        "bn2_gamma": g2, "bn2_beta": b2, "bn2_mean": m2, "bn2_var": v2,
        "bns_gamma": gs, "bns_beta": bs, "bns_mean": ms, "bns_var": vs,
    }


if __name__ == "__main__":
    key = jax.random.PRNGKey(0)
    kx, kp, kx2, kp2 = jax.random.split(key, 4)

    # Projection-shortcut case (stride 2, channel expansion) — the primary test.
    B, in_planes, planes, H, W, stride = 2, 4, 8, 16, 16, 2
    x = jax.random.normal(kx, (B, in_planes, H, W), jnp.float32)
    params = init_params(kp, in_planes, planes)
    fwd = jax.jit(functools.partial(basic_block_forward, stride=stride))
    out = jax.block_until_ready(fwd(x, params))
    assert out.shape == (B, planes, H // stride, W // stride), out.shape

    # Identity-shortcut case (stride 1, same channels) — exercises the epilogue-add kernel.
    B2, planes2, H2 = 2, 8, 8
    x2 = jax.random.normal(kx2, (B2, planes2, H2, H2), jnp.float32)
    params2 = init_params(kp2, planes2, planes2)
    fwd2 = jax.jit(functools.partial(basic_block_forward, stride=1))
    out2 = jax.block_until_ready(fwd2(x2, params2))
    assert out2.shape == (B2, planes2, H2, H2), out2.shape

    print("KERNEL_OK")
</pallas_src>

<mosaic_0001>
module attributes {stable_mosaic.version = 11 : i64} {
  func.func @conv_bn_act_kernel(%arg0: i32, %arg1: memref<1x128x512xbf16, #tpu.memory_space<vmem>>, %arg2: memref<1152x128xbf16, #tpu.memory_space<vmem>>, %arg3: memref<1x128xf32, #tpu.memory_space<vmem>>, %arg4: memref<112x1xf32, #tpu.memory_space<vmem>>, %arg5: memref<1x112x128xbf16, #tpu.memory_space<vmem>>, %arg6: memref<112x1152xbf16, #tpu.memory_space<vmem>>) attributes {dimension_semantics = [#tpu.dimension_semantics<parallel>], iteration_bounds = array<i64: 2>, scalar_prefetch = 0 : i64, scratch_operands = 1 : i64, tpu.core_type = #tpu.core_type<tc>, window_params = [{transform_indices = @transform_0, window_bounds = array<i64: 1, 128, 512>}, {pipeline_mode = #tpu.pipeline_mode<synchronous>, transform_indices = @transform_1, window_bounds = array<i64: 1152, 128>}, {pipeline_mode = #tpu.pipeline_mode<synchronous>, transform_indices = @transform_2, window_bounds = array<i64: 1, 128>}, {pipeline_mode = #tpu.pipeline_mode<synchronous>, transform_indices = @transform_3, window_bounds = array<i64: 112, 1>}, {transform_indices = @transform_4, window_bounds = array<i64: 1, 112, 128>}]} {
    %c0 = arith.constant 0 : index
    %c0_0 = arith.constant 0 : index
    %c0_1 = arith.constant 0 : index
    %0 = vector.load %arg1[%c0, %c0_0, %c0_1] : memref<1x128x512xbf16, #tpu.memory_space<vmem>>, vector<1x112x128xbf16>
    %1 = vector.shape_cast %0 : vector<1x112x128xbf16> to vector<112x128xbf16>
    %c0_2 = arith.constant 0 : index
    %c0_3 = arith.constant 0 : index
    %2 = vector.load %arg6[%c0_2, %c0_3] : memref<112x1152xbf16, #tpu.memory_space<vmem>>, vector<112x128xbf16>
    tpu.vector_store %arg6[%c0_2, %c0_3], %1 {strides = array<i32>} : memref<112x1152xbf16, #tpu.memory_space<vmem>>, vector<112x128xbf16>,
    %c0_4 = arith.constant 0 : index
    %c0_5 = arith.constant 0 : index
    %c128 = arith.constant 128 : index
    %3 = vector.load %arg1[%c0_4, %c0_5, %c128] : memref<1x128x512xbf16, #tpu.memory_space<vmem>>, vector<1x112x128xbf16>
    %4 = vector.shape_cast %3 : vector<1x112x128xbf16> to vector<112x128xbf16>
    %c0_6 = arith.constant 0 : index
    %c128_7 = arith.constant 128 : index
    %5 = vector.load %arg6[%c0_6, %c128_7] : memref<112x1152xbf16, #tpu.memory_space<vmem>>, vector<112x128xbf16>
    tpu.vector_store %arg6[%c0_6, %c128_7], %4 {strides = array<i32>} : memref<112x1152xbf16, #tpu.memory_space<vmem>>, vector<112x128xbf16>,
    %c0_8 = arith.constant 0 : index
    %c1 = arith.constant 1 : index
    %c0_9 = arith.constant 0 : index
    %6 = vector.load %arg1[%c0_8, %c1, %c0_9] : memref<1x128x512xbf16, #tpu.memory_space<vmem>>, vector<1x112x128xbf16>
    %7 = vector.shape_cast %6 : vector<1x112x128xbf16> to vector<112x128xbf16>
    %c0_10 = arith.constant 0 : index
    %c256 = arith.constant 256 : index
    %8 = vector.load %arg6[%c0_10, %c256] : memref<112x1152xbf16, #tpu.memory_space<vmem>>, vector<112x128xbf16>
    tpu.vector_store %arg6[%c0_10, %c256], %7 {strides = array<i32>} : memref<112x1152xbf16, #tpu.memory_space<vmem>>, vector<112x128xbf16>,
    %c0_11 = arith.constant 0 : index
    %c0_12 = arith.constant 0 : index
    %c256_13 = arith.constant 256 : index
    %9 = vector.load %arg1[%c0_11, %c0_12, %c256_13] : memref<1x128x512xbf16, #tpu.memory_space<vmem>>, vector<1x112x128xbf16>
    %10 = vector.shape_cast %9 : vector<1x112x128xbf16> to vector<112x128xbf16>
    %c0_14 = arith.constant 0 : index
    %c384 = arith.constant 384 : index
    %11 = vector.load %arg6[%c0_14, %c384] : memref<112x1152xbf16, #tpu.memory_space<vmem>>, vector<112x128xbf16>
    tpu.vector_store %arg6[%c0_14, %c384], %10 {strides = array<i32>} : memref<112x1152xbf16, #tpu.memory_space<vmem>>, vector<112x128xbf16>,
    %c0_15 = arith.constant 0 : index
    %c0_16 = arith.constant 0 : index
    %c384_17 = arith.constant 384 : index
    %12 = vector.load %arg1[%c0_15, %c0_16, %c384_17] : memref<1x128x512xbf16, #tpu.memory_space<vmem>>, vector<1x112x128xbf16>
    %13 = vector.shape_cast %12 : vector<1x112x128xbf16> to vector<112x128xbf16>
    %c0_18 = arith.constant 0 : index
    %c512 = arith.constant 512 : index
    %14 = vector.load %arg6[%c0_18, %c512] : memref<112x1152xbf16, #tpu.memory_space<vmem>>, vector<112x128xbf16>
    tpu.vector_store %arg6[%c0_18, %c512], %13 {strides = array<i32>} : memref<112x1152xbf16, #tpu.memory_space<vmem>>, vector<112x128xbf16>,
    %c0_19 = arith.constant 0 : index
    %c1_20 = arith.constant 1 : index
    %c256_21 = arith.constant 256 : index
    %15 = vector.load %arg1[%c0_19, %c1_20, %c256_21] : memref<1x128x512xbf16, #tpu.memory_space<vmem>>, vector<1x112x128xbf16>
    %16 = vector.shape_cast %15 : vector<1x112x128xbf16> to vector<112x128xbf16>
    %c0_22 = arith.constant 0 : index
    %c640 = arith.constant 640 : index
    %17 = vector.load %arg6[%c0_22, %c640] : memref<112x1152xbf16, #tpu.memory_space<vmem>>, vector<112x128xbf16>
    tpu.vector_store %arg6[%c0_22, %c640], %16 {strides = array<i32>} : memref<112x1152xbf16, #tpu.memory_space<vmem>>, vector<112x128xbf16>,
    %c0_23 = arith.constant 0 : index
    %c10 = arith.constant 10 : index
    %c0_24 = arith.constant 0 : index
    %18 = vector.load %arg1[%c0_23, %c10, %c0_24] : memref<1x128x512xbf16, #tpu.memory_space<vmem>>, vector<1x112x128xbf16>
    %19 = vector.shape_cast %18 : vector<1x112x128xbf16> to vector<112x128xbf16>
    %c0_25 = arith.constant 0 : index
    %c768 = arith.constant 768 : index
    %20 = vector.load %arg6[%c0_25, %c768] : memref<112x1152xbf16, #tpu.memory_space<vmem>>, vector<112x128xbf16>
    tpu.vector_store %arg6[%c0_25, %c768], %19 {strides = array<i32>} : memref<112x1152xbf16, #tpu.memory_space<vmem>>, vector<112x128xbf16>,
    %c0_26 = arith.constant 0 : index
    %c10_27 = arith.constant 10 : index
    %c128_28 = arith.constant 128 : index
    %21 = vector.load %arg1[%c0_26, %c10_27, %c128_28] : memref<1x128x512xbf16, #tpu.memory_space<vmem>>, vector<1x112x128xbf16>
    %22 = vector.shape_cast %21 : vector<1x112x128xbf16> to vector<112x128xbf16>
    %c0_29 = arith.constant 0 : index
    %c896 = arith.constant 896 : index
    %23 = vector.load %arg6[%c0_29, %c896] : memref<112x1152xbf16, #tpu.memory_space<vmem>>, vector<112x128xbf16>
    tpu.vector_store %arg6[%c0_29, %c896], %22 {strides = array<i32>} : memref<112x1152xbf16, #tpu.memory_space<vmem>>, vector<112x128xbf16>,
    %c0_30 = arith.constant 0 : index
    %c11 = arith.constant 11 : index
    %c0_31 = arith.constant 0 : index
    %24 = vector.load %arg1[%c0_30, %c11, %c0_31] : memref<1x128x512xbf16, #tpu.memory_space<vmem>>, vector<1x112x128xbf16>
    %25 = vector.shape_cast %24 : vector<1x112x128xbf16> to vector<112x128xbf16>
    %c0_32 = arith.constant 0 : index
    %c1024 = arith.constant 1024 : index
    %26 = vector.load %arg6[%c0_32, %c1024] : memref<112x1152xbf16, #tpu.memory_space<vmem>>, vector<112x128xbf16>
    tpu.vector_store %arg6[%c0_32, %c1024], %25 {strides = array<i32>} : memref<112x1152xbf16, #tpu.memory_space<vmem>>, vector<112x128xbf16>,
    %c0_33 = arith.constant 0 : index
    %c0_34 = arith.constant 0 : index
    %27 = vector.load %arg6[%c0_33, %c0_34] : memref<112x1152xbf16, #tpu.memory_space<vmem>>, vector<112x1152xbf16>
    %c0_35 = arith.constant 0 : index
    %c0_36 = arith.constant 0 : index
    %28 = vector.load %arg2[%c0_35, %c0_36] : memref<1152x128xbf16, #tpu.memory_space<vmem>>, vector<1152x128xbf16>
    %cst = arith.constant dense<0.000000e+00> : vector<112x128xf32>
    %29 = tpu.matmul %27, %28, %cst {dimension_numbers = #tpu.dot_dimension_numbers<[1], [0], [0], [1], [0, 0, 1, 1], [], []>} : vector<112x1152xbf16>, vector<1152x128xbf16>, vector<112x128xf32> -> vector<112x128xf32>
    %c0_37 = arith.constant 0 : index
    %c0_38 = arith.constant 0 : index
    %30 = vector.load %arg3[%c0_37, %c0_38] : memref<1x128xf32, #tpu.memory_space<vmem>>, vector<1x128xf32>
    %31 = vector.broadcast %30 : vector<1x128xf32> to vector<112x128xf32>
    %32 = arith.addf %29, %31 : vector<112x128xf32>
    %cst_39 = arith.constant -1.000000e+00 : f32
    %cst_40 = arith.constant 1.000000e+00 : f32
    %33 = vector.broadcast %cst_39 : f32 to vector<112x128xf32>
    %34 = arith.maximumf %33, %32 : vector<112x128xf32>
    %35 = vector.broadcast %cst_40 : f32 to vector<112x128xf32>
    %36 = arith.minimumf %35, %34 : vector<112x128xf32>
    %cst_41 = arith.constant 7.500000e+00 : f32
    %37 = vector.broadcast %cst_41 : f32 to vector<112x128xf32>
    %38 = arith.mulf %36, %37 : vector<112x128xf32>
    %cst_42 = arith.constant 7.500000e+00 : f32
    %39 = vector.broadcast %cst_42 : f32 to vector<112x128xf32>
    %40 = arith.addf %38, %39 : vector<112x128xf32>
    %41 = math.roundeven %40 : vector<112x128xf32>
    %cst_43 = arith.constant 0.13333334 : f32
    %42 = vector.broadcast %cst_43 : f32 to vector<112x128xf32>
    %43 = arith.mulf %41, %42 : vector<112x128xf32>
    %cst_44 = arith.constant 1.000000e+00 : f32
    %44 = vector.broadcast %cst_44 : f32 to vector<112x128xf32>
    %45 = arith.subf %43, %44 : vector<112x128xf32>
    %c0_45 = arith.constant 0 : index
    %c0_46 = arith.constant 0 : index
    %46 = vector.load %arg4[%c0_45, %c0_46] : memref<112x1xf32, #tpu.memory_space<vmem>>, vector<112x1xf32>
    %47 = vector.broadcast %46 : vector<112x1xf32> to vector<112x128xf32>
    %48 = arith.mulf %45, %47 : vector<112x128xf32>
    %49 = arith.truncf %48 : vector<112x128xf32> to vector<112x128xbf16>
    %c0_47 = arith.constant 0 : index
    %c0_48 = arith.constant 0 : index
    %c0_49 = arith.constant 0 : index
    %50 = vector.load %arg5[%c0_47, %c0_48, %c0_49] : memref<1x112x128xbf16, #tpu.memory_space<vmem>>, vector<1x112x128xbf16>
    %51 = vector.shape_cast %50 : vector<1x112x128xbf16> to vector<112x128xbf16>
    %52 = vector.shape_cast %49 : vector<112x128xbf16> to vector<1x112x128xbf16>
    tpu.vector_store %arg5[%c0_47, %c0_48, %c0_49], %52 {strides = array<i32>} : memref<1x112x128xbf16, #tpu.memory_space<vmem>>, vector<1x112x128xbf16>,
    return
  }
  func.func @transform_0(%arg0: i32) -> (i32, i32, i32) {
    %c0_i32 = arith.constant 0 : i32
    %c0_i32_0 = arith.constant 0 : i32
    %c0_i32_1 = arith.constant 0 : i32
    return %arg0, %c0_i32, %c0_i32_0 : i32, i32, i32
  }
  func.func @transform_1(%arg0: i32) -> (i32, i32) {
    %c0_i32 = arith.constant 0 : i32
    %c0_i32_0 = arith.constant 0 : i32
    %c0_i32_1 = arith.constant 0 : i32
    return %c0_i32, %c0_i32_0 : i32, i32
  }
  func.func @transform_2(%arg0: i32) -> (i32, i32) {
    %c0_i32 = arith.constant 0 : i32
    %c0_i32_0 = arith.constant 0 : i32
    %c0_i32_1 = arith.constant 0 : i32
    return %c0_i32, %c0_i32_0 : i32, i32
  }
  func.func @transform_3(%arg0: i32) -> (i32, i32) {
    %c0_i32 = arith.constant 0 : i32
    %c0_i32_0 = arith.constant 0 : i32
    %c0_i32_1 = arith.constant 0 : i32
    return %c0_i32, %c0_i32_0 : i32, i32
  }
  func.func @transform_4(%arg0: i32) -> (i32, i32, i32) {
    %c0_i32 = arith.constant 0 : i32
    %c0_i32_0 = arith.constant 0 : i32
    %c0_i32_1 = arith.constant 0 : i32
    return %arg0, %c0_i32, %c0_i32_0 : i32, i32, i32
  }
}

module attributes {stable_mosaic.version = 11 : i64} {
  func.func @conv_bn_proj_act_kernel(%arg0: i32, %arg1: memref<1x112x128xbf16, #tpu.memory_space<vmem>>, %arg2: memref<1152x128xbf16, #tpu.memory_space<vmem>>, %arg3: memref<1x128xf32, #tpu.memory_space<vmem>>, %arg4: memref<1x80x128xbf16, #tpu.memory_space<vmem>>, %arg5: memref<128x128xbf16, #tpu.memory_space<vmem>>, %arg6: memref<1x80x128xbf16, #tpu.memory_space<vmem>>, %arg7: memref<80x1152xbf16, #tpu.memory_space<vmem>>) attributes {dimension_semantics = [#tpu.dimension_semantics<parallel>], iteration_bounds = array<i64: 2>, scalar_prefetch = 0 : i64, scratch_operands = 1 : i64, tpu.core_type = #tpu.core_type<tc>, window_params = [{transform_indices = @transform_0, window_bounds = array<i64: 1, 112, 128>}, {pipeline_mode = #tpu.pipeline_mode<synchronous>, transform_indices = @transform_1, window_bounds = array<i64: 1152, 128>}, {pipeline_mode = #tpu.pipeline_mode<synchronous>, transform_indices = @transform_2, window_bounds = array<i64: 1, 128>}, {transform_indices = @transform_3, window_bounds = array<i64: 1, 80, 128>}, {pipeline_mode = #tpu.pipeline_mode<synchronous>, transform_indices = @transform_4, window_bounds = array<i64: 128, 128>}, {transform_indices = @transform_5, window_bounds = array<i64: 1, 80, 128>}]} {
    %c0 = arith.constant 0 : index
    %c0_0 = arith.constant 0 : index
    %c0_1 = arith.constant 0 : index
    %0 = vector.load %arg1[%c0, %c0_0, %c0_1] : memref<1x112x128xbf16, #tpu.memory_space<vmem>>, vector<1x80x128xbf16>
    %1 = vector.shape_cast %0 : vector<1x80x128xbf16> to vector<80x128xbf16>
    %c0_2 = arith.constant 0 : index
    %c0_3 = arith.constant 0 : index
    %2 = vector.load %arg7[%c0_2, %c0_3] : memref<80x1152xbf16, #tpu.memory_space<vmem>>, vector<80x128xbf16>
    tpu.vector_store %arg7[%c0_2, %c0_3], %1 {strides = array<i32>} : memref<80x1152xbf16, #tpu.memory_space<vmem>>, vector<80x128xbf16>,
    %c0_4 = arith.constant 0 : index
    %c1 = arith.constant 1 : index
    %c0_5 = arith.constant 0 : index
    %3 = vector.load %arg1[%c0_4, %c1, %c0_5] : memref<1x112x128xbf16, #tpu.memory_space<vmem>>, vector<1x80x128xbf16>
    %4 = vector.shape_cast %3 : vector<1x80x128xbf16> to vector<80x128xbf16>
    %c0_6 = arith.constant 0 : index
    %c128 = arith.constant 128 : index
    %5 = vector.load %arg7[%c0_6, %c128] : memref<80x1152xbf16, #tpu.memory_space<vmem>>, vector<80x128xbf16>
    tpu.vector_store %arg7[%c0_6, %c128], %4 {strides = array<i32>} : memref<80x1152xbf16, #tpu.memory_space<vmem>>, vector<80x128xbf16>,
    %c0_7 = arith.constant 0 : index
    %c2 = arith.constant 2 : index
    %c0_8 = arith.constant 0 : index
    %6 = vector.load %arg1[%c0_7, %c2, %c0_8] : memref<1x112x128xbf16, #tpu.memory_space<vmem>>, vector<1x80x128xbf16>
    %7 = vector.shape_cast %6 : vector<1x80x128xbf16> to vector<80x128xbf16>
    %c0_9 = arith.constant 0 : index
    %c256 = arith.constant 256 : index
    %8 = vector.load %arg7[%c0_9, %c256] : memref<80x1152xbf16, #tpu.memory_space<vmem>>, vector<80x128xbf16>
    tpu.vector_store %arg7[%c0_9, %c256], %7 {strides = array<i32>} : memref<80x1152xbf16, #tpu.memory_space<vmem>>, vector<80x128xbf16>,
    %c0_10 = arith.constant 0 : index
    %c10 = arith.constant 10 : index
    %c0_11 = arith.constant 0 : index
    %9 = vector.load %arg1[%c0_10, %c10, %c0_11] : memref<1x112x128xbf16, #tpu.memory_space<vmem>>, vector<1x80x128xbf16>
    %10 = vector.shape_cast %9 : vector<1x80x128xbf16> to vector<80x128xbf16>
    %c0_12 = arith.constant 0 : index
    %c384 = arith.constant 384 : index
    %11 = vector.load %arg7[%c0_12, %c384] : memref<80x1152xbf16, #tpu.memory_space<vmem>>, vector<80x128xbf16>
    tpu.vector_store %arg7[%c0_12, %c384], %10 {strides = array<i32>} : memref<80x1152xbf16, #tpu.memory_space<vmem>>, vector<80x128xbf16>,
    %c0_13 = arith.constant 0 : index
    %c11 = arith.constant 11 : index
    %c0_14 = arith.constant 0 : index
    %12 = vector.load %arg1[%c0_13, %c11, %c0_14] : memref<1x112x128xbf16, #tpu.memory_space<vmem>>, vector<1x80x128xbf16>
    %13 = vector.shape_cast %12 : vector<1x80x128xbf16> to vector<80x128xbf16>
    %c0_15 = arith.constant 0 : index
    %c512 = arith.constant 512 : index
    %14 = vector.load %arg7[%c0_15, %c512] : memref<80x1152xbf16, #tpu.memory_space<vmem>>, vector<80x128xbf16>
    tpu.vector_store %arg7[%c0_15, %c512], %13 {strides = array<i32>} : memref<80x1152xbf16, #tpu.memory_space<vmem>>, vector<80x128xbf16>,
    %c0_16 = arith.constant 0 : index
    %c12 = arith.constant 12 : index
    %c0_17 = arith.constant 0 : index
    %15 = vector.load %arg1[%c0_16, %c12, %c0_17] : memref<1x112x128xbf16, #tpu.memory_space<vmem>>, vector<1x80x128xbf16>
    %16 = vector.shape_cast %15 : vector<1x80x128xbf16> to vector<80x128xbf16>
    %c0_18 = arith.constant 0 : index
    %c640 = arith.constant 640 : index
    %17 = vector.load %arg7[%c0_18, %c640] : memref<80x1152xbf16, #tpu.memory_space<vmem>>, vector<80x128xbf16>
    tpu.vector_store %arg7[%c0_18, %c640], %16 {strides = array<i32>} : memref<80x1152xbf16, #tpu.memory_space<vmem>>, vector<80x128xbf16>,
    %c0_19 = arith.constant 0 : index
    %c20 = arith.constant 20 : index
    %c0_20 = arith.constant 0 : index
    %18 = vector.load %arg1[%c0_19, %c20, %c0_20] : memref<1x112x128xbf16, #tpu.memory_space<vmem>>, vector<1x80x128xbf16>
    %19 = vector.shape_cast %18 : vector<1x80x128xbf16> to vector<80x128xbf16>
    %c0_21 = arith.constant 0 : index
    %c768 = arith.constant 768 : index
    %20 = vector.load %arg7[%c0_21, %c768] : memref<80x1152xbf16, #tpu.memory_space<vmem>>, vector<80x128xbf16>
    tpu.vector_store %arg7[%c0_21, %c768], %19 {strides = array<i32>} : memref<80x1152xbf16, #tpu.memory_space<vmem>>, vector<80x128xbf16>,
    %c0_22 = arith.constant 0 : index
    %c21 = arith.constant 21 : index
    %c0_23 = arith.constant 0 : index
    %21 = vector.load %arg1[%c0_22, %c21, %c0_23] : memref<1x112x128xbf16, #tpu.memory_space<vmem>>, vector<1x80x128xbf16>
    %22 = vector.shape_cast %21 : vector<1x80x128xbf16> to vector<80x128xbf16>
    %c0_24 = arith.constant 0 : index
    %c896 = arith.constant 896 : index
    %23 = vector.load %arg7[%c0_24, %c896] : memref<80x1152xbf16, #tpu.memory_space<vmem>>, vector<80x128xbf16>
    tpu.vector_store %arg7[%c0_24, %c896], %22 {strides = array<i32>} : memref<80x1152xbf16, #tpu.memory_space<vmem>>, vector<80x128xbf16>,
    %c0_25 = arith.constant 0 : index
    %c22 = arith.constant 22 : index
    %c0_26 = arith.constant 0 : index
    %24 = vector.load %arg1[%c0_25, %c22, %c0_26] : memref<1x112x128xbf16, #tpu.memory_space<vmem>>, vector<1x80x128xbf16>
    %25 = vector.shape_cast %24 : vector<1x80x128xbf16> to vector<80x128xbf16>
    %c0_27 = arith.constant 0 : index
    %c1024 = arith.constant 1024 : index
    %26 = vector.load %arg7[%c0_27, %c1024] : memref<80x1152xbf16, #tpu.memory_space<vmem>>, vector<80x128xbf16>
    tpu.vector_store %arg7[%c0_27, %c1024], %25 {strides = array<i32>} : memref<80x1152xbf16, #tpu.memory_space<vmem>>, vector<80x128xbf16>,
    %c0_28 = arith.constant 0 : index
    %c0_29 = arith.constant 0 : index
    %27 = vector.load %arg7[%c0_28, %c0_29] : memref<80x1152xbf16, #tpu.memory_space<vmem>>, vector<80x1152xbf16>
    %c0_30 = arith.constant 0 : index
    %c0_31 = arith.constant 0 : index
    %28 = vector.load %arg2[%c0_30, %c0_31] : memref<1152x128xbf16, #tpu.memory_space<vmem>>, vector<1152x128xbf16>
    %cst = arith.constant dense<0.000000e+00> : vector<80x128xf32>
    %29 = tpu.matmul %27, %28, %cst {dimension_numbers = #tpu.dot_dimension_numbers<[1], [0], [0], [1], [0, 0, 1, 1], [], []>} : vector<80x1152xbf16>, vector<1152x128xbf16>, vector<80x128xf32> -> vector<80x128xf32>
    %c0_32 = arith.constant 0 : index
    %c0_33 = arith.constant 0 : index
    %30 = vector.load %arg3[%c0_32, %c0_33] : memref<1x128xf32, #tpu.memory_space<vmem>>, vector<1x128xf32>
    %31 = vector.broadcast %30 : vector<1x128xf32> to vector<80x128xf32>
    %32 = arith.addf %29, %31 : vector<80x128xf32>
    %c0_34 = arith.constant 0 : index
    %c0_35 = arith.constant 0 : index
    %c0_36 = arith.constant 0 : index
    %33 = vector.load %arg4[%c0_34, %c0_35, %c0_36] : memref<1x80x128xbf16, #tpu.memory_space<vmem>>, vector<1x80x128xbf16>
    %34 = vector.shape_cast %33 : vector<1x80x128xbf16> to vector<80x128xbf16>
    %c0_37 = arith.constant 0 : index
    %c0_38 = arith.constant 0 : index
    %35 = vector.load %arg5[%c0_37, %c0_38] : memref<128x128xbf16, #tpu.memory_space<vmem>>, vector<128x128xbf16>
    %cst_39 = arith.constant dense<0.000000e+00> : vector<80x128xf32>
    %36 = tpu.matmul %34, %35, %cst_39 {dimension_numbers = #tpu.dot_dimension_numbers<[1], [0], [0], [1], [0, 0, 1, 1], [], []>} : vector<80x128xbf16>, vector<128x128xbf16>, vector<80x128xf32> -> vector<80x128xf32>
    %37 = arith.addf %32, %36 : vector<80x128xf32>
    %cst_40 = arith.constant -1.000000e+00 : f32
    %cst_41 = arith.constant 1.000000e+00 : f32
    %38 = vector.broadcast %cst_40 : f32 to vector<80x128xf32>
    %39 = arith.maximumf %38, %37 : vector<80x128xf32>
    %40 = vector.broadcast %cst_41 : f32 to vector<80x128xf32>
    %41 = arith.minimumf %40, %39 : vector<80x128xf32>
    %cst_42 = arith.constant 7.500000e+00 : f32
    %42 = vector.broadcast %cst_42 : f32 to vector<80x128xf32>
    %43 = arith.mulf %41, %42 : vector<80x128xf32>
    %cst_43 = arith.constant 7.500000e+00 : f32
    %44 = vector.broadcast %cst_43 : f32 to vector<80x128xf32>
    %45 = arith.addf %43, %44 : vector<80x128xf32>
    %46 = math.roundeven %45 : vector<80x128xf32>
    %cst_44 = arith.constant 0.13333334 : f32
    %47 = vector.broadcast %cst_44 : f32 to vector<80x128xf32>
    %48 = arith.mulf %46, %47 : vector<80x128xf32>
    %cst_45 = arith.constant 1.000000e+00 : f32
    %49 = vector.broadcast %cst_45 : f32 to vector<80x128xf32>
    %50 = arith.subf %48, %49 : vector<80x128xf32>
    %51 = arith.truncf %50 : vector<80x128xf32> to vector<80x128xbf16>
    %c0_46 = arith.constant 0 : index
    %c0_47 = arith.constant 0 : index
    %c0_48 = arith.constant 0 : index
    %52 = vector.load %arg6[%c0_46, %c0_47, %c0_48] : memref<1x80x128xbf16, #tpu.memory_space<vmem>>, vector<1x80x128xbf16>
    %53 = vector.shape_cast %52 : vector<1x80x128xbf16> to vector<80x128xbf16>
    %54 = vector.shape_cast %51 : vector<80x128xbf16> to vector<1x80x128xbf16>
    tpu.vector_store %arg6[%c0_46, %c0_47, %c0_48], %54 {strides = array<i32>} : memref<1x80x128xbf16, #tpu.memory_space<vmem>>, vector<1x80x128xbf16>,
    return
  }
  func.func @transform_0(%arg0: i32) -> (i32, i32, i32) {
    %c0_i32 = arith.constant 0 : i32
    %c0_i32_0 = arith.constant 0 : i32
    %c0_i32_1 = arith.constant 0 : i32
    return %arg0, %c0_i32, %c0_i32_0 : i32, i32, i32
  }
  func.func @transform_1(%arg0: i32) -> (i32, i32) {
    %c0_i32 = arith.constant 0 : i32
    %c0_i32_0 = arith.constant 0 : i32
    %c0_i32_1 = arith.constant 0 : i32
    return %c0_i32, %c0_i32_0 : i32, i32
  }
  func.func @transform_2(%arg0: i32) -> (i32, i32) {
    %c0_i32 = arith.constant 0 : i32
    %c0_i32_0 = arith.constant 0 : i32
    %c0_i32_1 = arith.constant 0 : i32
    return %c0_i32, %c0_i32_0 : i32, i32
  }
  func.func @transform_3(%arg0: i32) -> (i32, i32, i32) {
    %c0_i32 = arith.constant 0 : i32
    %c0_i32_0 = arith.constant 0 : i32
    %c0_i32_1 = arith.constant 0 : i32
    return %arg0, %c0_i32, %c0_i32_0 : i32, i32, i32
  }
  func.func @transform_4(%arg0: i32) -> (i32, i32) {
    %c0_i32 = arith.constant 0 : i32
    %c0_i32_0 = arith.constant 0 : i32
    %c0_i32_1 = arith.constant 0 : i32
    return %c0_i32, %c0_i32_0 : i32, i32
  }
  func.func @transform_5(%arg0: i32) -> (i32, i32, i32) {
    %c0_i32 = arith.constant 0 : i32
    %c0_i32_0 = arith.constant 0 : i32
    %c0_i32_1 = arith.constant 0 : i32
    return %arg0, %c0_i32, %c0_i32_0 : i32, i32, i32
  }
}

</mosaic_0001>

<llo_original>
// kernel: basic_block_forward.2
$region0: #{basic_block_forward.2}
  #allocation0 [shape = 'u32[]', space=smem, size = 0x4, offset = 0x4, fixed_abs, tag = 'smem constant byte address 0x4 - core index']
  #allocation1 [shape = 'u32[144,128]{1,0:T(1,128)}', space=vmem, size = 0x12000, scoped, tag = 'internal scratch']
  #allocation2 [shape = 'bf16[112,1152]{1,0:T(16,128)(2,1)}', space=vmem, size = 0x3f000, scoped, tag = 'scratch operand']
  %s0 = inlined_call_operand.vmem [shape: bf16[2,128,512], index: 0, kind: input, shape index: {}]
  %s1 = inlined_call_operand.vmem [shape: bf16[1152,128], index: 1, kind: input, shape index: {}]
  %s2 = inlined_call_operand.vmem [shape: f32[1,128], index: 2, kind: input, shape index: {}]
  %s3 = inlined_call_operand.vmem [shape: f32[112,1], index: 3, kind: input, shape index: {}]
  %s4 = inlined_call_operand.vmem [shape: bf16[2,112,128], index: 4, kind: output, shape index: {}]
  %s5 = sld [smem:[#allocation0]]
  $region49: #{basic_block_forward.2} parent=0
    _
  %s7 = ssub.s32 1, %s5
  %s8 = scalar_select 0, %s7, %s5
  loop: start=0, step=1, limit=4
  $region2: #{basic_block_forward.2} parent=0 // loop_pre_header
    _
  $region3: #{basic_block_forward.2} parent=0 // loop_header
    %s10 = sphi 0, %s14
    %p11 = scmp.ge.s32.totalorder %s10, 4
    %s20 = sphi 0, %s22
    %s23 = sphi 0, %s20
    %s24 = sphi 0, %s23
    %s40 = sphi 0, %s24
    %s44 = sphi 0, %s44
    %s46 = sphi 0, %s44
    %s47 = sphi 0, %s46
    %s61 = sphi 0, %s47
    %s65 = sphi 0, %s65
    %s67 = sphi 0, %s65
    %s68 = sphi 0, %s67
    %s82 = sphi 0, %s68
    %s86 = sphi 0, %s86
    %s88 = sphi 0, %s86
    %s89 = sphi 0, %s88
    %s103 = sphi 0, %s89
    %s109 = sphi 0, %s111
    %s112 = sphi 0, %s109
    %s113 = sphi 0, %s112
    %s129 = sphi 0, %s113
  $region4: #{basic_block_forward.2} parent=0 // loop_header_branch
    %13 = sbr.rel (%p11) target = $region8
  $region5: #{basic_block_forward.2} parent=0 // loop_body
    %s15 = ssub.s32 %s10, 1
    %s16 = ssub.s32 %s10, 2
    %s17 = sadd.s32 %s10, 1
    %s18 = ssub.s32 %s10, %s17
    %p19 = scmp.eq.s32.totalorder %s18, 0
    %s21 = sadd.s32 %s20, 1
    %s22 = scalar_select %p19, %s20, %s21
    %p25 = pneg %p19
    %p26 = scmp.eq.s32.totalorder %s10, 1
    %p27 = por %p25, %p26
    %p28 = scmp.ne.s32.totalorder %s20, %s23
    %p29 = scmp.eq.s32.totalorder %s10, 0
    %p30 = por %p28, %p29
    %p31 = scmp.ne.s32.totalorder %s20, %s23
    %p32 = scmp.eq.s32.totalorder %s15, 1
    %p33 = por %p31, %p32
    %p34 = scmp.ne.s32.totalorder %s23, %s24
    %p35 = scmp.eq.s32.totalorder %s15, 0
    %p36 = por %p34, %p35
    %p37 = scmp.ne.s32.totalorder %s23, %s24
    %p38 = scmp.eq.s32.totalorder %s16, 1
    %p39 = por %p37, %p38
    %p41 = scmp.ne.s32.totalorder %s24, %s40
    %p42 = scmp.eq.s32.totalorder %s16, 0
    %p43 = por %p41, %p42
    %s45 = sadd.s32 %s44, 1
    %p48 = scmp.eq.s32.totalorder %s10, 1
    %p49 = scmp.ne.s32.totalorder %s44, %s46
    %p50 = scmp.eq.s32.totalorder %s10, 0
    %p51 = por %p49, %p50
    %p52 = scmp.ne.s32.totalorder %s44, %s46
    %p53 = scmp.eq.s32.totalorder %s15, 1
    %p54 = por %p52, %p53
    %p55 = scmp.ne.s32.totalorder %s46, %s47
    %p56 = scmp.eq.s32.totalorder %s15, 0
    %p57 = por %p55, %p56
    %p58 = scmp.ne.s32.totalorder %s46, %s47
    %p59 = scmp.eq.s32.totalorder %s16, 1
    %p60 = por %p58, %p59
    %p62 = scmp.ne.s32.totalorder %s47, %s61
    %p63 = scmp.eq.s32.totalorder %s16, 0
    %p64 = por %p62, %p63
    %s66 = sadd.s32 %s65, 1
    %p69 = scmp.eq.s32.totalorder %s10, 1
    %p70 = scmp.ne.s32.totalorder %s65, %s67
    %p71 = scmp.eq.s32.totalorder %s10, 0
    %p72 = por %p70, %p71
    %p73 = scmp.ne.s32.totalorder %s65, %s67
    %p74 = scmp.eq.s32.totalorder %s15, 1
    %p75 = por %p73, %p74
    %p76 = scmp.ne.s32.totalorder %s67, %s68
    %p77 = scmp.eq.s32.totalorder %s15, 0
    %p78 = por %p76, %p77
    %p79 = scmp.ne.s32.totalorder %s67, %s68
    %p80 = scmp.eq.s32.totalorder %s16, 1
    %p81 = por %p79, %p80
    %p83 = scmp.ne.s32.totalorder %s68, %s82
    %p84 = scmp.eq.s32.totalorder %s16, 0
    %p85 = por %p83, %p84
    %s87 = sadd.s32 %s86, 1
    %p90 = scmp.eq.s32.totalorder %s10, 1
    %p91 = scmp.ne.s32.totalorder %s86, %s88
    %p92 = scmp.eq.s32.totalorder %s10, 0
    %p93 = por %p91, %p92
    %p94 = scmp.ne.s32.totalorder %s86, %s88
    %p95 = scmp.eq.s32.totalorder %s15, 1
    %p96 = por %p94, %p95
    %p97 = scmp.ne.s32.totalorder %s88, %s89
    %p98 = scmp.eq.s32.totalorder %s15, 0
    %p99 = por %p97, %p98
    %p100 = scmp.ne.s32.totalorder %s88, %s89
    %p101 = scmp.eq.s32.totalorder %s16, 1
    %p102 = por %p100, %p101
    %p104 = scmp.ne.s32.totalorder %s89, %s103
    %p105 = scmp.eq.s32.totalorder %s16, 0
    %p106 = por %p104, %p105
    %s107 = ssub.s32 %s10, %s17
    %p108 = scmp.eq.s32.totalorder %s107, 0
    %s110 = sadd.s32 %s109, 1
    %s111 = scalar_select %p108, %s109, %s110
    %p114 = pneg %p108
    %p115 = scmp.eq.s32.totalorder %s10, 1
    %p116 = por %p114, %p115
    %p117 = scmp.ne.s32.totalorder %s109, %s112
    %p118 = scmp.eq.s32.totalorder %s10, 0
    %p119 = por %p117, %p118
    %p120 = scmp.ne.s32.totalorder %s109, %s112
    %p121 = scmp.eq.s32.totalorder %s15, 1
    %p122 = por %p120, %p121
    %p123 = scmp.ne.s32.totalorder %s112, %s113
    %p124 = scmp.eq.s32.totalorder %s15, 0
    %p125 = por %p123, %p124
    %p126 = scmp.ne.s32.totalorder %s112, %s113
    %p127 = scmp.eq.s32.totalorder %s16, 1
    %p128 = por %p126, %p127
    %p130 = scmp.ne.s32.totalorder %s113, %s129
    %p131 = scmp.eq.s32.totalorder %s16, 0
    %p132 = por %p130, %p131
    %p133 = scmp.le.s32.totalorder 1, %s10
    %p134 = scmp.lt.s32.totalorder %s10, 3
    %p135 = pnand %p133, %p134
    %p136 = pneg %p135
    // Predicated region
    $region9: #{basic_block_forward.2} parent=5 // pred_check
      _
    $region10: #{basic_block_forward.2} parent=5 // pred_check_branch
      %138 = sbr.rel (%p135) target = $region12
    $region11: #{basic_block_forward.2} parent=5 // pred_region
      %s139 = ssub.s32 %s10, 1
      // Predicated region
      $region13: #{basic_block_forward.2} parent=11 // pred_check
        %p140 = pneg %p57
      $region14: #{basic_block_forward.2} parent=11 // pred_check_branch
        %142 = sbr.rel (%p140) target = $region16
      $region15: #{basic_block_forward.2} parent=11 // pred_region
        _
      $region16: #{basic_block_forward.2} parent=11 // pred_fallthru
        _
      // Predicated region
      $region17: #{basic_block_forward.2} parent=11 // pred_check
        %p143 = pneg %p78
      $region18: #{basic_block_forward.2} parent=11 // pred_check_branch
        %145 = sbr.rel (%p143) target = $region20
      $region19: #{basic_block_forward.2} parent=11 // pred_region
        _
      $region20: #{basic_block_forward.2} parent=11 // pred_fallthru
        _
      // Predicated region
      $region21: #{basic_block_forward.2} parent=11 // pred_check
        %p146 = pneg %p99
      $region22: #{basic_block_forward.2} parent=11 // pred_check_branch
        %148 = sbr.rel (%p146) target = $region24
      $region23: #{basic_block_forward.2} parent=11 // pred_region
        _
      $region24: #{basic_block_forward.2} parent=11 // pred_fallthru
        _
    $region12: #{basic_block_forward.2} parent=5 // pred_fallthru
      _
    %p149 = scmp.lt.s32.totalorder %s10, 2
    // Predicated region
    $region25: #{basic_block_forward.2} parent=5 // pred_check
      %p150 = pneg %p149
    $region26: #{basic_block_forward.2} parent=5 // pred_check_branch
      %152 = sbr.rel (%p150) target = $region28
    $region27: #{basic_block_forward.2} parent=5 // pred_region
      // Predicated region
      $region29: #{basic_block_forward.2} parent=27 // pred_check
        %p153 = pneg %p30
      $region30: #{basic_block_forward.2} parent=27 // pred_check_branch
        %155 = sbr.rel (%p153) target = $region32
      $region31: #{basic_block_forward.2} parent=27 // pred_region
        %p156 = scmp.lt.s32.totalorder %s10, 1
        %s157 = scalar_select %p156, %s10, 1
        %s158 = smul.addr %s157, 64
        %s159 = smul.addr %s158, 4
        %s160 = scalar_lea.vmem %s0, %s159
      $region32: #{basic_block_forward.2} parent=27 // pred_fallthru
        _
    $region28: #{basic_block_forward.2} parent=5 // pred_fallthru
      _
    %p161 = scmp.le.s32.totalorder 1, %s10
    %p162 = scmp.lt.s32.totalorder %s10, 3
    %p163 = pnand %p161, %p162
    %p164 = pneg %p163
    // Predicated region
    $region33: #{basic_block_forward.2} parent=5 // pred_check
      _
    $region34: #{basic_block_forward.2} parent=5 // pred_check_branch
      %166 = sbr.rel (%p163) target = $region36
    $region35: #{basic_block_forward.2} parent=5 // pred_region
      %s167 = ssub.s32 %s10, 1
      %p168 = scmp.lt.s32.totalorder %s15, 1
      %s169 = scalar_select %p168, %s15, 1
      %s170 = smul.addr %s169, 64
      %s171 = smul.addr %s170, 4
      %s172 = scalar_lea.vmem %s0, %s171
      %p173 = pneg %p36
      %p174 = pneg %p33
      %p175 = pneg %p57
      %p176 = pneg %p54
      %p177 = pneg %p78
      %p178 = pneg %p75
      %p179 = pneg %p99
      %p180 = pneg %p96
      %p181 = pneg %p125
      %p182 = pneg %p122
      %p183 = scmp.lt.s32.totalorder %s15, 1
      %s184 = scalar_select %p183, %s15, 1
      %s185 = smul.addr %s184, 14
      %s186 = smul.addr %s185, 4
      %s187 = scalar_lea.vmem %s4, %s186
      %p188 = scmp.lt.s32.totalorder %s15, 1
      %s189 = scalar_select %p188, %s15, 1
      %s190 = smul.addr %s189, 64
      %s191 = smul.addr %s190, 4
      %s192 = scalar_lea.vmem %s0, %s191
      %p193 = scmp.lt.s32.totalorder %s15, 1
      %s194 = scalar_select %p193, %s15, 1
      %s195 = smul.addr %s194, 14
      %s196 = smul.addr %s195, 4
      %s197 = scalar_lea.vmem %s4, %s196
      %v199 = vld [vmem:[%s192] sm:$0xf]
      %v200 = vld [vmem:[%s192 + $0x10] sm:$0xf]
      %v201 = vld [vmem:[%s192 + $0x20] sm:$0xf]
      %v202 = vld [vmem:[%s192 + $0x30] sm:$0xf]
      %v203 = vld [vmem:[%s192 + $0x40] sm:$0xf]
      %v204 = vld [vmem:[%s192 + $0x50] sm:$0xf]
      %v205 = vld [vmem:[%s192 + $0x60] sm:$0xf]
      %v206 = vld [vmem:[%s192 + $0x70] sm:$0xf]
      %v207 = vld [vmem:[%s192 + $0x80] sm:$0xf]
      %v208 = vld [vmem:[%s192 + $0x90] sm:$0xf]
      %v209 = vld [vmem:[%s192 + $0xa0] sm:$0xf]
      %v210 = vld [vmem:[%s192 + $0xb0] sm:$0xf]
      %v211 = vld [vmem:[%s192 + $0xc0] sm:$0xf]
      %v212 = vld [vmem:[%s192 + $0xd0] sm:$0xf]
      %v227 = vunpack.c.l.b16 %v199
      %v228 = vunpack.c.l.b16 %v200
      %v229 = vunpack.c.l.b16 %v201
      %v230 = vunpack.c.l.b16 %v202
      %v231 = vunpack.c.l.b16 %v203
      %v232 = vunpack.c.l.b16 %v204
      %v233 = vunpack.c.l.b16 %v205
      %v234 = vunpack.c.l.b16 %v206
      %v235 = vunpack.c.l.b16 %v207
      %v236 = vunpack.c.l.b16 %v208
      %v237 = vunpack.c.l.b16 %v209
      %v238 = vunpack.c.l.b16 %v210
      %v239 = vunpack.c.l.b16 %v211
      %v240 = vunpack.c.l.b16 %v212
      %v241 = vpack.c.b16 %v228, %v227
      %v242 = vpack.c.b16 %v230, %v229
      %v243 = vpack.c.b16 %v232, %v231
      %v244 = vpack.c.b16 %v234, %v233
      %v245 = vpack.c.b16 %v236, %v235
      %v246 = vpack.c.b16 %v238, %v237
      %v247 = vpack.c.b16 %v240, %v239
      %255 = vst [vmem:[#allocation2] sm:$0xff] %v241
      %256 = vst [vmem:[#allocation2 + $0x48] sm:$0xff] %v242
      %257 = vst [vmem:[#allocation2 + $0x90] sm:$0xff] %v243
      %258 = vst [vmem:[#allocation2 + $0xd8] sm:$0xff] %v244
      %259 = vst [vmem:[#allocation2 + $0x120] sm:$0xff] %v245
      %260 = vst [vmem:[#allocation2 + $0x168] sm:$0xff] %v246
      %261 = vst [vmem:[#allocation2 + $0x1b0] sm:$0xff] %v247
      %v262 = vld [vmem:[%s192 + $0x4] sm:$0xf]
      %v263 = vld [vmem:[%s192 + $0x14] sm:$0xf]
      %v264 = vld [vmem:[%s192 + $0x24] sm:$0xf]
      %v265 = vld [vmem:[%s192 + $0x34] sm:$0xf]
      %v266 = vld [vmem:[%s192 + $0x44] sm:$0xf]
      %v267 = vld [vmem:[%s192 + $0x54] sm:$0xf]
      %v268 = vld [vmem:[%s192 + $0x64] sm:$0xf]
      %v269 = vld [vmem:[%s192 + $0x74] sm:$0xf]
      %v270 = vld [vmem:[%s192 + $0x84] sm:$0xf]
      %v271 = vld [vmem:[%s192 + $0x94] sm:$0xf]
      %v272 = vld [vmem:[%s192 + $0xa4] sm:$0xf]
      %v273 = vld [vmem:[%s192 + $0xb4] sm:$0xf]
      %v274 = vld [vmem:[%s192 + $0xc4] sm:$0xf]
      %v275 = vld [vmem:[%s192 + $0xd4] sm:$0xf]
      %v290 = vunpack.c.l.b16 %v262
      %v291 = vunpack.c.l.b16 %v263
      %v292 = vunpack.c.l.b16 %v264
      %v293 = vunpack.c.l.b16 %v265
      %v294 = vunpack.c.l.b16 %v266
      %v295 = vunpack.c.l.b16 %v267
      %v296 = vunpack.c.l.b16 %v268
      %v297 = vunpack.c.l.b16 %v269
      %v298 = vunpack.c.l.b16 %v270
      %v299 = vunpack.c.l.b16 %v271
      %v300 = vunpack.c.l.b16 %v272
      %v301 = vunpack.c.l.b16 %v273
      %v302 = vunpack.c.l.b16 %v274
      %v303 = vunpack.c.l.b16 %v275
      %v304 = vpack.c.b16 %v291, %v290
      %v305 = vpack.c.b16 %v293, %v292
      %v306 = vpack.c.b16 %v295, %v294
      %v307 = vpack.c.b16 %v297, %v296
      %v308 = vpack.c.b16 %v299, %v298
      %v309 = vpack.c.b16 %v301, %v300
      %v310 = vpack.c.b16 %v303, %v302
      %318 = vst [vmem:[#allocation2 + $0x8] sm:$0xff] %v304
      %319 = vst [vmem:[#allocation2 + $0x50] sm:$0xff] %v305
      %320 = vst [vmem:[#allocation2 + $0x98] sm:$0xff] %v306
      %321 = vst [vmem:[#allocation2 + $0xe0] sm:$0xff] %v307
      %322 = vst [vmem:[#allocation2 + $0x128] sm:$0xff] %v308
      %323 = vst [vmem:[#allocation2 + $0x170] sm:$0xff] %v309
      %324 = vst [vmem:[#allocation2 + $0x1b8] sm:$0xff] %v310
      %v325 = vld [vmem:[%s192] sm:$0xf]
      %v326 = vld [vmem:[%s192 + $0x10] sm:$0xf]
      %v327 = vld [vmem:[%s192 + $0x20] sm:$0xf]
      %v328 = vld [vmem:[%s192 + $0x30] sm:$0xf]
      %v329 = vld [vmem:[%s192 + $0x40] sm:$0xf]
      %v330 = vld [vmem:[%s192 + $0x50] sm:$0xf]
      %v331 = vld [vmem:[%s192 + $0x60] sm:$0xf]
      %v332 = vld [vmem:[%s192 + $0x70] sm:$0xf]
      %v333 = vld [vmem:[%s192 + $0x80] sm:$0xf]
      %v334 = vld [vmem:[%s192 + $0x90] sm:$0xf]
      %v335 = vld [vmem:[%s192 + $0xa0] sm:$0xf]
      %v336 = vld [vmem:[%s192 + $0xb0] sm:$0xf]
      %v337 = vld [vmem:[%s192 + $0xc0] sm:$0xf]
      %v338 = vld [vmem:[%s192 + $0xd0] sm:$0xf]
      %v339 = vld [vmem:[%s192 + $0xe0] sm:$0x1]
      %v355 = vunpack.c.l.b16 %v325
      %v356 = vunpack.c.l.b16 %v326
      %v357 = vunpack.c.l.b16 %v327
      %v358 = vunpack.c.l.b16 %v328
      %v359 = vunpack.c.l.b16 %v329
      %v360 = vunpack.c.l.b16 %v330
      %v361 = vunpack.c.l.b16 %v331
      %v362 = vunpack.c.l.b16 %v332
      %v363 = vunpack.c.l.b16 %v333
      %v364 = vunpack.c.l.b16 %v334
      %v365 = vunpack.c.l.b16 %v335
      %v366 = vunpack.c.l.b16 %v336
      %v367 = vunpack.c.l.b16 %v337
      %v368 = vunpack.c.l.b16 %v338
      %v369 = vunpack.c.l.b16 %v339
      %v370 = vpack.c.b16 %v356, %v355
      %v371 = vpack.c.b16 %v358, %v357
      %v372 = vpack.c.b16 %v360, %v359
      %v373 = vpack.c.b16 %v362, %v361
      %v374 = vpack.c.b16 %v364, %v363
      %v375 = vpack.c.b16 %v366, %v365
      %v376 = vpack.c.b16 %v368, %v367
      %v377 = vpack.c.b16 %v369, %v369
      %vm378 = vsmask.f32 7424
      %v380 = vshrl.u32 %v370, 16
      %v382 = vshll.u32 %v370, 16
      %v384 = vrot.slane %v382, 1
      %v385 = vor.u32 %v380, %v384
      %v387 = vshll.u32 %v371, 16
      %v389 = vrot.slane %v387, 1
      %v390 = vsel %vm378, %v385, %v389
      %v391 = vshrl.u32 %v371, 16
      %v393 = vor.u32 %v391, %v389
      %v395 = vshll.u32 %v372, 16
      %v397 = vrot.slane %v395, 1
      %v398 = vsel %vm378, %v393, %v397
      %v399 = vshrl.u32 %v372, 16
      %v401 = vor.u32 %v399, %v397
      %v403 = vshll.u32 %v373, 16
      %v405 = vrot.slane %v403, 1
      %v406 = vsel %vm378, %v401, %v405
      %v407 = vshrl.u32 %v373, 16
      %v409 = vor.u32 %v407, %v405
      %v411 = vshll.u32 %v374, 16
      %v413 = vrot.slane %v411, 1
      %v414 = vsel %vm378, %v409, %v413
      %v415 = vshrl.u32 %v374, 16
      %v417 = vor.u32 %v415, %v413
      %v419 = vshll.u32 %v375, 16
      %v421 = vrot.slane %v419, 1
      %v422 = vsel %vm378, %v417, %v421
      %v423 = vshrl.u32 %v375, 16
      %v425 = vor.u32 %v423, %v421
      %v427 = vshll.u32 %v376, 16
      %v429 = vrot.slane %v427, 1
      %v430 = vsel %vm378, %v425, %v429
      %v431 = vshrl.u32 %v376, 16
      %v433 = vor.u32 %v431, %v429
      %v435 = vshll.u32 %v377, 16
      %v437 = vrot.slane %v435, 1
      %v438 = vsel %vm378, %v433, %v437
      %446 = vst [vmem:[#allocation2 + $0x10] sm:$0xff] %v390
      %447 = vst [vmem:[#allocation2 + $0x58] sm:$0xff] %v398
      %448 = vst [vmem:[#allocation2 + $0xa0] sm:$0xff] %v406
      %449 = vst [vmem:[#allocation2 + $0xe8] sm:$0xff] %v414
      %450 = vst [vmem:[#allocation2 + $0x130] sm:$0xff] %v422
      %451 = vst [vmem:[#allocation2 + $0x178] sm:$0xff] %v430
      %452 = vst [vmem:[#allocation2 + $0x1c0] sm:$0xff] %v438
      %v453 = vld [vmem:[%s192 + $0x8] sm:$0xf]
      %v454 = vld [vmem:[%s192 + $0x18] sm:$0xf]
      %v455 = vld [vmem:[%s192 + $0x28] sm:$0xf]
      %v456 = vld [vmem:[%s192 + $0x38] sm:$0xf]
      %v457 = vld [vmem:[%s192 + $0x48] sm:$0xf]
      %v458 = vld [vmem:[%s192 + $0x58] sm:$0xf]
      %v459 = vld [vmem:[%s192 + $0x68] sm:$0xf]
      %v460 = vld [vmem:[%s192 + $0x78] sm:$0xf]
      %v461 = vld [vmem:[%s192 + $0x88] sm:$0xf]
      %v462 = vld [vmem:[%s192 + $0x98] sm:$0xf]
      %v463 = vld [vmem:[%s192 + $0xa8] sm:$0xf]
      %v464 = vld [vmem:[%s192 + $0xb8] sm:$0xf]
      %v465 = vld [vmem:[%s192 + $0xc8] sm:$0xf]
      %v466 = vld [vmem:[%s192 + $0xd8] sm:$0xf]
      %v481 = vunpack.c.l.b16 %v453
      %v482 = vunpack.c.l.b16 %v454
      %v483 = vunpack.c.l.b16 %v455
      %v484 = vunpack.c.l.b16 %v456
      %v485 = vunpack.c.l.b16 %v457
      %v486 = vunpack.c.l.b16 %v458
      %v487 = vunpack.c.l.b16 %v459
      %v488 = vunpack.c.l.b16 %v460
      %v489 = vunpack.c.l.b16 %v461
      %v490 = vunpack.c.l.b16 %v462
      %v491 = vunpack.c.l.b16 %v463
      %v492 = vunpack.c.l.b16 %v464
      %v493 = vunpack.c.l.b16 %v465
      %v494 = vunpack.c.l.b16 %v466
      %v495 = vpack.c.b16 %v482, %v481
      %v496 = vpack.c.b16 %v484, %v483
      %v497 = vpack.c.b16 %v486, %v485
      %v498 = vpack.c.b16 %v488, %v487
      %v499 = vpack.c.b16 %v490, %v489
      %v500 = vpack.c.b16 %v492, %v491
      %v501 = vpack.c.b16 %v494, %v493
      %509 = vst [vmem:[#allocation2 + $0x18] sm:$0xff] %v495
      %510 = vst [vmem:[#allocation2 + $0x60] sm:$0xff] %v496
      %511 = vst [vmem:[#allocation2 + $0xa8] sm:$0xff] %v497
      %512 = vst [vmem:[#allocation2 + $0xf0] sm:$0xff] %v498
      %513 = vst [vmem:[#allocation2 + $0x138] sm:$0xff] %v499
      %514 = vst [vmem:[#allocation2 + $0x180] sm:$0xff] %v500
      %515 = vst [vmem:[#allocation2 + $0x1c8] sm:$0xff] %v501
      %v516 = vld [vmem:[%s192 + $0xc] sm:$0xf]
      %v517 = vld [vmem:[%s192 + $0x1c] sm:$0xf]
      %v518 = vld [vmem:[%s192 + $0x2c] sm:$0xf]
      %v519 = vld [vmem:[%s192 + $0x3c] sm:$0xf]
      %v520 = vld [vmem:[%s192 + $0x4c] sm:$0xf]
      %v521 = vld [vmem:[%s192 + $0x5c] sm:$0xf]
      %v522 = vld [vmem:[%s192 + $0x6c] sm:$0xf]
      %v523 = vld [vmem:[%s192 + $0x7c] sm:$0xf]
      %v524 = vld [vmem:[%s192 + $0x8c] sm:$0xf]
      %v525 = vld [vmem:[%s192 + $0x9c] sm:$0xf]
      %v526 = vld [vmem:[%s192 + $0xac] sm:$0xf]
      %v527 = vld [vmem:[%s192 + $0xbc] sm:$0xf]
      %v528 = vld [vmem:[%s192 + $0xcc] sm:$0xf]
      %v529 = vld [vmem:[%s192 + $0xdc] sm:$0xf]
      %v544 = vunpack.c.l.b16 %v516
      %v545 = vunpack.c.l.b16 %v517
      %v546 = vunpack.c.l.b16 %v518
      %v547 = vunpack.c.l.b16 %v519
      %v548 = vunpack.c.l.b16 %v520
      %v549 = vunpack.c.l.b16 %v521
      %v550 = vunpack.c.l.b16 %v522
      %v551 = vunpack.c.l.b16 %v523
      %v552 = vunpack.c.l.b16 %v524
      %v553 = vunpack.c.l.b16 %v525
      %v554 = vunpack.c.l.b16 %v526
      %v555 = vunpack.c.l.b16 %v527
      %v556 = vunpack.c.l.b16 %v528
      %v557 = vunpack.c.l.b16 %v529
      %v558 = vpack.c.b16 %v545, %v544
      %v559 = vpack.c.b16 %v547, %v546
      %v560 = vpack.c.b16 %v549, %v548
      %v561 = vpack.c.b16 %v551, %v550
      %v562 = vpack.c.b16 %v553, %v552
      %v563 = vpack.c.b16 %v555, %v554
      %v564 = vpack.c.b16 %v557, %v556
      %572 = vst [vmem:[#allocation2 + $0x20] sm:$0xff] %v558
      %573 = vst [vmem:[#allocation2 + $0x68] sm:$0xff] %v559
      %574 = vst [vmem:[#allocation2 + $0xb0] sm:$0xff] %v560
      %575 = vst [vmem:[#allocation2 + $0xf8] sm:$0xff] %v561
      %576 = vst [vmem:[#allocation2 + $0x140] sm:$0xff] %v562
      %577 = vst [vmem:[#allocation2 + $0x188] sm:$0xff] %v563
      %578 = vst [vmem:[#allocation2 + $0x1d0] sm:$0xff] %v564
      %v579 = vld [vmem:[%s192 + $0x8] sm:$0xf]
      %v580 = vld [vmem:[%s192 + $0x18] sm:$0xf]
      %v581 = vld [vmem:[%s192 + $0x28] sm:$0xf]
      %v582 = vld [vmem:[%s192 + $0x38] sm:$0xf]
      %v583 = vld [vmem:[%s192 + $0x48] sm:$0xf]
      %v584 = vld [vmem:[%s192 + $0x58] sm:$0xf]
      %v585 = vld [vmem:[%s192 + $0x68] sm:$0xf]
      %v586 = vld [vmem:[%s192 + $0x78] sm:$0xf]
      %v587 = vld [vmem:[%s192 + $0x88] sm:$0xf]
      %v588 = vld [vmem:[%s192 + $0x98] sm:$0xf]
      %v589 = vld [vmem:[%s192 + $0xa8] sm:$0xf]
      %v590 = vld [vmem:[%s192 + $0xb8] sm:$0xf]
      %v591 = vld [vmem:[%s192 + $0xc8] sm:$0xf]
      %v592 = vld [vmem:[%s192 + $0xd8] sm:$0xf]
      %v593 = vld [vmem:[%s192 + $0xe8] sm:$0x1]
      %v609 = vunpack.c.l.b16 %v579
      %v610 = vunpack.c.l.b16 %v580
      %v611 = vunpack.c.l.b16 %v581
      %v612 = vunpack.c.l.b16 %v582
      %v613 = vunpack.c.l.b16 %v583
      %v614 = vunpack.c.l.b16 %v584
      %v615 = vunpack.c.l.b16 %v585
      %v616 = vunpack.c.l.b16 %v586
      %v617 = vunpack.c.l.b16 %v587
      %v618 = vunpack.c.l.b16 %v588
      %v619 = vunpack.c.l.b16 %v589
      %v620 = vunpack.c.l.b16 %v590
      %v621 = vunpack.c.l.b16 %v591
      %v622 = vunpack.c.l.b16 %v592
      %v623 = vunpack.c.l.b16 %v593
      %v624 = vpack.c.b16 %v610, %v609
      %v625 = vpack.c.b16 %v612, %v611
      %v626 = vpack.c.b16 %v614, %v613
      %v627 = vpack.c.b16 %v616, %v615
      %v628 = vpack.c.b16 %v618, %v617
      %v629 = vpack.c.b16 %v620, %v619
      %v630 = vpack.c.b16 %v622, %v621
      %v631 = vpack.c.b16 %v623, %v623
      %v633 = vshrl.u32 %v624, 16
      %v635 = vshll.u32 %v624, 16
      %v637 = vrot.slane %v635, 1
      %v638 = vor.u32 %v633, %v637
      %v640 = vshll.u32 %v625, 16
      %v642 = vrot.slane %v640, 1
      %v643 = vsel %vm378, %v638, %v642
      %v644 = vshrl.u32 %v625, 16
      %v646 = vor.u32 %v644, %v642
      %v648 = vshll.u32 %v626, 16
      %v650 = vrot.slane %v648, 1
      %v651 = vsel %vm378, %v646, %v650
      %v652 = vshrl.u32 %v626, 16
      %v654 = vor.u32 %v652, %v650
      %v656 = vshll.u32 %v627, 16
      %v658 = vrot.slane %v656, 1
      %v659 = vsel %vm378, %v654, %v658
      %v660 = vshrl.u32 %v627, 16
      %v662 = vor.u32 %v660, %v658
      %v664 = vshll.u32 %v628, 16
      %v666 = vrot.slane %v664, 1
      %v667 = vsel %vm378, %v662, %v666
      %v668 = vshrl.u32 %v628, 16
      %v670 = vor.u32 %v668, %v666
      %v672 = vshll.u32 %v629, 16
      %v674 = vrot.slane %v672, 1
      %v675 = vsel %vm378, %v670, %v674
      %v676 = vshrl.u32 %v629, 16
      %v678 = vor.u32 %v676, %v674
      %v680 = vshll.u32 %v630, 16
      %v682 = vrot.slane %v680, 1
      %v683 = vsel %vm378, %v678, %v682
      %v684 = vshrl.u32 %v630, 16
      %v686 = vor.u32 %v684, %v682
      %v688 = vshll.u32 %v631, 16
      %v690 = vrot.slane %v688, 1
      %v691 = vsel %vm378, %v686, %v690
      %699 = vst [vmem:[#allocation2 + $0x28] sm:$0xff] %v643
      %700 = vst [vmem:[#allocation2 + $0x70] sm:$0xff] %v651
      %701 = vst [vmem:[#allocation2 + $0xb8] sm:$0xff] %v659
      %702 = vst [vmem:[#allocation2 + $0x100] sm:$0xff] %v667
      %703 = vst [vmem:[#allocation2 + $0x148] sm:$0xff] %v675
      %704 = vst [vmem:[#allocation2 + $0x190] sm:$0xff] %v683
      %705 = vst [vmem:[#allocation2 + $0x1d8] sm:$0xff] %v691
      %v706 = vld [vmem:[%s192 + $0x10] sm:$0xe]
      %v707 = vld [vmem:[%s192 + $0x20] sm:$0xf]
      %v708 = vld [vmem:[%s192 + $0x30] sm:$0xf]
      %v709 = vld [vmem:[%s192 + $0x40] sm:$0xf]
      %v710 = vld [vmem:[%s192 + $0x50] sm:$0xf]
      %v711 = vld [vmem:[%s192 + $0x60] sm:$0xf]
      %v712 = vld [vmem:[%s192 + $0x70] sm:$0xf]
      %v713 = vld [vmem:[%s192 + $0x80] sm:$0xf]
      %v714 = vld [vmem:[%s192 + $0x90] sm:$0xf]
      %v715 = vld [vmem:[%s192 + $0xa0] sm:$0xf]
      %v716 = vld [vmem:[%s192 + $0xb0] sm:$0xf]
      %v717 = vld [vmem:[%s192 + $0xc0] sm:$0xf]
      %v718 = vld [vmem:[%s192 + $0xd0] sm:$0xf]
      %v719 = vld [vmem:[%s192 + $0xe0] sm:$0xf]
      %v720 = vld [vmem:[%s192 + $0xf0] sm:$0x1]
      %v736 = vunpack.c.l.b16 %v706
      %v737 = vunpack.c.l.b16 %v707
      %v738 = vunpack.c.l.b16 %v708
      %v739 = vunpack.c.l.b16 %v709
      %v740 = vunpack.c.l.b16 %v710
      %v741 = vunpack.c.l.b16 %v711
      %v742 = vunpack.c.l.b16 %v712
      %v743 = vunpack.c.l.b16 %v713
      %v744 = vunpack.c.l.b16 %v714
      %v745 = vunpack.c.l.b16 %v715
      %v746 = vunpack.c.l.b16 %v716
      %v747 = vunpack.c.l.b16 %v717
      %v748 = vunpack.c.l.b16 %v718
      %v749 = vunpack.c.l.b16 %v719
      %v750 = vunpack.c.l.b16 %v720
      %v751 = vpack.c.b16 %v737, %v736
      %v752 = vpack.c.b16 %v739, %v738
      %v753 = vpack.c.b16 %v741, %v740
      %v754 = vpack.c.b16 %v743, %v742
      %v755 = vpack.c.b16 %v745, %v744
      %v756 = vpack.c.b16 %v747, %v746
      %v757 = vpack.c.b16 %v749, %v748
      %v758 = vpack.c.b16 %v750, %v750
      %vm759 = vcmask 1046528
      %v760 = vrot.slane %v751, 1
      %v761 = vrot.slane %v752, 1
      %v762 = vsel %vm759, %v760, %v761
      %v763 = vrot.slane %v753, 1
      %v764 = vsel %vm759, %v761, %v763
      %v765 = vrot.slane %v754, 1
      %v766 = vsel %vm759, %v763, %v765
      %v767 = vrot.slane %v755, 1
      %v768 = vsel %vm759, %v765, %v767
      %v769 = vrot.slane %v756, 1
      %v770 = vsel %vm759, %v767, %v769
      %v771 = vrot.slane %v757, 1
      %v772 = vsel %vm759, %v769, %v771
      %v773 = vrot.slane %v758, 1
      %v774 = vsel %vm759, %v771, %v773
      %782 = vst [vmem:[#allocation2 + $0x30] sm:$0xff] %v762
      %783 = vst [vmem:[#allocation2 + $0x78] sm:$0xff] %v764
      %784 = vst [vmem:[#allocation2 + $0xc0] sm:$0xff] %v766
      %785 = vst [vmem:[#allocation2 + $0x108] sm:$0xff] %v768
      %786 = vst [vmem:[#allocation2 + $0x150] sm:$0xff] %v770
      %787 = vst [vmem:[#allocation2 + $0x198] sm:$0xff] %v772
      %788 = vst [vmem:[#allocation2 + $0x1e0] sm:$0xff] %v774
      %v789 = vld [vmem:[%s192 + $0x14] sm:$0xe]
      %v790 = vld [vmem:[%s192 + $0x24] sm:$0xf]
      %v791 = vld [vmem:[%s192 + $0x34] sm:$0xf]
      %v792 = vld [vmem:[%s192 + $0x44] sm:$0xf]
      %v793 = vld [vmem:[%s192 + $0x54] sm:$0xf]
      %v794 = vld [vmem:[%s192 + $0x64] sm:$0xf]
      %v795 = vld [vmem:[%s192 + $0x74] sm:$0xf]
      %v796 = vld [vmem:[%s192 + $0x84] sm:$0xf]
      %v797 = vld [vmem:[%s192 + $0x94] sm:$0xf]
      %v798 = vld [vmem:[%s192 + $0xa4] sm:$0xf]
      %v799 = vld [vmem:[%s192 + $0xb4] sm:$0xf]
      %v800 = vld [vmem:[%s192 + $0xc4] sm:$0xf]
      %v801 = vld [vmem:[%s192 + $0xd4] sm:$0xf]
      %v802 = vld [vmem:[%s192 + $0xe4] sm:$0xf]
      %v803 = vld [vmem:[%s192 + $0xf4] sm:$0x1]
      %v819 = vunpack.c.l.b16 %v789
      %v820 = vunpack.c.l.b16 %v790
      %v821 = vunpack.c.l.b16 %v791
      %v822 = vunpack.c.l.b16 %v792
      %v823 = vunpack.c.l.b16 %v793
      %v824 = vunpack.c.l.b16 %v794
      %v825 = vunpack.c.l.b16 %v795
      %v826 = vunpack.c.l.b16 %v796
      %v827 = vunpack.c.l.b16 %v797
      %v828 = vunpack.c.l.b16 %v798
      %v829 = vunpack.c.l.b16 %v799
      %v830 = vunpack.c.l.b16 %v800
      %v831 = vunpack.c.l.b16 %v801
      %v832 = vunpack.c.l.b16 %v802
      %v833 = vunpack.c.l.b16 %v803
      %v834 = vpack.c.b16 %v820, %v819
      %v835 = vpack.c.b16 %v822, %v821
      %v836 = vpack.c.b16 %v824, %v823
      %v837 = vpack.c.b16 %v826, %v825
      %v838 = vpack.c.b16 %v828, %v827
      %v839 = vpack.c.b16 %v830, %v829
      %v840 = vpack.c.b16 %v832, %v831
      %v841 = vpack.c.b16 %v833, %v833
      %v842 = vrot.slane %v834, 1
      %v843 = vrot.slane %v835, 1
      %v844 = vsel %vm759, %v842, %v843
      %v845 = vrot.slane %v836, 1
      %v846 = vsel %vm759, %v843, %v845
      %v847 = vrot.slane %v837, 1
      %v848 = vsel %vm759, %v845, %v847
      %v849 = vrot.slane %v838, 1
      %v850 = vsel %vm759, %v847, %v849
      %v851 = vrot.slane %v839, 1
      %v852 = vsel %vm759, %v849, %v851
      %v853 = vrot.slane %v840, 1
      %v854 = vsel %vm759, %v851, %v853
      %v855 = vrot.slane %v841, 1
      %v856 = vsel %vm759, %v853, %v855
      %864 = vst [vmem:[#allocation2 + $0x38] sm:$0xff] %v844
      %865 = vst [vmem:[#allocation2 + $0x80] sm:$0xff] %v846
      %866 = vst [vmem:[#allocation2 + $0xc8] sm:$0xff] %v848
      %867 = vst [vmem:[#allocation2 + $0x110] sm:$0xff] %v850
      %868 = vst [vmem:[#allocation2 + $0x158] sm:$0xff] %v852
      %869 = vst [vmem:[#allocation2 + $0x1a0] sm:$0xff] %v854
      %870 = vst [vmem:[#allocation2 + $0x1e8] sm:$0xff] %v856
      %v871 = vld [vmem:[%s192 + $0x10] sm:$0xe]
      %v872 = vld [vmem:[%s192 + $0x20] sm:$0xf]
      %v873 = vld [vmem:[%s192 + $0x30] sm:$0xf]
      %v874 = vld [vmem:[%s192 + $0x40] sm:$0xf]
      %v875 = vld [vmem:[%s192 + $0x50] sm:$0xf]
      %v876 = vld [vmem:[%s192 + $0x60] sm:$0xf]
      %v877 = vld [vmem:[%s192 + $0x70] sm:$0xf]
      %v878 = vld [vmem:[%s192 + $0x80] sm:$0xf]
      %v879 = vld [vmem:[%s192 + $0x90] sm:$0xf]
      %v880 = vld [vmem:[%s192 + $0xa0] sm:$0xf]
      %v881 = vld [vmem:[%s192 + $0xb0] sm:$0xf]
      %v882 = vld [vmem:[%s192 + $0xc0] sm:$0xf]
      %v883 = vld [vmem:[%s192 + $0xd0] sm:$0xf]
      %v884 = vld [vmem:[%s192 + $0xe0] sm:$0xf]
      %v885 = vld [vmem:[%s192 + $0xf0] sm:$0x3]
      %v901 = vunpack.c.l.b16 %v871
      %v902 = vunpack.c.l.b16 %v872
      %v903 = vunpack.c.l.b16 %v873
      %v904 = vunpack.c.l.b16 %v874
      %v905 = vunpack.c.l.b16 %v875
      %v906 = vunpack.c.l.b16 %v876
      %v907 = vunpack.c.l.b16 %v877
      %v908 = vunpack.c.l.b16 %v878
      %v909 = vunpack.c.l.b16 %v879
      %v910 = vunpack.c.l.b16 %v880
      %v911 = vunpack.c.l.b16 %v881
      %v912 = vunpack.c.l.b16 %v882
      %v913 = vunpack.c.l.b16 %v883
      %v914 = vunpack.c.l.b16 %v884
      %v915 = vunpack.c.l.b16 %v885
      %v916 = vpack.c.b16 %v902, %v901
      %v917 = vpack.c.b16 %v904, %v903
      %v918 = vpack.c.b16 %v906, %v905
      %v919 = vpack.c.b16 %v908, %v907
      %v920 = vpack.c.b16 %v910, %v909
      %v921 = vpack.c.b16 %v912, %v911
      %v922 = vpack.c.b16 %v914, %v913
      %v923 = vpack.c.b16 %v915, %v915
      %vm924 = vsmask.f32 6400
      %v926 = vshrl.u32 %v916, 16
      %v928 = vrot.slane %v926, 1
      %v929 = vshll.u32 %v916, 16
      %v931 = vrot.slane %v929, 2
      %v932 = vor.u32 %v928, %v931
      %v934 = vshrl.u32 %v917, 16
      %v936 = vrot.slane %v934, 1
      %v937 = vshll.u32 %v917, 16
      %v939 = vrot.slane %v937, 2
      %v940 = vor.u32 %v936, %v939
      %v941 = vsel %vm924, %v932, %v940
      %v943 = vshrl.u32 %v918, 16
      %v945 = vrot.slane %v943, 1
      %v946 = vshll.u32 %v918, 16
      %v948 = vrot.slane %v946, 2
      %v949 = vor.u32 %v945, %v948
      %v950 = vsel %vm924, %v940, %v949
      %v952 = vshrl.u32 %v919, 16
      %v954 = vrot.slane %v952, 1
      %v955 = vshll.u32 %v919, 16
      %v957 = vrot.slane %v955, 2
      %v958 = vor.u32 %v954, %v957
      %v959 = vsel %vm924, %v949, %v958
      %v961 = vshrl.u32 %v920, 16
      %v963 = vrot.slane %v961, 1
      %v964 = vshll.u32 %v920, 16
      %v966 = vrot.slane %v964, 2
      %v967 = vor.u32 %v963, %v966
      %v968 = vsel %vm924, %v958, %v967
      %v970 = vshrl.u32 %v921, 16
      %v972 = vrot.slane %v970, 1
      %v973 = vshll.u32 %v921, 16
      %v975 = vrot.slane %v973, 2
      %v976 = vor.u32 %v972, %v975
      %v977 = vsel %vm924, %v967, %v976
      %v979 = vshrl.u32 %v922, 16
      %v981 = vrot.slane %v979, 1
      %v982 = vshll.u32 %v922, 16
      %v984 = vrot.slane %v982, 2
      %v985 = vor.u32 %v981, %v984
      %v986 = vsel %vm924, %v976, %v985
      %v988 = vshrl.u32 %v923, 16
      %v990 = vrot.slane %v988, 1
      %v991 = vshll.u32 %v923, 16
      %v993 = vrot.slane %v991, 2
      %v994 = vor.u32 %v990, %v993
      %v995 = vsel %vm924, %v985, %v994
      %1003 = vst [vmem:[#allocation2 + $0x40] sm:$0xff] %v941
      %1004 = vst [vmem:[#allocation2 + $0x88] sm:$0xff] %v950
      %1005 = vst [vmem:[#allocation2 + $0xd0] sm:$0xff] %v959
      %1006 = vst [vmem:[#allocation2 + $0x118] sm:$0xff] %v968
      %1007 = vst [vmem:[#allocation2 + $0x160] sm:$0xff] %v977
      %1008 = vst [vmem:[#allocation2 + $0x1a8] sm:$0xff] %v986
      %1009 = vst [vmem:[#allocation2 + $0x1f0] sm:$0xff] %v995
      %v1010 = vld [vmem:[#allocation2] sm:$0xff]
      %v1011 = vld [vmem:[#allocation2 + $0x8] sm:$0xff]
      %v1012 = vld [vmem:[#allocation2 + $0x10] sm:$0xff]
      %v1013 = vld [vmem:[#allocation2 + $0x18] sm:$0xff]
      %v1014 = vld [vmem:[#allocation2 + $0x20] sm:$0xff]
      %v1015 = vld [vmem:[#allocation2 + $0x28] sm:$0xff]
      %v1016 = vld [vmem:[#allocation2 + $0x30] sm:$0xff]
      %v1017 = vld [vmem:[#allocation2 + $0x38] sm:$0xff]
      %v1018 = vld [vmem:[#allocation2 + $0x40] sm:$0xff]
      %v1019 = vld [vmem:[#allocation2 + $0x48] sm:$0xff]
      %v1020 = vld [vmem:[#allocation2 + $0x50] sm:$0xff]
      %v1021 = vld [vmem:[#allocation2 + $0x58] sm:$0xff]
      %v1022 = vld [vmem:[#allocation2 + $0x60] sm:$0xff]
      %v1023 = vld [vmem:[#allocation2 + $0x68] sm:$0xff]
      %v1024 = vld [vmem:[#allocation2 + $0x70] sm:$0xff]
      %v1025 = vld [vmem:[#allocation2 + $0x78] sm:$0xff]
      %v1026 = vld [vmem:[#allocation2 + $0x80] sm:$0xff]
      %v1027 = vld [vmem:[#allocation2 + $0x88] sm:$0xff]
      %v1028 = vld [vmem:[#allocation2 + $0x90] sm:$0xff]
      %v1029 = vld [vmem:[#allocation2 + $0x98] sm:$0xff]
      %v1030 = vld [vmem:[#allocation2 + $0xa0] sm:$0xff]
      %v1031 = vld [vmem:[#allocation2 + $0xa8] sm:$0xff]
      %v1032 = vld [vmem:[#allocation2 + $0xb0] sm:$0xff]
      %v1033 = vld [vmem:[#allocation2 + $0xb8] sm:$0xff]
      %v1034 = vld [vmem:[#allocation2 + $0xc0] sm:$0xff]
      %v1035 = vld [vmem:[#allocation2 + $0xc8] sm:$0xff]
      %v1036 = vld [vmem:[#allocation2 + $0xd0] sm:$0xff]
      %v1037 = vld [vmem:[#allocation2 + $0xd8] sm:$0xff]
      %v1038 = vld [vmem:[#allocation2 + $0xe0] sm:$0xff]
      %v1039 = vld [vmem:[#allocation2 + $0xe8] sm:$0xff]
      %v1040 = vld [vmem:[#allocation2 + $0xf0] sm:$0xff]
      %v1041 = vld [vmem:[#allocation2 + $0xf8] sm:$0xff]
      %v1042 = vld [vmem:[#allocation2 + $0x100] sm:$0xff]
      %v1043 = vld [vmem:[#allocation2 + $0x108] sm:$0xff]
      %v1044 = vld [vmem:[#allocation2 + $0x110] sm:$0xff]
      %v1045 = vld [vmem:[#allocation2 + $0x118] sm:$0xff]
      %v1046 = vld [vmem:[#allocation2 + $0x120] sm:$0xff]
      %v1047 = vld [vmem:[#allocation2 + $0x128] sm:$0xff]
      %v1048 = vld [vmem:[#allocation2 + $0x130] sm:$0xff]
      %v1049 = vld [vmem:[#allocation2 + $0x138] sm:$0xff]
      %v1050 = vld [vmem:[#allocation2 + $0x140] sm:$0xff]
      %v1051 = vld [vmem:[#allocation2 + $0x148] sm:$0xff]
      %v1052 = vld [vmem:[#allocation2 + $0x150] sm:$0xff]
      %v1053 = vld [vmem:[#allocation2 + $0x158] sm:$0xff]
      %v1054 = vld [vmem:[#allocation2 + $0x160] sm:$0xff]
      %v1055 = vld [vmem:[#allocation2 + $0x168] sm:$0xff]
      %v1056 = vld [vmem:[#allocation2 + $0x170] sm:$0xff]
      %v1057 = vld [vmem:[#allocation2 + $0x178] sm:$0xff]
      %v1058 = vld [vmem:[#allocation2 + $0x180] sm:$0xff]
      %v1059 = vld [vmem:[#allocation2 + $0x188] sm:$0xff]
      %v1060 = vld [vmem:[#allocation2 + $0x190] sm:$0xff]
      %v1061 = vld [vmem:[#allocation2 + $0x198] sm:$0xff]
      %v1062 = vld [vmem:[#allocation2 + $0x1a0] sm:$0xff]
      %v1063 = vld [vmem:[#allocation2 + $0x1a8] sm:$0xff]
      %v1064 = vld [vmem:[#allocation2 + $0x1b0] sm:$0xff]
      %v1065 = vld [vmem:[#allocation2 + $0x1b8] sm:$0xff]
      %v1066 = vld [vmem:[#allocation2 + $0x1c0] sm:$0xff]
      %v1067 = vld [vmem:[#allocation2 + $0x1c8] sm:$0xff]
      %v1068 = vld [vmem:[#allocation2 + $0x1d0] sm:$0xff]
      %v1069 = vld [vmem:[#allocation2 + $0x1d8] sm:$0xff]
      %v1070 = vld [vmem:[#allocation2 + $0x1e0] sm:$0xff]
      %v1071 = vld [vmem:[#allocation2 + $0x1e8] sm:$0xff]
      %v1072 = vld [vmem:[#allocation2 + $0x1f0] sm:$0xff]
      %v1073 = vld [vmem:[%s1] sm:$0xf]
      %v1074 = vld [vmem:[%s1 + $0x4] sm:$0xf]
      %v1075 = vld [vmem:[%s1 + $0x8] sm:$0xf]
      %v1076 = vld [vmem:[%s1 + $0xc] sm:$0xf]
      %v1077 = vld [vmem:[%s1 + $0x10] sm:$0xf]
      %v1078 = vld [vmem:[%s1 + $0x14] sm:$0xf]
      %v1079 = vld [vmem:[%s1 + $0x18] sm:$0xf]
      %v1080 = vld [vmem:[%s1 + $0x1c] sm:$0xf]
      %v1081 = vld [vmem:[%s1 + $0x20] sm:$0xf]
      %v1082 = vld [vmem:[%s1 + $0x24] sm:$0xf]
      %v1083 = vld [vmem:[%s1 + $0x28] sm:$0xf]
      %v1084 = vld [vmem:[%s1 + $0x2c] sm:$0xf]
      %v1085 = vld [vmem:[%s1 + $0x30] sm:$0xf]
      %v1086 = vld [vmem:[%s1 + $0x34] sm:$0xf]
      %v1087 = vld [vmem:[%s1 + $0x38] sm:$0xf]
      %v1088 = vld [vmem:[%s1 + $0x3c] sm:$0xf]
      %v1089 = vld [vmem:[%s1 + $0x40] sm:$0xf]
      %v1090 = vld [vmem:[%s1 + $0x44] sm:$0xf]
      %v1091 = vld [vmem:[%s1 + $0x48] sm:$0xf]
      %v1092 = vld [vmem:[%s1 + $0x4c] sm:$0xf]
      %v1093 = vld [vmem:[%s1 + $0x50] sm:$0xf]
      %v1094 = vld [vmem:[%s1 + $0x54] sm:$0xf]
      %v1095 = vld [vmem:[%s1 + $0x58] sm:$0xf]
      %v1096 = vld [vmem:[%s1 + $0x5c] sm:$0xf]
      %v1097 = vld [vmem:[%s1 + $0x60] sm:$0xf]
      %v1098 = vld [vmem:[%s1 + $0x64] sm:$0xf]
      %v1099 = vld [vmem:[%s1 + $0x68] sm:$0xf]
      %v1100 = vld [vmem:[%s1 + $0x6c] sm:$0xf]
      %v1101 = vld [vmem:[%s1 + $0x70] sm:$0xf]
      %v1102 = vld [vmem:[%s1 + $0x74] sm:$0xf]
      %v1103 = vld [vmem:[%s1 + $0x78] sm:$0xf]
      %v1104 = vld [vmem:[%s1 + $0x7c] sm:$0xf]
      %v1105 = vld [vmem:[%s1 + $0x80] sm:$0xf]
      %v1106 = vld [vmem:[%s1 + $0x84] sm:$0xf]
      %v1107 = vld [vmem:[%s1 + $0x88] sm:$0xf]
      %v1108 = vld [vmem:[%s1 + $0x8c] sm:$0xf]
      %v1109 = vld [vmem:[%s1 + $0x90] sm:$0xf]
      %v1110 = vld [vmem:[%s1 + $0x94] sm:$0xf]
      %v1111 = vld [vmem:[%s1 + $0x98] sm:$0xf]
      %v1112 = vld [vmem:[%s1 + $0x9c] sm:$0xf]
      %v1113 = vld [vmem:[%s1 + $0xa0] sm:$0xf]
      %v1114 = vld [vmem:[%s1 + $0xa4] sm:$0xf]
      %v1115 = vld [vmem:[%s1 + $0xa8] sm:$0xf]
      %v1116 = vld [vmem:[%s1 + $0xac] sm:$0xf]
      %v1117 = vld [vmem:[%s1 + $0xb0] sm:$0xf]
      %v1118 = vld [vmem:[%s1 + $0xb4] sm:$0xf]
      %v1119 = vld [vmem:[%s1 + $0xb8] sm:$0xf]
      %v1120 = vld [vmem:[%s1 + $0xbc] sm:$0xf]
      %v1121 = vld [vmem:[%s1 + $0xc0] sm:$0xf]
      %v1122 = vld [vmem:[%s1 + $0xc4] sm:$0xf]
      %v1123 = vld [vmem:[%s1 + $0xc8] sm:$0xf]
      %v1124 = vld [vmem:[%s1 + $0xcc] sm:$0xf]
      %v1125 = vld [vmem:[%s1 + $0xd0] sm:$0xf]
      %v1126 = vld [vmem:[%s1 + $0xd4] sm:$0xf]
      %v1127 = vld [vmem:[%s1 + $0xd8] sm:$0xf]
      %v1128 = vld [vmem:[%s1 + $0xdc] sm:$0xf]
      %v1129 = vld [vmem:[%s1 + $0xe0] sm:$0xf]
      %v1130 = vld [vmem:[%s1 + $0xe4] sm:$0xf]
      %v1131 = vld [vmem:[%s1 + $0xe8] sm:$0xf]
      %v1132 = vld [vmem:[%s1 + $0xec] sm:$0xf]
      %v1133 = vld [vmem:[%s1 + $0xf0] sm:$0xf]
      %v1134 = vld [vmem:[%s1 + $0xf4] sm:$0xf]
      %v1135 = vld [vmem:[%s1 + $0xf8] sm:$0xf]
      %v1136 = vld [vmem:[%s1 + $0xfc] sm:$0xf]
      %v1137 = vld [vmem:[%s1 + $0x100] sm:$0xf]
      %v1138 = vld [vmem:[%s1 + $0x104] sm:$0xf]
      %v1139 = vld [vmem:[%s1 + $0x108] sm:$0xf]
      %v1140 = vld [vmem:[%s1 + $0x10c] sm:$0xf]
      %v1141 = vld [vmem:[%s1 + $0x110] sm:$0xf]
      %v1142 = vld [vmem:[%s1 + $0x114] sm:$0xf]
      %v1143 = vld [vmem:[%s1 + $0x118] sm:$0xf]
      %v1144 = vld [vmem:[%s1 + $0x11c] sm:$0xf]
      %v1145 = vld [vmem:[%s1 + $0x120] sm:$0xf]
      %v1146 = vld [vmem:[%s1 + $0x124] sm:$0xf]
      %v1147 = vld [vmem:[%s1 + $0x128] sm:$0xf]
      %v1148 = vld [vmem:[%s1 + $0x12c] sm:$0xf]
      %v1149 = vld [vmem:[%s1 + $0x130] sm:$0xf]
      %v1150 = vld [vmem:[%s1 + $0x134] sm:$0xf]
      %v1151 = vld [vmem:[%s1 + $0x138] sm:$0xf]
      %v1152 = vld [vmem:[%s1 + $0x13c] sm:$0xf]
      %v1153 = vld [vmem:[%s1 + $0x140] sm:$0xf]
      %v1154 = vld [vmem:[%s1 + $0x144] sm:$0xf]
      %v1155 = vld [vmem:[%s1 + $0x148] sm:$0xf]
      %v1156 = vld [vmem:[%s1 + $0x14c] sm:$0xf]
      %v1157 = vld [vmem:[%s1 + $0x150] sm:$0xf]
      %v1158 = vld [vmem:[%s1 + $0x154] sm:$0xf]
      %v1159 = vld [vmem:[%s1 + $0x158] sm:$0xf]
      %v1160 = vld [vmem:[%s1 + $0x15c] sm:$0xf]
      %v1161 = vld [vmem:[%s1 + $0x160] sm:$0xf]
      %v1162 = vld [vmem:[%s1 + $0x164] sm:$0xf]
      %v1163 = vld [vmem:[%s1 + $0x168] sm:$0xf]
      %v1164 = vld [vmem:[%s1 + $0x16c] sm:$0xf]
      %v1165 = vld [vmem:[%s1 + $0x170] sm:$0xf]
      %v1166 = vld [vmem:[%s1 + $0x174] sm:$0xf]
      %v1167 = vld [vmem:[%s1 + $0x178] sm:$0xf]
      %v1168 = vld [vmem:[%s1 + $0x17c] sm:$0xf]
      %v1169 = vld [vmem:[%s1 + $0x180] sm:$0xf]
      %v1170 = vld [vmem:[%s1 + $0x184] sm:$0xf]
      %v1171 = vld [vmem:[%s1 + $0x188] sm:$0xf]
      %v1172 = vld [vmem:[%s1 + $0x18c] sm:$0xf]
      %v1173 = vld [vmem:[%s1 + $0x190] sm:$0xf]
      %v1174 = vld [vmem:[%s1 + $0x194] sm:$0xf]
      %v1175 = vld [vmem:[%s1 + $0x198] sm:$0xf]
      %v1176 = vld [vmem:[%s1 + $0x19c] sm:$0xf]
      %v1177 = vld [vmem:[%s1 + $0x1a0] sm:$0xf]
      %v1178 = vld [vmem:[%s1 + $0x1a4] sm:$0xf]
      %v1179 = vld [vmem:[%s1 + $0x1a8] sm:$0xf]
      %v1180 = vld [vmem:[%s1 + $0x1ac] sm:$0xf]
      %v1181 = vld [vmem:[%s1 + $0x1b0] sm:$0xf]
      %v1182 = vld [vmem:[%s1 + $0x1b4] sm:$0xf]
      %v1183 = vld [vmem:[%s1 + $0x1b8] sm:$0xf]
      %v1184 = vld [vmem:[%s1 + $0x1bc] sm:$0xf]
      %v1185 = vld [vmem:[%s1 + $0x1c0] sm:$0xf]
      %v1186 = vld [vmem:[%s1 + $0x1c4] sm:$0xf]
      %v1187 = vld [vmem:[%s1 + $0x1c8] sm:$0xf]
      %v1188 = vld [vmem:[%s1 + $0x1cc] sm:$0xf]
      %v1189 = vld [vmem:[%s1 + $0x1d0] sm:$0xf]
      %v1190 = vld [vmem:[%s1 + $0x1d4] sm:$0xf]
      %v1191 = vld [vmem:[%s1 + $0x1d8] sm:$0xf]
      %v1192 = vld [vmem:[%s1 + $0x1dc] sm:$0xf]
      %v1193 = vld [vmem:[%s1 + $0x1e0] sm:$0xf]
      %v1194 = vld [vmem:[%s1 + $0x1e4] sm:$0xf]
      %v1195 = vld [vmem:[%s1 + $0x1e8] sm:$0xf]
      %v1196 = vld [vmem:[%s1 + $0x1ec] sm:$0xf]
      %v1197 = vld [vmem:[%s1 + $0x1f0] sm:$0xf]
      %v1198 = vld [vmem:[%s1 + $0x1f4] sm:$0xf]
      %v1199 = vld [vmem:[%s1 + $0x1f8] sm:$0xf]
      %v1200 = vld [vmem:[%s1 + $0x1fc] sm:$0xf]
      %v1201 = vld [vmem:[%s1 + $0x200] sm:$0xf]
      %v1202 = vld [vmem:[%s1 + $0x204] sm:$0xf]
      %v1203 = vld [vmem:[%s1 + $0x208] sm:$0xf]
      %v1204 = vld [vmem:[%s1 + $0x20c] sm:$0xf]
      %v1205 = vld [vmem:[%s1 + $0x210] sm:$0xf]
      %v1206 = vld [vmem:[%s1 + $0x214] sm:$0xf]
      %v1207 = vld [vmem:[%s1 + $0x218] sm:$0xf]
      %v1208 = vld [vmem:[%s1 + $0x21c] sm:$0xf]
      %v1209 = vld [vmem:[%s1 + $0x220] sm:$0xf]
      %v1210 = vld [vmem:[%s1 + $0x224] sm:$0xf]
      %v1211 = vld [vmem:[%s1 + $0x228] sm:$0xf]
      %v1212 = vld [vmem:[%s1 + $0x22c] sm:$0xf]
      %v1213 = vld [vmem:[%s1 + $0x230] sm:$0xf]
      %v1214 = vld [vmem:[%s1 + $0x234] sm:$0xf]
      %v1215 = vld [vmem:[%s1 + $0x238] sm:$0xf]
      %v1216 = vld [vmem:[%s1 + $0x23c] sm:$0xf]
      %v1217 = vld [vmem:[%s2] sm:$0x1]
      %v1219 = vlaneseq
      %v1220 = vshrl.u32 %v1219, 7
      %v1221 = vsub.s32 0, %v1220
      %v1222 = vrot.slane %v1217, %v1221
      %v1368 = vunpack.c.l.b16 %v1073
      %v1369 = vunpack.c.l.b16 %v1074
      %v1370 = vunpack.c.l.b16 %v1075
      %v1371 = vunpack.c.l.b16 %v1076
      %v1372 = vunpack.c.l.b16 %v1077
      %v1373 = vunpack.c.l.b16 %v1078
      %v1374 = vunpack.c.l.b16 %v1079
      %v1375 = vunpack.c.l.b16 %v1080
      %v1376 = vunpack.c.l.b16 %v1081
      %v1377 = vunpack.c.l.b16 %v1082
      %v1378 = vunpack.c.l.b16 %v1083
      %v1379 = vunpack.c.l.b16 %v1084
      %v1380 = vunpack.c.l.b16 %v1085
      %v1381 = vunpack.c.l.b16 %v1086
      %v1382 = vunpack.c.l.b16 %v1087
      %v1383 = vunpack.c.l.b16 %v1088
      %v1384 = vunpack.c.l.b16 %v1089
      %v1385 = vunpack.c.l.b16 %v1090
      %v1386 = vunpack.c.l.b16 %v1091
      %v1387 = vunpack.c.l.b16 %v1092
      %v1388 = vunpack.c.l.b16 %v1093
      %v1389 = vunpack.c.l.b16 %v1094
      %v1390 = vunpack.c.l.b16 %v1095
      %v1391 = vunpack.c.l.b16 %v1096
      %v1392 = vunpack.c.l.b16 %v1097
      %v1393 = vunpack.c.l.b16 %v1098
      %v1394 = vunpack.c.l.b16 %v1099
      %v1395 = vunpack.c.l.b16 %v1100
      %v1396 = vunpack.c.l.b16 %v1101
      %v1397 = vunpack.c.l.b16 %v1102
      %v1398 = vunpack.c.l.b16 %v1103
      %v1399 = vunpack.c.l.b16 %v1104
      %v1400 = vunpack.c.l.b16 %v1105
      %v1401 = vunpack.c.l.b16 %v1106
      %v1402 = vunpack.c.l.b16 %v1107
      %v1403 = vunpack.c.l.b16 %v1108
      %v1404 = vunpack.c.l.b16 %v1109
      %v1405 = vunpack.c.l.b16 %v1110
      %v1406 = vunpack.c.l.b16 %v1111
      %v1407 = vunpack.c.l.b16 %v1112
      %v1408 = vunpack.c.l.b16 %v1113
      %v1409 = vunpack.c.l.b16 %v1114
      %v1410 = vunpack.c.l.b16 %v1115
      %v1411 = vunpack.c.l.b16 %v1116
      %v1412 = vunpack.c.l.b16 %v1117
      %v1413 = vunpack.c.l.b16 %v1118
      %v1414 = vunpack.c.l.b16 %v1119
      %v1415 = vunpack.c.l.b16 %v1120
      %v1416 = vunpack.c.l.b16 %v1121
      %v1417 = vunpack.c.l.b16 %v1122
      %v1418 = vunpack.c.l.b16 %v1123
      %v1419 = vunpack.c.l.b16 %v1124
      %v1420 = vunpack.c.l.b16 %v1125
      %v1421 = vunpack.c.l.b16 %v1126
      %v1422 = vunpack.c.l.b16 %v1127
      %v1423 = vunpack.c.l.b16 %v1128
      %v1424 = vunpack.c.l.b16 %v1129
      %v1425 = vunpack.c.l.b16 %v1130
      %v1426 = vunpack.c.l.b16 %v1131
      %v1427 = vunpack.c.l.b16 %v1132
      %v1428 = vunpack.c.l.b16 %v1133
      %v1429 = vunpack.c.l.b16 %v1134
      %v1430 = vunpack.c.l.b16 %v1135
      %v1431 = vunpack.c.l.b16 %v1136
      %v1432 = vunpack.c.l.b16 %v1137
      %v1433 = vunpack.c.l.b16 %v1138
      %v1434 = vunpack.c.l.b16 %v1139
      %v1435 = vunpack.c.l.b16 %v1140
      %v1436 = vunpack.c.l.b16 %v1141
      %v1437 = vunpack.c.l.b16 %v1142
      %v1438 = vunpack.c.l.b16 %v1143
      %v1439 = vunpack.c.l.b16 %v1144
      %v1440 = vunpack.c.l.b16 %v1145
      %v1441 = vunpack.c.l.b16 %v1146
      %v1442 = vunpack.c.l.b16 %v1147
      %v1443 = vunpack.c.l.b16 %v1148
      %v1444 = vunpack.c.l.b16 %v1149
      %v1445 = vunpack.c.l.b16 %v1150
      %v1446 = vunpack.c.l.b16 %v1151
      %v1447 = vunpack.c.l.b16 %v1152
      %v1448 = vunpack.c.l.b16 %v1153
      %v1449 = vunpack.c.l.b16 %v1154
      %v1450 = vunpack.c.l.b16 %v1155
      %v1451 = vunpack.c.l.b16 %v1156
      %v1452 = vunpack.c.l.b16 %v1157
      %v1453 = vunpack.c.l.b16 %v1158
      %v1454 = vunpack.c.l.b16 %v1159
      %v1455 = vunpack.c.l.b16 %v1160
      %v1456 = vunpack.c.l.b16 %v1161
      %v1457 = vunpack.c.l.b16 %v1162
      %v1458 = vunpack.c.l.b16 %v1163
      %v1459 = vunpack.c.l.b16 %v1164
      %v1460 = vunpack.c.l.b16 %v1165
      %v1461 = vunpack.c.l.b16 %v1166
      %v1462 = vunpack.c.l.b16 %v1167
      %v1463 = vunpack.c.l.b16 %v1168
      %v1464 = vunpack.c.l.b16 %v1169
      %v1465 = vunpack.c.l.b16 %v1170
      %v1466 = vunpack.c.l.b16 %v1171
      %v1467 = vunpack.c.l.b16 %v1172
      %v1468 = vunpack.c.l.b16 %v1173
      %v1469 = vunpack.c.l.b16 %v1174
      %v1470 = vunpack.c.l.b16 %v1175
      %v1471 = vunpack.c.l.b16 %v1176
      %v1472 = vunpack.c.l.b16 %v1177
      %v1473 = vunpack.c.l.b16 %v1178
      %v1474 = vunpack.c.l.b16 %v1179
      %v1475 = vunpack.c.l.b16 %v1180
      %v1476 = vunpack.c.l.b16 %v1181
      %v1477 = vunpack.c.l.b16 %v1182
      %v1478 = vunpack.c.l.b16 %v1183
      %v1479 = vunpack.c.l.b16 %v1184
      %v1480 = vunpack.c.l.b16 %v1185
      %v1481 = vunpack.c.l.b16 %v1186
      %v1482 = vunpack.c.l.b16 %v1187
      %v1483 = vunpack.c.l.b16 %v1188
      %v1484 = vunpack.c.l.b16 %v1189
      %v1485 = vunpack.c.l.b16 %v1190
      %v1486 = vunpack.c.l.b16 %v1191
      %v1487 = vunpack.c.l.b16 %v1192
      %v1488 = vunpack.c.l.b16 %v1193
      %v1489 = vunpack.c.l.b16 %v1194
      %v1490 = vunpack.c.l.b16 %v1195
      %v1491 = vunpack.c.l.b16 %v1196
      %v1492 = vunpack.c.l.b16 %v1197
      %v1493 = vunpack.c.l.b16 %v1198
      %v1494 = vunpack.c.l.b16 %v1199
      %v1495 = vunpack.c.l.b16 %v1200
      %v1496 = vunpack.c.l.b16 %v1201
      %v1497 = vunpack.c.l.b16 %v1202
      %v1498 = vunpack.c.l.b16 %v1203
      %v1499 = vunpack.c.l.b16 %v1204
      %v1500 = vunpack.c.l.b16 %v1205
      %v1501 = vunpack.c.l.b16 %v1206
      %v1502 = vunpack.c.l.b16 %v1207
      %v1503 = vunpack.c.l.b16 %v1208
      %v1504 = vunpack.c.l.b16 %v1209
      %v1505 = vunpack.c.l.b16 %v1210
      %v1506 = vunpack.c.l.b16 %v1211
      %v1507 = vunpack.c.l.b16 %v1212
      %v1508 = vunpack.c.l.b16 %v1213
      %v1509 = vunpack.c.l.b16 %v1214
      %v1510 = vunpack.c.l.b16 %v1215
      %v1511 = vunpack.c.l.b16 %v1216
      %v1512 = vpack.c.b16 %v1369, %v1368
      %v1513 = vpack.c.b16 %v1371, %v1370
      %v1514 = vpack.c.b16 %v1373, %v1372
      %v1515 = vpack.c.b16 %v1375, %v1374
      %v1516 = vpack.c.b16 %v1377, %v1376
      %v1517 = vpack.c.b16 %v1379, %v1378
      %v1518 = vpack.c.b16 %v1381, %v1380
      %v1519 = vpack.c.b16 %v1383, %v1382
      %v1520 = vpack.c.b16 %v1385, %v1384
      %v1521 = vpack.c.b16 %v1387, %v1386
      %v1522 = vpack.c.b16 %v1389, %v1388
      %v1523 = vpack.c.b16 %v1391, %v1390
      %v1524 = vpack.c.b16 %v1393, %v1392
      %v1525 = vpack.c.b16 %v1395, %v1394
      %v1526 = vpack.c.b16 %v1397, %v1396
      %v1527 = vpack.c.b16 %v1399, %v1398
      %v1528 = vpack.c.b16 %v1401, %v1400
      %v1529 = vpack.c.b16 %v1403, %v1402
      %v1530 = vpack.c.b16 %v1405, %v1404
      %v1531 = vpack.c.b16 %v1407, %v1406
      %v1532 = vpack.c.b16 %v1409, %v1408
      %v1533 = vpack.c.b16 %v1411, %v1410
      %v1534 = vpack.c.b16 %v1413, %v1412
      %v1535 = vpack.c.b16 %v1415, %v1414
      %v1536 = vpack.c.b16 %v1417, %v1416
      %v1537 = vpack.c.b16 %v1419, %v1418
      %v1538 = vpack.c.b16 %v1421, %v1420
      %v1539 = vpack.c.b16 %v1423, %v1422
      %v1540 = vpack.c.b16 %v1425, %v1424
      %v1541 = vpack.c.b16 %v1427, %v1426
      %v1542 = vpack.c.b16 %v1429, %v1428
      %v1543 = vpack.c.b16 %v1431, %v1430
      %v1544 = vpack.c.b16 %v1433, %v1432
      %v1545 = vpack.c.b16 %v1435, %v1434
      %v1546 = vpack.c.b16 %v1437, %v1436
      %v1547 = vpack.c.b16 %v1439, %v1438
      %v1548 = vpack.c.b16 %v1441, %v1440
      %v1549 = vpack.c.b16 %v1443, %v1442
      %v1550 = vpack.c.b16 %v1445, %v1444
      %v1551 = vpack.c.b16 %v1447, %v1446
      %v1552 = vpack.c.b16 %v1449, %v1448
      %v1553 = vpack.c.b16 %v1451, %v1450
      %v1554 = vpack.c.b16 %v1453, %v1452
      %v1555 = vpack.c.b16 %v1455, %v1454
      %v1556 = vpack.c.b16 %v1457, %v1456
      %v1557 = vpack.c.b16 %v1459, %v1458
      %v1558 = vpack.c.b16 %v1461, %v1460
      %v1559 = vpack.c.b16 %v1463, %v1462
      %v1560 = vpack.c.b16 %v1465, %v1464
      %v1561 = vpack.c.b16 %v1467, %v1466
      %v1562 = vpack.c.b16 %v1469, %v1468
      %v1563 = vpack.c.b16 %v1471, %v1470
      %v1564 = vpack.c.b16 %v1473, %v1472
      %v1565 = vpack.c.b16 %v1475, %v1474
      %v1566 = vpack.c.b16 %v1477, %v1476
      %v1567 = vpack.c.b16 %v1479, %v1478
      %v1568 = vpack.c.b16 %v1481, %v1480
      %v1569 = vpack.c.b16 %v1483, %v1482
      %v1570 = vpack.c.b16 %v1485, %v1484
      %v1571 = vpack.c.b16 %v1487, %v1486
      %v1572 = vpack.c.b16 %v1489, %v1488
      %v1573 = vpack.c.b16 %v1491, %v1490
      %v1574 = vpack.c.b16 %v1493, %v1492
      %v1575 = vpack.c.b16 %v1495, %v1494
      %v1576 = vpack.c.b16 %v1497, %v1496
      %v1577 = vpack.c.b16 %v1499, %v1498
      %v1578 = vpack.c.b16 %v1501, %v1500
      %v1579 = vpack.c.b16 %v1503, %v1502
      %v1580 = vpack.c.b16 %v1505, %v1504
      %v1581 = vpack.c.b16 %v1507, %v1506
      %v1582 = vpack.c.b16 %v1509, %v1508
      %v1583 = vpack.c.b16 %v1511, %v1510
      %1656 = vmatprep.subr.bf16.mxu0 0
      %1657 = vmatpush1.bf16.msra.mxu0 %v1512
      %1658 = vmatprep.subr.bf16.mxu0 0
      %1659 = vmatpush1.bf16.msra.mxu0 %v1513
      %1660 = vmatprep.subr.bf16.mxu0 0
      %1661 = vmatpush1.bf16.msra.mxu0 %v1514
      %1662 = vmatprep.subr.bf16.mxu0 0
      %1663 = vmatpush1.bf16.msra.mxu0 %v1515
      %1664 = vmatprep.subr.bf16.mxu0 0
      %1665 = vmatpush1.bf16.msra.mxu0 %v1516
      %1666 = vmatprep.subr.bf16.mxu0 0
      %1667 = vmatpush1.bf16.msra.mxu0 %v1517
      %1668 = vmatprep.subr.bf16.mxu0 0
      %1669 = vmatpush1.bf16.msra.mxu0 %v1518
      %1670 = vmatprep.subr.bf16.mxu0 0
      %1671 = vmatpush1.bf16.msra.mxu0 %v1519
      %1672 = vmatprep.subr.bf16.mxu0 0
      %1673 = vmatpush1.bf16.msra.mxu0 %v1520
      %1674 = vmatprep.subr.bf16.mxu0 0
      %1675 = vmatpush1.bf16.msra.mxu0 %v1521
      %1676 = vmatprep.subr.bf16.mxu0 0
      %1677 = vmatpush1.bf16.msra.mxu0 %v1522
      %1678 = vmatprep.subr.bf16.mxu0 0
      %1679 = vmatpush1.bf16.msra.mxu0 %v1523
      %1680 = vmatprep.subr.bf16.mxu0 0
      %1681 = vmatpush1.bf16.msra.mxu0 %v1524
      %1682 = vmatprep.subr.bf16.mxu0 0
      %1683 = vmatpush1.bf16.msra.mxu0 %v1525
      %1684 = vmatprep.subr.bf16.mxu0 0
      %1685 = vmatpush1.bf16.msra.mxu0 %v1526
      %1686 = vmatprep.subr.bf16.mxu0 0
      %1687 = vmatpush1.bf16.msra.mxu0 %v1527
      %1688 = vmatprep.mubr.bf16.mxu0 %v1011
      %1689 = vmatmul.mubr.bf16.gmra.mrb[0].mxu0 %v1010
      %v1690 = vpop.f32.mrb[0].mxu0
      %v1691 = vadd.f32 %v1222, %v1690
      %v1692 = vpop.f32.mrb[0].mxu0
      %v1693 = vpop.f32.mrb[0].mxu0
      %v1694 = vadd.f32 %v1222, %v1693
      %v1695 = vpop.f32.mrb[0].mxu0
      %1696 = vmatprep.mubr.bf16.mxu0 %v1020
      %1697 = vmatmul.mubr.bf16.gmra.mrb[0].mxu0 %v1019
      %v1698 = vpop.f32.mrb[0].mxu0
      %v1699 = vadd.f32 %v1222, %v1698
      %v1700 = vpop.f32.mrb[0].mxu0
      %v1701 = vpop.f32.mrb[0].mxu0
      %v1702 = vadd.f32 %v1222, %v1701
      %v1703 = vpop.f32.mrb[0].mxu0
      %1704 = vmatprep.mubr.bf16.mxu0 %v1029
      %1705 = vmatmul.mubr.bf16.gmra.mrb[0].mxu0 %v1028
      %v1706 = vpop.f32.mrb[0].mxu0
      %v1707 = vadd.f32 %v1222, %v1706
      %v1708 = vpop.f32.mrb[0].mxu0
      %v1709 = vpop.f32.mrb[0].mxu0
      %v1710 = vadd.f32 %v1222, %v1709
      %v1711 = vpop.f32.mrb[0].mxu0
      %1712 = vmatprep.mubr.bf16.mxu0 %v1038
      %1713 = vmatmul.mubr.bf16.gmra.mrb[0].mxu0 %v1037
      %v1714 = vpop.f32.mrb[0].mxu0
      %v1715 = vadd.f32 %v1222, %v1714
      %v1716 = vpop.f32.mrb[0].mxu0
      %v1717 = vpop.f32.mrb[0].mxu0
      %v1718 = vadd.f32 %v1222, %v1717
      %v1719 = vpop.f32.mrb[0].mxu0
      %1720 = vmatprep.mubr.bf16.mxu0 %v1047
      %1721 = vmatmul.mubr.bf16.gmra.mrb[0].mxu0 %v1046
      %v1722 = vpop.f32.mrb[0].mxu0
      %v1723 = vadd.f32 %v1222, %v1722
      %v1724 = vpop.f32.mrb[0].mxu0
      %v1725 = vpop.f32.mrb[0].mxu0
      %v1726 = vadd.f32 %v1222, %v1725
      %v1727 = vpop.f32.mrb[0].mxu0
      %1728 = vmatprep.mubr.bf16.mxu0 %v1056
      %1729 = vmatmul.mubr.bf16.gmra.mrb[0].mxu0 %v1055
      %v1730 = vpop.f32.mrb[0].mxu0
      %v1731 = vadd.f32 %v1222, %v1730
      %v1732 = vpop.f32.mrb[0].mxu0
      %v1733 = vpop.f32.mrb[0].mxu0
      %v1734 = vadd.f32 %v1222, %v1733
      %v1735 = vpop.f32.mrb[0].mxu0
      %1736 = vmatprep.mubr.bf16.mxu0 %v1065
      %1737 = vmatmul.mubr.bf16.gmra.mrb[0].mxu0 %v1064
      %v1738 = vpop.f32.mrb[0].mxu0
      %v1739 = vadd.f32 %v1222, %v1738
      %v1740 = vpop.f32.mrb[0].mxu0
      %v1741 = vpop.f32.mrb[0].mxu0
      %v1742 = vadd.f32 %v1222, %v1741
      %v1743 = vpop.f32.mrb[0].mxu0
      %1744 = vdwg.mxu0
      %1745 = vmatprep.subr.bf16.mxu0 0
      %1746 = vmatpush1.bf16.msra.mxu0 %v1528
      %1747 = vmatprep.subr.bf16.mxu0 0
      %1748 = vmatpush1.bf16.msra.mxu0 %v1529
      %1749 = vmatprep.subr.bf16.mxu0 0
      %1750 = vmatpush1.bf16.msra.mxu0 %v1530
      %1751 = vmatprep.subr.bf16.mxu0 0
      %1752 = vmatpush1.bf16.msra.mxu0 %v1531
      %1753 = vmatprep.subr.bf16.mxu0 0
      %1754 = vmatpush1.bf16.msra.mxu0 %v1532
      %1755 = vmatprep.subr.bf16.mxu0 0
      %1756 = vmatpush1.bf16.msra.mxu0 %v1533
      %1757 = vmatprep.subr.bf16.mxu0 0
      %1758 = vmatpush1.bf16.msra.mxu0 %v1534
      %1759 = vmatprep.subr.bf16.mxu0 0
      %1760 = vmatpush1.bf16.msra.mxu0 %v1535
      %1761 = vmatprep.subr.bf16.mxu0 0
      %1762 = vmatpush1.bf16.msra.mxu0 %v1536
      %1763 = vmatprep.subr.bf16.mxu0 0
      %1764 = vmatpush1.bf16.msra.mxu0 %v1537
      %1765 = vmatprep.subr.bf16.mxu0 0
      %1766 = vmatpush1.bf16.msra.mxu0 %v1538
      %1767 = vmatprep.subr.bf16.mxu0 0
      %1768 = vmatpush1.bf16.msra.mxu0 %v1539
      %1769 = vmatprep.subr.bf16.mxu0 0
      %1770 = vmatpush1.bf16.msra.mxu0 %v1540
      %1771 = vmatprep.subr.bf16.mxu0 0
      %1772 = vmatpush1.bf16.msra.mxu0 %v1541
      %1773 = vmatprep.subr.bf16.mxu0 0
      %1774 = vmatpush1.bf16.msra.mxu0 %v1542
      %1775 = vmatprep.subr.bf16.mxu0 0
      %1776 = vmatpush1.bf16.msra.mxu0 %v1543
      %1777 = vmatprep.mubr.bf16.mxu0 %v1013
      %1778 = vmatmul.mubr.bf16.gmra.mrb[0].mxu0 %v1012
      %v1779 = vpop.f32.mrb[0].mxu0
      %v1780 = vadd.f32 %v1691, %v1779
      %v1781 = vpop.f32.mrb[0].mxu0
      %v1782 = vpop.f32.mrb[0].mxu0
      %v1783 = vadd.f32 %v1694, %v1782
      %v1784 = vpop.f32.mrb[0].mxu0
      %1785 = vmatprep.mubr.bf16.mxu0 %v1022
      %1786 = vmatmul.mubr.bf16.gmra.mrb[0].mxu0 %v1021
      %v1787 = vpop.f32.mrb[0].mxu0
      %v1788 = vadd.f32 %v1699, %v1787
      %v1789 = vpop.f32.mrb[0].mxu0
      %v1790 = vpop.f32.mrb[0].mxu0
      %v1791 = vadd.f32 %v1702, %v1790
      %v1792 = vpop.f32.mrb[0].mxu0
      %1793 = vmatprep.mubr.bf16.mxu0 %v1031
      %1794 = vmatmul.mubr.bf16.gmra.mrb[0].mxu0 %v1030
      %v1795 = vpop.f32.mrb[0].mxu0
      %v1796 = vadd.f32 %v1707, %v1795
      %v1797 = vpop.f32.mrb[0].mxu0
      %v1798 = vpop.f32.mrb[0].mxu0
      %v1799 = vadd.f32 %v1710, %v1798
      %v1800 = vpop.f32.mrb[0].mxu0
      %1801 = vmatprep.mubr.bf16.mxu0 %v1040
      %1802 = vmatmul.mubr.bf16.gmra.mrb[0].mxu0 %v1039
      %v1803 = vpop.f32.mrb[0].mxu0
      %v1804 = vadd.f32 %v1715, %v1803
      %v1805 = vpop.f32.mrb[0].mxu0
      %v1806 = vpop.f32.mrb[0].mxu0
      %v1807 = vadd.f32 %v1718, %v1806
      %v1808 = vpop.f32.mrb[0].mxu0
      %1809 = vmatprep.mubr.bf16.mxu0 %v1049
      %1810 = vmatmul.mubr.bf16.gmra.mrb[0].mxu0 %v1048
      %v1811 = vpop.f32.mrb[0].mxu0
      %v1812 = vadd.f32 %v1723, %v1811
      %v1813 = vpop.f32.mrb[0].mxu0
      %v1814 = vpop.f32.mrb[0].mxu0
      %v1815 = vadd.f32 %v1726, %v1814
      %v1816 = vpop.f32.mrb[0].mxu0
      %1817 = vmatprep.mubr.bf16.mxu0 %v1058
      %1818 = vmatmul.mubr.bf16.gmra.mrb[0].mxu0 %v1057
      %v1819 = vpop.f32.mrb[0].mxu0
      %v1820 = vadd.f32 %v1731, %v1819
      %v1821 = vpop.f32.mrb[0].mxu0
      %v1822 = vpop.f32.mrb[0].mxu0
      %v1823 = vadd.f32 %v1734, %v1822
      %v1824 = vpop.f32.mrb[0].mxu0
      %1825 = vmatprep.mubr.bf16.mxu0 %v1067
      %1826 = vmatmul.mubr.bf16.gmra.mrb[0].mxu0 %v1066
      %v1827 = vpop.f32.mrb[0].mxu0
      %v1828 = vadd.f32 %v1739, %v1827
      %v1829 = vpop.f32.mrb[0].mxu0
      %v1830 = vpop.f32.mrb[0].mxu0
      %v1831 = vadd.f32 %v1742, %v1830
      %v1832 = vpop.f32.mrb[0].mxu0
      %1833 = vdwg.mxu0
      %1834 = vmatprep.subr.bf16.mxu0 0
      %1835 = vmatpush1.bf16.msra.mxu0 %v1544
      %1836 = vmatprep.subr.bf16.mxu0 0
      %1837 = vmatpush1.bf16.msra.mxu0 %v1545
      %1838 = vmatprep.subr.bf16.mxu0 0
      %1839 = vmatpush1.bf16.msra.mxu0 %v1546
      %1840 = vmatprep.subr.bf16.mxu0 0
      %1841 = vmatpush1.bf16.msra.mxu0 %v1547
      %1842 = vmatprep.subr.bf16.mxu0 0
      %1843 = vmatpush1.bf16.msra.mxu0 %v1548
      %1844 = vmatprep.subr.bf16.mxu0 0
      %1845 = vmatpush1.bf16.msra.mxu0 %v1549
      %1846 = vmatprep.subr.bf16.mxu0 0
      %1847 = vmatpush1.bf16.msra.mxu0 %v1550
      %1848 = vmatprep.subr.bf16.mxu0 0
      %1849 = vmatpush1.bf16.msra.mxu0 %v1551
      %1850 = vmatprep.subr.bf16.mxu0 0
      %1851 = vmatpush1.bf16.msra.mxu0 %v1552
      %1852 = vmatprep.subr.bf16.mxu0 0
      %1853 = vmatpush1.bf16.msra.mxu0 %v1553
      %1854 = vmatprep.subr.bf16.mxu0 0
      %1855 = vmatpush1.bf16.msra.mxu0 %v1554
      %1856 = vmatprep.subr.bf16.mxu0 0
      %1857 = vmatpush1.bf16.msra.mxu0 %v1555
      %1858 = vmatprep.subr.bf16.mxu0 0
      %1859 = vmatpush1.bf16.msra.mxu0 %v1556
      %1860 = vmatprep.subr.bf16.mxu0 0
      %1861 = vmatpush1.bf16.msra.mxu0 %v1557
      %1862 = vmatprep.subr.bf16.mxu0 0
      %1863 = vmatpush1.bf16.msra.mxu0 %v1558
      %1864 = vmatprep.subr.bf16.mxu0 0
      %1865 = vmatpush1.bf16.msra.mxu0 %v1559
      %1866 = vmatprep.mubr.bf16.mxu0 %v1015
      %1867 = vmatmul.mubr.bf16.gmra.mrb[0].mxu0 %v1014
      %v1868 = vpop.f32.mrb[0].mxu0
      %v1869 = vadd.f32 %v1780, %v1868
      %v1870 = vpop.f32.mrb[0].mxu0
      %v1871 = vpop.f32.mrb[0].mxu0
      %v1872 = vadd.f32 %v1783, %v1871
      %v1873 = vpop.f32.mrb[0].mxu0
      %1874 = vmatprep.mubr.bf16.mxu0 %v1024
      %1875 = vmatmul.mubr.bf16.gmra.mrb[0].mxu0 %v1023
      %v1876 = vpop.f32.mrb[0].mxu0
      %v1877 = vadd.f32 %v1788, %v1876
      %v1878 = vpop.f32.mrb[0].mxu0
      %v1879 = vpop.f32.mrb[0].mxu0
      %v1880 = vadd.f32 %v1791, %v1879
      %v1881 = vpop.f32.mrb[0].mxu0
      %1882 = vmatprep.mubr.bf16.mxu0 %v1033
      %1883 = vmatmul.mubr.bf16.gmra.mrb[0].mxu0 %v1032
      %v1884 = vpop.f32.mrb[0].mxu0
      %v1885 = vadd.f32 %v1796, %v1884
      %v1886 = vpop.f32.mrb[0].mxu0
      %v1887 = vpop.f32.mrb[0].mxu0
      %v1888 = vadd.f32 %v1799, %v1887
      %v1889 = vpop.f32.mrb[0].mxu0
      %1890 = vmatprep.mubr.bf16.mxu0 %v1042
      %1891 = vmatmul.mubr.bf16.gmra.mrb[0].mxu0 %v1041
      %v1892 = vpop.f32.mrb[0].mxu0
      %v1893 = vadd.f32 %v1804, %v1892
      %v1894 = vpop.f32.mrb[0].mxu0
      %v1895 = vpop.f32.mrb[0].mxu0
      %v1896 = vadd.f32 %v1807, %v1895
      %v1897 = vpop.f32.mrb[0].mxu0
      %1898 = vmatprep.mubr.bf16.mxu0 %v1051
      %1899 = vmatmul.mubr.bf16.gmra.mrb[0].mxu0 %v1050
      %v1900 = vpop.f32.mrb[0].mxu0
      %v1901 = vadd.f32 %v1812, %v1900
      %v1902 = vpop.f32.mrb[0].mxu0
      %v1903 = vpop.f32.mrb[0].mxu0
      %v1904 = vadd.f32 %v1815, %v1903
      %v1905 = vpop.f32.mrb[0].mxu0
      %1906 = vmatprep.mubr.bf16.mxu0 %v1060
      %1907 = vmatmul.mubr.bf16.gmra.mrb[0].mxu0 %v1059
      %v1908 = vpop.f32.mrb[0].mxu0
      %v1909 = vadd.f32 %v1820, %v1908
      %v1910 = vpop.f32.mrb[0].mxu0
      %v1911 = vpop.f32.mrb[0].mxu0
      %v1912 = vadd.f32 %v1823, %v1911
      %v1913 = vpop.f32.mrb[0].mxu0
      %1914 = vmatprep.mubr.bf16.mxu0 %v1069
      %1915 = vmatmul.mubr.bf16.gmra.mrb[0].mxu0 %v1068
      %v1916 = vpop.f32.mrb[0].mxu0
      %v1917 = vadd.f32 %v1828, %v1916
      %v1918 = vpop.f32.mrb[0].mxu0
      %v1919 = vpop.f32.mrb[0].mxu0
      %v1920 = vadd.f32 %v1831, %v1919
      %v1921 = vpop.f32.mrb[0].mxu0
      %1922 = vdwg.mxu0
      %1923 = vmatprep.subr.bf16.mxu0 0
      %1924 = vmatpush1.bf16.msra.mxu0 %v1560
      %1925 = vmatprep.subr.bf16.mxu0 0
      %1926 = vmatpush1.bf16.msra.mxu0 %v1561
      %1927 = vmatprep.subr.bf16.mxu0 0
      %1928 = vmatpush1.bf16.msra.mxu0 %v1562
      %1929 = vmatprep.subr.bf16.mxu0 0
      %1930 = vmatpush1.bf16.msra.mxu0 %v1563
      %1931 = vmatprep.subr.bf16.mxu0 0
      %1932 = vmatpush1.bf16.msra.mxu0 %v1564
      %1933 = vmatprep.subr.bf16.mxu0 0
      %1934 = vmatpush1.bf16.msra.mxu0 %v1565
      %1935 = vmatprep.subr.bf16.mxu0 0
      %1936 = vmatpush1.bf16.msra.mxu0 %v1566
      %1937 = vmatprep.subr.bf16.mxu0 0
      %1938 = vmatpush1.bf16.msra.mxu0 %v1567
      %1939 = vmatprep.subr.bf16.mxu0 0
      %1940 = vmatpush1.bf16.msra.mxu0 %v1568
      %1941 = vmatprep.subr.bf16.mxu0 0
      %1942 = vmatpush1.bf16.msra.mxu0 %v1569
      %1943 = vmatprep.subr.bf16.mxu0 0
      %1944 = vmatpush1.bf16.msra.mxu0 %v1570
      %1945 = vmatprep.subr.bf16.mxu0 0
      %1946 = vmatpush1.bf16.msra.mxu0 %v1571
      %1947 = vmatprep.subr.bf16.mxu0 0
      %1948 = vmatpush1.bf16.msra.mxu0 %v1572
      %1949 = vmatprep.subr.bf16.mxu0 0
      %1950 = vmatpush1.bf16.msra.mxu0 %v1573
      %1951 = vmatprep.subr.bf16.mxu0 0
      %1952 = vmatpush1.bf16.msra.mxu0 %v1574
      %1953 = vmatprep.subr.bf16.mxu0 0
      %1954 = vmatpush1.bf16.msra.mxu0 %v1575
      %1955 = vmatprep.mubr.bf16.mxu0 %v1017
      %1956 = vmatmul.mubr.bf16.gmra.mrb[0].mxu0 %v1016
      %v1957 = vpop.f32.mrb[0].mxu0
      %v1958 = vadd.f32 %v1869, %v1957
      %v1959 = vpop.f32.mrb[0].mxu0
      %v1960 = vpop.f32.mrb[0].mxu0
      %v1961 = vadd.f32 %v1872, %v1960
      %v1962 = vpop.f32.mrb[0].mxu0
      %1963 = vmatprep.mubr.bf16.mxu0 %v1026
      %1964 = vmatmul.mubr.bf16.gmra.mrb[0].mxu0 %v1025
      %v1965 = vpop.f32.mrb[0].mxu0
      %v1966 = vadd.f32 %v1877, %v1965
      %v1967 = vpop.f32.mrb[0].mxu0
      %v1968 = vpop.f32.mrb[0].mxu0
      %v1969 = vadd.f32 %v1880, %v1968
      %v1970 = vpop.f32.mrb[0].mxu0
      %1971 = vmatprep.mubr.bf16.mxu0 %v1035
      %1972 = vmatmul.mubr.bf16.gmra.mrb[0].mxu0 %v1034
      %v1973 = vpop.f32.mrb[0].mxu0
      %v1974 = vadd.f32 %v1885, %v1973
      %v1975 = vpop.f32.mrb[0].mxu0
      %v1976 = vpop.f32.mrb[0].mxu0
      %v1977 = vadd.f32 %v1888, %v1976
      %v1978 = vpop.f32.mrb[0].mxu0
      %1979 = vmatprep.mubr.bf16.mxu0 %v1044
      %1980 = vmatmul.mubr.bf16.gmra.mrb[0].mxu0 %v1043
      %v1981 = vpop.f32.mrb[0].mxu0
      %v1982 = vadd.f32 %v1893, %v1981
      %v1983 = vpop.f32.mrb[0].mxu0
      %v1984 = vpop.f32.mrb[0].mxu0
      %v1985 = vadd.f32 %v1896, %v1984
      %v1986 = vpop.f32.mrb[0].mxu0
      %1987 = vmatprep.mubr.bf16.mxu0 %v1053
      %1988 = vmatmul.mubr.bf16.gmra.mrb[0].mxu0 %v1052
      %v1989 = vpop.f32.mrb[0].mxu0
      %v1990 = vadd.f32 %v1901, %v1989
      %v1991 = vpop.f32.mrb[0].mxu0
      %v1992 = vpop.f32.mrb[0].mxu0
      %v1993 = vadd.f32 %v1904, %v1992
      %v1994 = vpop.f32.mrb[0].mxu0
      %1995 = vmatprep.mubr.bf16.mxu0 %v1062
      %1996 = vmatmul.mubr.bf16.gmra.mrb[0].mxu0 %v1061
      %v1997 = vpop.f32.mrb[0].mxu0
      %v1998 = vadd.f32 %v1909, %v1997
      %v1999 = vpop.f32.mrb[0].mxu0
      %v2000 = vpop.f32.mrb[0].mxu0
      %v2001 = vadd.f32 %v1912, %v2000
      %v2002 = vpop.f32.mrb[0].mxu0
      %2003 = vmatprep.mubr.bf16.mxu0 %v1071
      %2004 = vmatmul.mubr.bf16.gmra.mrb[0].mxu0 %v1070
      %v2005 = vpop.f32.mrb[0].mxu0
      %v2006 = vadd.f32 %v1917, %v2005
      %v2007 = vpop.f32.mrb[0].mxu0
      %v2008 = vpop.f32.mrb[0].mxu0
      %v2009 = vadd.f32 %v1920, %v2008
      %v2010 = vpop.f32.mrb[0].mxu0
      %2011 = vdwg.mxu0
      %2012 = vmatprep.subr.bf16.mxu0 0
      %2013 = vmatpush1.bf16.msra.mxu0 %v1576
      %2014 = vmatprep.subr.bf16.mxu0 0
      %2015 = vmatpush1.bf16.msra.mxu0 %v1577
      %2016 = vmatprep.subr.bf16.mxu0 0
      %2017 = vmatpush1.bf16.msra.mxu0 %v1578
      %2018 = vmatprep.subr.bf16.mxu0 0
      %2019 = vmatpush1.bf16.msra.mxu0 %v1579
      %2020 = vmatprep.subr.bf16.mxu0 0
      %2021 = vmatpush1.bf16.msra.mxu0 %v1580
      %2022 = vmatprep.subr.bf16.mxu0 0
      %2023 = vmatpush1.bf16.msra.mxu0 %v1581
      %2024 = vmatprep.subr.bf16.mxu0 0
      %2025 = vmatpush1.bf16.msra.mxu0 %v1582
      %2026 = vmatprep.subr.bf16.mxu0 0
      %2027 = vmatpush1.bf16.msra.mxu0 %v1583
      %2028 = vmatprep.subr.bf16.mxu0 0
      %2029 = vmatpush1.bf16.msra.mxu0 0
      %2030 = vmatprep.subr.bf16.mxu0 0
      %2031 = vmatpush1.bf16.msra.mxu0 0
      %2032 = vmatprep.subr.bf16.mxu0 0
      %2033 = vmatpush1.bf16.msra.mxu0 0
      %2034 = vmatprep.subr.bf16.mxu0 0
      %2035 = vmatpush1.bf16.msra.mxu0 0
      %2036 = vmatprep.subr.bf16.mxu0 0
      %2037 = vmatpush1.bf16.msra.mxu0 0
      %2038 = vmatprep.subr.bf16.mxu0 0
      %2039 = vmatpush1.bf16.msra.mxu0 0
      %2040 = vmatprep.subr.bf16.mxu0 0
      %2041 = vmatpush1.bf16.msra.mxu0 0
      %2042 = vmatprep.subr.bf16.mxu0 0
      %2043 = vmatpush1.bf16.msra.mxu0 0
      %2044 = vmatprep.mubr.bf16.mxu0 0
      %2045 = vmatmul.mubr.bf16.gmra.mrb[0].mxu0 %v1018
      %v2046 = vpop.f32.mrb[0].mxu0
      %v2047 = vadd.f32 %v1958, %v2046
      %v2048 = vpop.f32.mrb[0].mxu0
      %v2049 = vpop.f32.mrb[0].mxu0
      %v2050 = vadd.f32 %v1961, %v2049
      %v2051 = vpop.f32.mrb[0].mxu0
      %2052 = vmatprep.mubr.bf16.mxu0 0
      %2053 = vmatmul.mubr.bf16.gmra.mrb[0].mxu0 %v1027
      %v2054 = vpop.f32.mrb[0].mxu0
      %v2055 = vadd.f32 %v1966, %v2054
      %v2056 = vpop.f32.mrb[0].mxu0
      %v2057 = vpop.f32.mrb[0].mxu0
      %v2058 = vadd.f32 %v1969, %v2057
      %v2059 = vpop.f32.mrb[0].mxu0
      %2060 = vmatprep.mubr.bf16.mxu0 0
      %2061 = vmatmul.mubr.bf16.gmra.mrb[0].mxu0 %v1036
      %v2062 = vpop.f32.mrb[0].mxu0
      %v2063 = vadd.f32 %v1974, %v2062
      %v2064 = vpop.f32.mrb[0].mxu0
      %v2065 = vpop.f32.mrb[0].mxu0
      %v2066 = vadd.f32 %v1977, %v2065
      %v2067 = vpop.f32.mrb[0].mxu0
      %2068 = vmatprep.mubr.bf16.mxu0 0
      %2069 = vmatmul.mubr.bf16.gmra.mrb[0].mxu0 %v1045
      %v2070 = vpop.f32.mrb[0].mxu0
      %v2071 = vadd.f32 %v1982, %v2070
      %v2072 = vpop.f32.mrb[0].mxu0
      %v2073 = vpop.f32.mrb[0].mxu0
      %v2074 = vadd.f32 %v1985, %v2073
      %v2075 = vpop.f32.mrb[0].mxu0
      %2076 = vmatprep.mubr.bf16.mxu0 0
      %2077 = vmatmul.mubr.bf16.gmra.mrb[0].mxu0 %v1054
      %v2078 = vpop.f32.mrb[0].mxu0
      %v2079 = vadd.f32 %v1990, %v2078
      %v2080 = vpop.f32.mrb[0].mxu0
      %v2081 = vpop.f32.mrb[0].mxu0
      %v2082 = vadd.f32 %v1993, %v2081
      %v2083 = vpop.f32.mrb[0].mxu0
      %2084 = vmatprep.mubr.bf16.mxu0 0
      %2085 = vmatmul.mubr.bf16.gmra.mrb[0].mxu0 %v1063
      %v2086 = vpop.f32.mrb[0].mxu0
      %v2087 = vadd.f32 %v1998, %v2086
      %v2088 = vpop.f32.mrb[0].mxu0
      %v2089 = vpop.f32.mrb[0].mxu0
      %v2090 = vadd.f32 %v2001, %v2089
      %v2091 = vpop.f32.mrb[0].mxu0
      %2092 = vmatprep.mubr.bf16.mxu0 0
      %2093 = vmatmul.mubr.bf16.gmra.mrb[0].mxu0 %v1072
      %v2094 = vpop.f32.mrb[0].mxu0
      %v2095 = vadd.f32 %v2006, %v2094
      %v2096 = vpop.f32.mrb[0].mxu0
      %v2097 = vpop.f32.mrb[0].mxu0
      %v2098 = vadd.f32 %v2009, %v2097
      %v2099 = vpop.f32.mrb[0].mxu0
      %2100 = vdwg.mxu0
      %v2101 = vmax.f32 %v2047, -1.0
      %v2102 = vmax.f32 %v2050, -1.0
      %v2103 = vmax.f32 %v2055, -1.0
      %v2104 = vmax.f32 %v2058, -1.0
      %v2105 = vmax.f32 %v2063, -1.0
      %v2106 = vmax.f32 %v2066, -1.0
      %v2107 = vmax.f32 %v2071, -1.0
      %v2108 = vmax.f32 %v2074, -1.0
      %v2109 = vmax.f32 %v2079, -1.0
      %v2110 = vmax.f32 %v2082, -1.0
      %v2111 = vmax.f32 %v2087, -1.0
      %v2112 = vmax.f32 %v2090, -1.0
      %v2113 = vmax.f32 %v2095, -1.0
      %v2114 = vmax.f32 %v2098, -1.0
      %v2115 = vmin.f32 %v2101, 1.0
      %v2116 = vmin.f32 %v2102, 1.0
      %v2117 = vmin.f32 %v2103, 1.0
      %v2118 = vmin.f32 %v2104, 1.0
      %v2119 = vmin.f32 %v2105, 1.0
      %v2120 = vmin.f32 %v2106, 1.0
      %v2121 = vmin.f32 %v2107, 1.0
      %v2122 = vmin.f32 %v2108, 1.0
      %v2123 = vmin.f32 %v2109, 1.0
      %v2124 = vmin.f32 %v2110, 1.0
      %v2125 = vmin.f32 %v2111, 1.0
      %v2126 = vmin.f32 %v2112, 1.0
      %v2127 = vmin.f32 %v2113, 1.0
      %v2128 = vmin.f32 %v2114, 1.0
      %v2129 = vmul.f32 %v2115, 7.5
      %v2130 = vmul.f32 %v2116, 7.5
      %v2131 = vmul.f32 %v2117, 7.5
      %v2132 = vmul.f32 %v2118, 7.5
      %v2133 = vmul.f32 %v2119, 7.5
      %v2134 = vmul.f32 %v2120, 7.5
      %v2135 = vmul.f32 %v2121, 7.5
      %v2136 = vmul.f32 %v2122, 7.5
      %v2137 = vmul.f32 %v2123, 7.5
      %v2138 = vmul.f32 %v2124, 7.5
      %v2139 = vmul.f32 %v2125, 7.5
      %v2140 = vmul.f32 %v2126, 7.5
      %v2141 = vmul.f32 %v2127, 7.5
      %v2142 = vmul.f32 %v2128, 7.5
      %v2143 = vadd.f32 %v2129, 7.5
      %v2144 = vadd.f32 %v2130, 7.5
      %v2145 = vadd.f32 %v2131, 7.5
      %v2146 = vadd.f32 %v2132, 7.5
      %v2147 = vadd.f32 %v2133, 7.5
      %v2148 = vadd.f32 %v2134, 7.5
      %v2149 = vadd.f32 %v2135, 7.5
      %v2150 = vadd.f32 %v2136, 7.5
      %v2151 = vadd.f32 %v2137, 7.5
      %v2152 = vadd.f32 %v2138, 7.5
      %v2153 = vadd.f32 %v2139, 7.5
      %v2154 = vadd.f32 %v2140, 7.5
      %v2155 = vadd.f32 %v2141, 7.5
      %v2156 = vadd.f32 %v2142, 7.5
      %v2157 = vround.ne.pseudo %v2143
      %v2158 = vround.ne.pseudo %v2144
      %v2159 = vround.ne.pseudo %v2145
      %v2160 = vround.ne.pseudo %v2146
      %v2161 = vround.ne.pseudo %v2147
      %v2162 = vround.ne.pseudo %v2148
      %v2163 = vround.ne.pseudo %v2149
      %v2164 = vround.ne.pseudo %v2150
      %v2165 = vround.ne.pseudo %v2151
      %v2166 = vround.ne.pseudo %v2152
      %v2167 = vround.ne.pseudo %v2153
      %v2168 = vround.ne.pseudo %v2154
      %v2169 = vround.ne.pseudo %v2155
      %v2170 = vround.ne.pseudo %v2156
      %v2171 = vmul.f32 %v2157, 0.13333334
      %v2172 = vmul.f32 %v2158, 0.13333334
      %v2173 = vmul.f32 %v2159, 0.13333334
      %v2174 = vmul.f32 %v2160, 0.13333334
      %v2175 = vmul.f32 %v2161, 0.13333334
      %v2176 = vmul.f32 %v2162, 0.13333334
      %v2177 = vmul.f32 %v2163, 0.13333334
      %v2178 = vmul.f32 %v2164, 0.13333334
      %v2179 = vmul.f32 %v2165, 0.13333334
      %v2180 = vmul.f32 %v2166, 0.13333334
      %v2181 = vmul.f32 %v2167, 0.13333334
      %v2182 = vmul.f32 %v2168, 0.13333334
      %v2183 = vmul.f32 %v2169, 0.13333334
      %v2184 = vmul.f32 %v2170, 0.13333334
      %v2185 = vsub.f32 %v2171, 1.0
      %v2186 = vsub.f32 %v2172, 1.0
      %v2187 = vsub.f32 %v2173, 1.0
      %v2188 = vsub.f32 %v2174, 1.0
      %v2189 = vsub.f32 %v2175, 1.0
      %v2190 = vsub.f32 %v2176, 1.0
      %v2191 = vsub.f32 %v2177, 1.0
      %v2192 = vsub.f32 %v2178, 1.0
      %v2193 = vsub.f32 %v2179, 1.0
      %v2194 = vsub.f32 %v2180, 1.0
      %v2195 = vsub.f32 %v2181, 1.0
      %v2196 = vsub.f32 %v2182, 1.0
      %v2197 = vsub.f32 %v2183, 1.0
      %v2198 = vsub.f32 %v2184, 1.0
      %v2199 = vld [vmem:[%s3] sm:$0xff]
      %v2200 = vld [vmem:[%s3 + $0x8] sm:$0xff]
      %v2201 = vld [vmem:[%s3 + $0x10] sm:$0xff]
      %v2202 = vld [vmem:[%s3 + $0x18] sm:$0xff]
      %v2203 = vld [vmem:[%s3 + $0x20] sm:$0xff]
      %v2204 = vld [vmem:[%s3 + $0x28] sm:$0xff]
      %v2205 = vld [vmem:[%s3 + $0x30] sm:$0xff]
      %v2206 = vld [vmem:[%s3 + $0x38] sm:$0xff]
      %v2207 = vld [vmem:[%s3 + $0x40] sm:$0xff]
      %v2208 = vld [vmem:[%s3 + $0x48] sm:$0xff]
      %v2209 = vld [vmem:[%s3 + $0x50] sm:$0xff]
      %v2210 = vld [vmem:[%s3 + $0x58] sm:$0xff]
      %v2211 = vld [vmem:[%s3 + $0x60] sm:$0xff]
      %v2212 = vld [vmem:[%s3 + $0x68] sm:$0xff]
      %2214 = vset.pattern.permute.xlu0 0
      %2215 = vperm.xlu0 %2214, %v2199
      %v2216 = vpop.permute.xlu0 %2215
      %2219 = vset.pattern.permute.xlu0 0
      %2220 = vperm.xlu0 %2219, %v2200
      %v2221 = vpop.permute.xlu0 %2220
      %2224 = vset.pattern.permute.xlu0 0
      %2225 = vperm.xlu0 %2224, %v2201
      %v2226 = vpop.permute.xlu0 %2225
      %2229 = vset.pattern.permute.xlu0 0
      %2230 = vperm.xlu0 %2229, %v2202
      %v2231 = vpop.permute.xlu0 %2230
      %2234 = vset.pattern.permute.xlu0 0
      %2235 = vperm.xlu0 %2234, %v2203
      %v2236 = vpop.permute.xlu0 %2235
      %2239 = vset.pattern.permute.xlu0 0
      %2240 = vperm.xlu0 %2239, %v2204
      %v2241 = vpop.permute.xlu0 %2240
      %2244 = vset.pattern.permute.xlu0 0
      %2245 = vperm.xlu0 %2244, %v2205
      %v2246 = vpop.permute.xlu0 %2245
      %2249 = vset.pattern.permute.xlu0 0
      %2250 = vperm.xlu0 %2249, %v2206
      %v2251 = vpop.permute.xlu0 %2250
      %2254 = vset.pattern.permute.xlu0 0
      %2255 = vperm.xlu0 %2254, %v2207
      %v2256 = vpop.permute.xlu0 %2255
      %2259 = vset.pattern.permute.xlu0 0
      %2260 = vperm.xlu0 %2259, %v2208
      %v2261 = vpop.permute.xlu0 %2260
      %2264 = vset.pattern.permute.xlu0 0
      %2265 = vperm.xlu0 %2264, %v2209
      %v2266 = vpop.permute.xlu0 %2265
      %2269 = vset.pattern.permute.xlu0 0
      %2270 = vperm.xlu0 %2269, %v2210
      %v2271 = vpop.permute.xlu0 %2270
      %2274 = vset.pattern.permute.xlu0 0
      %2275 = vperm.xlu0 %2274, %v2211
      %v2276 = vpop.permute.xlu0 %2275
      %2279 = vset.pattern.permute.xlu0 0
      %2280 = vperm.xlu0 %2279, %v2212
      %v2281 = vpop.permute.xlu0 %2280
      %v2283 = vmul.f32 %v2185, %v2216
      %v2284 = vmul.f32 %v2186, %v2221
      %v2285 = vmul.f32 %v2187, %v2226
      %v2286 = vmul.f32 %v2188, %v2231
      %v2287 = vmul.f32 %v2189, %v2236
      %v2288 = vmul.f32 %v2190, %v2241
      %v2289 = vmul.f32 %v2191, %v2246
      %v2290 = vmul.f32 %v2192, %v2251
      %v2291 = vmul.f32 %v2193, %v2256
      %v2292 = vmul.f32 %v2194, %v2261
      %v2293 = vmul.f32 %v2195, %v2266
      %v2294 = vmul.f32 %v2196, %v2271
      %v2295 = vmul.f32 %v2197, %v2276
      %v2296 = vmul.f32 %v2198, %v2281
      %v2297 = vpack.c.bf16 %v2284, %v2283
      %v2298 = vpack.c.bf16 %v2286, %v2285
      %v2299 = vpack.c.bf16 %v2288, %v2287
      %v2300 = vpack.c.bf16 %v2290, %v2289
      %v2301 = vpack.c.bf16 %v2292, %v2291
      %v2302 = vpack.c.bf16 %v2294, %v2293
      %v2303 = vpack.c.bf16 %v2296, %v2295
      %v2311 = vunpack.c.l.b16 %v2297
      %v2312 = vunpack.c.h.b16 %v2297
      %v2313 = vunpack.c.l.b16 %v2298
      %v2314 = vunpack.c.h.b16 %v2298
      %v2315 = vunpack.c.l.b16 %v2299
      %v2316 = vunpack.c.h.b16 %v2299
      %v2317 = vunpack.c.l.b16 %v2300
      %v2318 = vunpack.c.h.b16 %v2300
      %v2319 = vunpack.c.l.b16 %v2301
      %v2320 = vunpack.c.h.b16 %v2301
      %v2321 = vunpack.c.l.b16 %v2302
      %v2322 = vunpack.c.h.b16 %v2302
      %v2323 = vunpack.c.l.b16 %v2303
      %v2324 = vunpack.c.h.b16 %v2303
      %v2325 = vpack.c.b16 %v2311, %v2311
      %v2326 = vpack.c.b16 %v2312, %v2312
      %v2327 = vpack.c.b16 %v2313, %v2313
      %v2328 = vpack.c.b16 %v2314, %v2314
      %v2329 = vpack.c.b16 %v2315, %v2315
      %v2330 = vpack.c.b16 %v2316, %v2316
      %v2331 = vpack.c.b16 %v2317, %v2317
      %v2332 = vpack.c.b16 %v2318, %v2318
      %v2333 = vpack.c.b16 %v2319, %v2319
      %v2334 = vpack.c.b16 %v2320, %v2320
      %v2335 = vpack.c.b16 %v2321, %v2321
      %v2336 = vpack.c.b16 %v2322, %v2322
      %v2337 = vpack.c.b16 %v2323, %v2323
      %v2338 = vpack.c.b16 %v2324, %v2324
      %2353 = vst [vmem:[%s197] sm:$0xf] %v2325
      %2354 = vst [vmem:[%s197 + $0x4] sm:$0xf] %v2326
      %2355 = vst [vmem:[%s197 + $0x8] sm:$0xf] %v2327
      %2356 = vst [vmem:[%s197 + $0xc] sm:$0xf] %v2328
      %2357 = vst [vmem:[%s197 + $0x10] sm:$0xf] %v2329
      %2358 = vst [vmem:[%s197 + $0x14] sm:$0xf] %v2330
      %2359 = vst [vmem:[%s197 + $0x18] sm:$0xf] %v2331
      %2360 = vst [vmem:[%s197 + $0x1c] sm:$0xf] %v2332
      %2361 = vst [vmem:[%s197 + $0x20] sm:$0xf] %v2333
      %2362 = vst [vmem:[%s197 + $0x24] sm:$0xf] %v2334
      %2363 = vst [vmem:[%s197 + $0x28] sm:$0xf] %v2335
      %2364 = vst [vmem:[%s197 + $0x2c] sm:$0xf] %v2336
      %2365 = vst [vmem:[%s197 + $0x30] sm:$0xf] %v2337
      %2366 = vst [vmem:[%s197 + $0x34] sm:$0xf] %v2338
      %p2367 = scmp.lt.s32.totalorder %s15, 1
      %s2368 = scalar_select %p2367, %s15, 1
      %s2369 = smul.addr %s2368, 14
      %s2370 = smul.addr %s2369, 4
      %s2371 = scalar_lea.vmem %s4, %s2370
      // Predicated region
      $region37: #{basic_block_forward.2} parent=35 // pred_check
        %p2372 = pneg %p122
      $region38: #{basic_block_forward.2} parent=35 // pred_check_branch
        %2374 = sbr.rel (%p2372) target = $region40
      $region39: #{basic_block_forward.2} parent=35 // pred_region
        _
      $region40: #{basic_block_forward.2} parent=35 // pred_fallthru
        _
    $region36: #{basic_block_forward.2} parent=5 // pred_fallthru
      _
    %p2375 = scmp.le.s32.totalorder 2, %s10
    // Predicated region
    $region41: #{basic_block_forward.2} parent=5 // pred_check
      %p2376 = pneg %p2375
    $region42: #{basic_block_forward.2} parent=5 // pred_check_branch
      %2378 = sbr.rel (%p2376) target = $region44
    $region43: #{basic_block_forward.2} parent=5 // pred_region
      %s2379 = ssub.s32 %s10, 2
      // Predicated region
      $region45: #{basic_block_forward.2} parent=43 // pred_check
        %p2380 = pneg %p128
      $region46: #{basic_block_forward.2} parent=43 // pred_check_branch
        %2382 = sbr.rel (%p2380) target = $region48
      $region47: #{basic_block_forward.2} parent=43 // pred_region
        %p2383 = scmp.lt.s32.totalorder %s16, 1
        %s2384 = scalar_select %p2383, %s16, 1
        %s2385 = smul.addr %s2384, 14
        %s2386 = smul.addr %s2385, 4
        %s2387 = scalar_lea.vmem %s4, %s2386
      $region48: #{basic_block_forward.2} parent=43 // pred_fallthru
        _
    $region44: #{basic_block_forward.2} parent=5 // pred_fallthru
      _
  $region6: #{basic_block_forward.2} parent=0 // loop_footer
    %s14 = sadd.s32 1, %s10
  $region7: #{basic_block_forward.2} parent=0 // loop_footer_branch
    %9 = sbr.rel target = $region3
  $region8: #{basic_block_forward.2} parent=0 // loop_exit
    _

// kernel: basic_block_forward.3
$region0: #{basic_block_forward.3}
  #allocation0 [shape = 'u32[]', space=smem, size = 0x4, offset = 0x4, fixed_abs, tag = 'smem constant byte address 0x4 - core index']
  #allocation1 [shape = 'u32[144,128]{1,0:T(1,128)}', space=vmem, size = 0x12000, scoped, tag = 'internal scratch']
  #allocation2 [shape = 'bf16[80,1152]{1,0:T(16,128)(2,1)}', space=vmem, size = 0x2d000, scoped, tag = 'scratch operand']
  %s0 = inlined_call_operand.vmem [shape: bf16[2,112,128], index: 0, kind: input, shape index: {}]
  %s1 = inlined_call_operand.vmem [shape: bf16[1152,128], index: 1, kind: input, shape index: {}]
  %s2 = inlined_call_operand.vmem [shape: f32[1,128], index: 2, kind: input, shape index: {}]
  %s3 = inlined_call_operand.vmem [shape: bf16[2,80,128], index: 3, kind: input, shape index: {}]
  %s4 = inlined_call_operand.vmem [shape: bf16[128,128], index: 4, kind: input, shape index: {}]
  %s5 = inlined_call_operand.vmem [shape: bf16[2,80,128], index: 5, kind: output, shape index: {}]
  %s6 = sld [smem:[#allocation0]]
  $region53: #{basic_block_forward.3} parent=0
    _
  %s8 = ssub.s32 1, %s6
  %s9 = scalar_select 0, %s8, %s6
  loop: start=0, step=1, limit=4
  $region2: #{basic_block_forward.3} parent=0 // loop_pre_header
    _
  $region3: #{basic_block_forward.3} parent=0 // loop_header
    %s11 = sphi 0, %s15
    %p12 = scmp.ge.s32.totalorder %s11, 4
    %s21 = sphi 0, %s23
    %s24 = sphi 0, %s21
    %s25 = sphi 0, %s24
    %s41 = sphi 0, %s25
    %s45 = sphi 0, %s45
    %s47 = sphi 0, %s45
    %s48 = sphi 0, %s47
    %s62 = sphi 0, %s48
    %s66 = sphi 0, %s66
    %s68 = sphi 0, %s66
    %s69 = sphi 0, %s68
    %s83 = sphi 0, %s69
    %s89 = sphi 0, %s91
    %s92 = sphi 0, %s89
    %s93 = sphi 0, %s92
    %s109 = sphi 0, %s93
    %s113 = sphi 0, %s113
    %s115 = sphi 0, %s113
    %s116 = sphi 0, %s115
    %s130 = sphi 0, %s116
    %s136 = sphi 0, %s138
    %s139 = sphi 0, %s136
    %s140 = sphi 0, %s139
    %s156 = sphi 0, %s140
  $region4: #{basic_block_forward.3} parent=0 // loop_header_branch
    %14 = sbr.rel (%p12) target = $region8
  $region5: #{basic_block_forward.3} parent=0 // loop_body
    %s16 = ssub.s32 %s11, 1
    %s17 = ssub.s32 %s11, 2
    %s18 = sadd.s32 %s11, 1
    %s19 = ssub.s32 %s11, %s18
    %p20 = scmp.eq.s32.totalorder %s19, 0
    %s22 = sadd.s32 %s21, 1
    %s23 = scalar_select %p20, %s21, %s22
    %p26 = pneg %p20
    %p27 = scmp.eq.s32.totalorder %s11, 1
    %p28 = por %p26, %p27
    %p29 = scmp.ne.s32.totalorder %s21, %s24
    %p30 = scmp.eq.s32.totalorder %s11, 0
    %p31 = por %p29, %p30
    %p32 = scmp.ne.s32.totalorder %s21, %s24
    %p33 = scmp.eq.s32.totalorder %s16, 1
    %p34 = por %p32, %p33
    %p35 = scmp.ne.s32.totalorder %s24, %s25
    %p36 = scmp.eq.s32.totalorder %s16, 0
    %p37 = por %p35, %p36
    %p38 = scmp.ne.s32.totalorder %s24, %s25
    %p39 = scmp.eq.s32.totalorder %s17, 1
    %p40 = por %p38, %p39
    %p42 = scmp.ne.s32.totalorder %s25, %s41
    %p43 = scmp.eq.s32.totalorder %s17, 0
    %p44 = por %p42, %p43
    %s46 = sadd.s32 %s45, 1
    %p49 = scmp.eq.s32.totalorder %s11, 1
    %p50 = scmp.ne.s32.totalorder %s45, %s47
    %p51 = scmp.eq.s32.totalorder %s11, 0
    %p52 = por %p50, %p51
    %p53 = scmp.ne.s32.totalorder %s45, %s47
    %p54 = scmp.eq.s32.totalorder %s16, 1
    %p55 = por %p53, %p54
    %p56 = scmp.ne.s32.totalorder %s47, %s48
    %p57 = scmp.eq.s32.totalorder %s16, 0
    %p58 = por %p56, %p57
    %p59 = scmp.ne.s32.totalorder %s47, %s48
    %p60 = scmp.eq.s32.totalorder %s17, 1
    %p61 = por %p59, %p60
    %p63 = scmp.ne.s32.totalorder %s48, %s62
    %p64 = scmp.eq.s32.totalorder %s17, 0
    %p65 = por %p63, %p64
    %s67 = sadd.s32 %s66, 1
    %p70 = scmp.eq.s32.totalorder %s11, 1
    %p71 = scmp.ne.s32.totalorder %s66, %s68
    %p72 = scmp.eq.s32.totalorder %s11, 0
    %p73 = por %p71, %p72
    %p74 = scmp.ne.s32.totalorder %s66, %s68
    %p75 = scmp.eq.s32.totalorder %s16, 1
    %p76 = por %p74, %p75
    %p77 = scmp.ne.s32.totalorder %s68, %s69
    %p78 = scmp.eq.s32.totalorder %s16, 0
    %p79 = por %p77, %p78
    %p80 = scmp.ne.s32.totalorder %s68, %s69
    %p81 = scmp.eq.s32.totalorder %s17, 1
    %p82 = por %p80, %p81
    %p84 = scmp.ne.s32.totalorder %s69, %s83
    %p85 = scmp.eq.s32.totalorder %s17, 0
    %p86 = por %p84, %p85
    %s87 = ssub.s32 %s11, %s18
    %p88 = scmp.eq.s32.totalorder %s87, 0
    %s90 = sadd.s32 %s89, 1
    %s91 = scalar_select %p88, %s89, %s90
    %p94 = pneg %p88
    %p95 = scmp.eq.s32.totalorder %s11, 1
    %p96 = por %p94, %p95
    %p97 = scmp.ne.s32.totalorder %s89, %s92
    %p98 = scmp.eq.s32.totalorder %s11, 0
    %p99 = por %p97, %p98
    %p100 = scmp.ne.s32.totalorder %s89, %s92
    %p101 = scmp.eq.s32.totalorder %s16, 1
    %p102 = por %p100, %p101
    %p103 = scmp.ne.s32.totalorder %s92, %s93
    %p104 = scmp.eq.s32.totalorder %s16, 0
    %p105 = por %p103, %p104
    %p106 = scmp.ne.s32.totalorder %s92, %s93
    %p107 = scmp.eq.s32.totalorder %s17, 1
    %p108 = por %p106, %p107
    %p110 = scmp.ne.s32.totalorder %s93, %s109
    %p111 = scmp.eq.s32.totalorder %s17, 0
    %p112 = por %p110, %p111
    %s114 = sadd.s32 %s113, 1
    %p117 = scmp.eq.s32.totalorder %s11, 1
    %p118 = scmp.ne.s32.totalorder %s113, %s115
    %p119 = scmp.eq.s32.totalorder %s11, 0
    %p120 = por %p118, %p119
    %p121 = scmp.ne.s32.totalorder %s113, %s115
    %p122 = scmp.eq.s32.totalorder %s16, 1
    %p123 = por %p121, %p122
    %p124 = scmp.ne.s32.totalorder %s115, %s116
    %p125 = scmp.eq.s32.totalorder %s16, 0
    %p126 = por %p124, %p125
    %p127 = scmp.ne.s32.totalorder %s115, %s116
    %p128 = scmp.eq.s32.totalorder %s17, 1
    %p129 = por %p127, %p128
    %p131 = scmp.ne.s32.totalorder %s116, %s130
    %p132 = scmp.eq.s32.totalorder %s17, 0
    %p133 = por %p131, %p132
    %s134 = ssub.s32 %s11, %s18
    %p135 = scmp.eq.s32.totalorder %s134, 0
    %s137 = sadd.s32 %s136, 1
    %s138 = scalar_select %p135, %s136, %s137
    %p141 = pneg %p135
    %p142 = scmp.eq.s32.totalorder %s11, 1
    %p143 = por %p141, %p142
    %p144 = scmp.ne.s32.totalorder %s136, %s139
    %p145 = scmp.eq.s32.totalorder %s11, 0
    %p146 = por %p144, %p145
    %p147 = scmp.ne.s32.totalorder %s136, %s139
    %p148 = scmp.eq.s32.totalorder %s16, 1
    %p149 = por %p147, %p148
    %p150 = scmp.ne.s32.totalorder %s139, %s140
    %p151 = scmp.eq.s32.totalorder %s16, 0
    %p152 = por %p150, %p151
    %p153 = scmp.ne.s32.totalorder %s139, %s140
    %p154 = scmp.eq.s32.totalorder %s17, 1
    %p155 = por %p153, %p154
    %p157 = scmp.ne.s32.totalorder %s140, %s156
    %p158 = scmp.eq.s32.totalorder %s17, 0
    %p159 = por %p157, %p158
    %p160 = scmp.le.s32.totalorder 1, %s11
    %p161 = scmp.lt.s32.totalorder %s11, 3
    %p162 = pnand %p160, %p161
    %p163 = pneg %p162
    // Predicated region
    $region9: #{basic_block_forward.3} parent=5 // pred_check
      _
    $region10: #{basic_block_forward.3} parent=5 // pred_check_branch
      %165 = sbr.rel (%p162) target = $region12
    $region11: #{basic_block_forward.3} parent=5 // pred_region
      %s166 = ssub.s32 %s11, 1
      // Predicated region
      $region13: #{basic_block_forward.3} parent=11 // pred_check
        %p167 = pneg %p58
      $region14: #{basic_block_forward.3} parent=11 // pred_check_branch
        %169 = sbr.rel (%p167) target = $region16
      $region15: #{basic_block_forward.3} parent=11 // pred_region
        _
      $region16: #{basic_block_forward.3} parent=11 // pred_fallthru
        _
      // Predicated region
      $region17: #{basic_block_forward.3} parent=11 // pred_check
        %p170 = pneg %p79
      $region18: #{basic_block_forward.3} parent=11 // pred_check_branch
        %172 = sbr.rel (%p170) target = $region20
      $region19: #{basic_block_forward.3} parent=11 // pred_region
        _
      $region20: #{basic_block_forward.3} parent=11 // pred_fallthru
        _
      // Predicated region
      $region21: #{basic_block_forward.3} parent=11 // pred_check
        %p173 = pneg %p126
      $region22: #{basic_block_forward.3} parent=11 // pred_check_branch
        %175 = sbr.rel (%p173) target = $region24
      $region23: #{basic_block_forward.3} parent=11 // pred_region
        _
      $region24: #{basic_block_forward.3} parent=11 // pred_fallthru
        _
    $region12: #{basic_block_forward.3} parent=5 // pred_fallthru
      _
    %p176 = scmp.lt.s32.totalorder %s11, 2
    // Predicated region
    $region25: #{basic_block_forward.3} parent=5 // pred_check
      %p177 = pneg %p176
    $region26: #{basic_block_forward.3} parent=5 // pred_check_branch
      %179 = sbr.rel (%p177) target = $region28
    $region27: #{basic_block_forward.3} parent=5 // pred_region
      // Predicated region
      $region29: #{basic_block_forward.3} parent=27 // pred_check
        %p180 = pneg %p31
      $region30: #{basic_block_forward.3} parent=27 // pred_check_branch
        %182 = sbr.rel (%p180) target = $region32
      $region31: #{basic_block_forward.3} parent=27 // pred_region
        %p183 = scmp.lt.s32.totalorder %s11, 1
        %s184 = scalar_select %p183, %s11, 1
        %s185 = smul.addr %s184, 14
        %s186 = smul.addr %s185, 4
        %s187 = scalar_lea.vmem %s0, %s186
      $region32: #{basic_block_forward.3} parent=27 // pred_fallthru
        _
      // Predicated region
      $region33: #{basic_block_forward.3} parent=27 // pred_check
        %p188 = pneg %p99
      $region34: #{basic_block_forward.3} parent=27 // pred_check_branch
        %190 = sbr.rel (%p188) target = $region36
      $region35: #{basic_block_forward.3} parent=27 // pred_region
        %p191 = scmp.lt.s32.totalorder %s11, 1
        %s192 = scalar_select %p191, %s11, 1
        %s193 = smul.addr %s192, 10
        %s194 = smul.addr %s193, 4
        %s195 = scalar_lea.vmem %s3, %s194
      $region36: #{basic_block_forward.3} parent=27 // pred_fallthru
        _
    $region28: #{basic_block_forward.3} parent=5 // pred_fallthru
      _
    %p196 = scmp.le.s32.totalorder 1, %s11
    %p197 = scmp.lt.s32.totalorder %s11, 3
    %p198 = pnand %p196, %p197
    %p199 = pneg %p198
    // Predicated region
    $region37: #{basic_block_forward.3} parent=5 // pred_check
      _
    $region38: #{basic_block_forward.3} parent=5 // pred_check_branch
      %201 = sbr.rel (%p198) target = $region40
    $region39: #{basic_block_forward.3} parent=5 // pred_region
      %s202 = ssub.s32 %s11, 1
      %p203 = scmp.lt.s32.totalorder %s16, 1
      %s204 = scalar_select %p203, %s16, 1
      %s205 = smul.addr %s204, 14
      %s206 = smul.addr %s205, 4
      %s207 = scalar_lea.vmem %s0, %s206
      %p208 = pneg %p37
      %p209 = pneg %p34
      %p210 = pneg %p58
      %p211 = pneg %p55
      %p212 = pneg %p79
      %p213 = pneg %p76
      %p214 = scmp.lt.s32.totalorder %s16, 1
      %s215 = scalar_select %p214, %s16, 1
      %s216 = smul.addr %s215, 10
      %s217 = smul.addr %s216, 4
      %s218 = scalar_lea.vmem %s3, %s217
      %p219 = pneg %p105
      %p220 = pneg %p102
      %p221 = pneg %p126
      %p222 = pneg %p123
      %p223 = pneg %p152
      %p224 = pneg %p149
      %p225 = scmp.lt.s32.totalorder %s16, 1
      %s226 = scalar_select %p225, %s16, 1
      %s227 = smul.addr %s226, 10
      %s228 = smul.addr %s227, 4
      %s229 = scalar_lea.vmem %s5, %s228
      %p230 = scmp.lt.s32.totalorder %s16, 1
      %s231 = scalar_select %p230, %s16, 1
      %s232 = smul.addr %s231, 14
      %s233 = smul.addr %s232, 4
      %s234 = scalar_lea.vmem %s0, %s233
      %p235 = scmp.lt.s32.totalorder %s16, 1
      %s236 = scalar_select %p235, %s16, 1
      %s237 = smul.addr %s236, 10
      %s238 = smul.addr %s237, 4
      %s239 = scalar_lea.vmem %s3, %s238
      %p240 = scmp.lt.s32.totalorder %s16, 1
      %s241 = scalar_select %p240, %s16, 1
      %s242 = smul.addr %s241, 10
      %s243 = smul.addr %s242, 4
      %s244 = scalar_lea.vmem %s5, %s243
      %v246 = vld [vmem:[%s234] sm:$0xf]
      %v247 = vld [vmem:[%s234 + $0x4] sm:$0xf]
      %v248 = vld [vmem:[%s234 + $0x8] sm:$0xf]
      %v249 = vld [vmem:[%s234 + $0xc] sm:$0xf]
      %v250 = vld [vmem:[%s234 + $0x10] sm:$0xf]
      %v251 = vld [vmem:[%s234 + $0x14] sm:$0xf]
      %v252 = vld [vmem:[%s234 + $0x18] sm:$0xf]
      %v253 = vld [vmem:[%s234 + $0x1c] sm:$0xf]
      %v254 = vld [vmem:[%s234 + $0x20] sm:$0xf]
      %v255 = vld [vmem:[%s234 + $0x24] sm:$0xf]
      %v266 = vunpack.c.l.b16 %v246
      %v267 = vunpack.c.l.b16 %v247
      %v268 = vunpack.c.l.b16 %v248
      %v269 = vunpack.c.l.b16 %v249
      %v270 = vunpack.c.l.b16 %v250
      %v271 = vunpack.c.l.b16 %v251
      %v272 = vunpack.c.l.b16 %v252
      %v273 = vunpack.c.l.b16 %v253
      %v274 = vunpack.c.l.b16 %v254
      %v275 = vunpack.c.l.b16 %v255
      %v276 = vpack.c.b16 %v267, %v266
      %v277 = vpack.c.b16 %v269, %v268
      %v278 = vpack.c.b16 %v271, %v270
      %v279 = vpack.c.b16 %v273, %v272
      %v280 = vpack.c.b16 %v275, %v274
      %286 = vst [vmem:[#allocation2] sm:$0xff] %v276
      %287 = vst [vmem:[#allocation2 + $0x48] sm:$0xff] %v277
      %288 = vst [vmem:[#allocation2 + $0x90] sm:$0xff] %v278
      %289 = vst [vmem:[#allocation2 + $0xd8] sm:$0xff] %v279
      %290 = vst [vmem:[#allocation2 + $0x120] sm:$0xff] %v280
      %v291 = vld [vmem:[%s234] sm:$0xf]
      %v292 = vld [vmem:[%s234 + $0x4] sm:$0xf]
      %v293 = vld [vmem:[%s234 + $0x8] sm:$0xf]
      %v294 = vld [vmem:[%s234 + $0xc] sm:$0xf]
      %v295 = vld [vmem:[%s234 + $0x10] sm:$0xf]
      %v296 = vld [vmem:[%s234 + $0x14] sm:$0xf]
      %v297 = vld [vmem:[%s234 + $0x18] sm:$0xf]
      %v298 = vld [vmem:[%s234 + $0x1c] sm:$0xf]
      %v299 = vld [vmem:[%s234 + $0x20] sm:$0xf]
      %v300 = vld [vmem:[%s234 + $0x24] sm:$0xf]
      %v301 = vld [vmem:[%s234 + $0x28] sm:$0x1]
      %v313 = vunpack.c.l.b16 %v291
      %v314 = vunpack.c.l.b16 %v292
      %v315 = vunpack.c.l.b16 %v293
      %v316 = vunpack.c.l.b16 %v294
      %v317 = vunpack.c.l.b16 %v295
      %v318 = vunpack.c.l.b16 %v296
      %v319 = vunpack.c.l.b16 %v297
      %v320 = vunpack.c.l.b16 %v298
      %v321 = vunpack.c.l.b16 %v299
      %v322 = vunpack.c.l.b16 %v300
      %v323 = vunpack.c.l.b16 %v301
      %v324 = vpack.c.b16 %v314, %v313
      %v325 = vpack.c.b16 %v316, %v315
      %v326 = vpack.c.b16 %v318, %v317
      %v327 = vpack.c.b16 %v320, %v319
      %v328 = vpack.c.b16 %v322, %v321
      %v329 = vpack.c.b16 %v323, %v323
      %vm330 = vsmask.f32 7424
      %v332 = vshrl.u32 %v324, 16
      %v334 = vshll.u32 %v324, 16
      %v336 = vrot.slane %v334, 1
      %v337 = vor.u32 %v332, %v336
      %v339 = vshll.u32 %v325, 16
      %v341 = vrot.slane %v339, 1
      %v342 = vsel %vm330, %v337, %v341
      %v343 = vshrl.u32 %v325, 16
      %v345 = vor.u32 %v343, %v341
      %v347 = vshll.u32 %v326, 16
      %v349 = vrot.slane %v347, 1
      %v350 = vsel %vm330, %v345, %v349
      %v351 = vshrl.u32 %v326, 16
      %v353 = vor.u32 %v351, %v349
      %v355 = vshll.u32 %v327, 16
      %v357 = vrot.slane %v355, 1
      %v358 = vsel %vm330, %v353, %v357
      %v359 = vshrl.u32 %v327, 16
      %v361 = vor.u32 %v359, %v357
      %v363 = vshll.u32 %v328, 16
      %v365 = vrot.slane %v363, 1
      %v366 = vsel %vm330, %v361, %v365
      %v367 = vshrl.u32 %v328, 16
      %v369 = vor.u32 %v367, %v365
      %v371 = vshll.u32 %v329, 16
      %v373 = vrot.slane %v371, 1
      %v374 = vsel %vm330, %v369, %v373
      %380 = vst [vmem:[#allocation2 + $0x8] sm:$0xff] %v342
      %381 = vst [vmem:[#allocation2 + $0x50] sm:$0xff] %v350
      %382 = vst [vmem:[#allocation2 + $0x98] sm:$0xff] %v358
      %383 = vst [vmem:[#allocation2 + $0xe0] sm:$0xff] %v366
      %384 = vst [vmem:[#allocation2 + $0x128] sm:$0xff] %v374
      %v385 = vld [vmem:[%s234] sm:$0xe]
      %v386 = vld [vmem:[%s234 + $0x4] sm:$0xf]
      %v387 = vld [vmem:[%s234 + $0x8] sm:$0xf]
      %v388 = vld [vmem:[%s234 + $0xc] sm:$0xf]
      %v389 = vld [vmem:[%s234 + $0x10] sm:$0xf]
      %v390 = vld [vmem:[%s234 + $0x14] sm:$0xf]
      %v391 = vld [vmem:[%s234 + $0x18] sm:$0xf]
      %v392 = vld [vmem:[%s234 + $0x1c] sm:$0xf]
      %v393 = vld [vmem:[%s234 + $0x20] sm:$0xf]
      %v394 = vld [vmem:[%s234 + $0x24] sm:$0xf]
      %v395 = vld [vmem:[%s234 + $0x28] sm:$0x1]
      %v407 = vunpack.c.l.b16 %v385
      %v408 = vunpack.c.l.b16 %v386
      %v409 = vunpack.c.l.b16 %v387
      %v410 = vunpack.c.l.b16 %v388
      %v411 = vunpack.c.l.b16 %v389
      %v412 = vunpack.c.l.b16 %v390
      %v413 = vunpack.c.l.b16 %v391
      %v414 = vunpack.c.l.b16 %v392
      %v415 = vunpack.c.l.b16 %v393
      %v416 = vunpack.c.l.b16 %v394
      %v417 = vunpack.c.l.b16 %v395
      %v418 = vpack.c.b16 %v408, %v407
      %v419 = vpack.c.b16 %v410, %v409
      %v420 = vpack.c.b16 %v412, %v411
      %v421 = vpack.c.b16 %v414, %v413
      %v422 = vpack.c.b16 %v416, %v415
      %v423 = vpack.c.b16 %v417, %v417
      %vm424 = vcmask 1046528
      %v425 = vrot.slane %v418, 1
      %v426 = vrot.slane %v419, 1
      %v427 = vsel %vm424, %v425, %v426
      %v428 = vrot.slane %v420, 1
      %v429 = vsel %vm424, %v426, %v428
      %v430 = vrot.slane %v421, 1
      %v431 = vsel %vm424, %v428, %v430
      %v432 = vrot.slane %v422, 1
      %v433 = vsel %vm424, %v430, %v432
      %v434 = vrot.slane %v423, 1
      %v435 = vsel %vm424, %v432, %v434
      %441 = vst [vmem:[#allocation2 + $0x10] sm:$0xff] %v427
      %442 = vst [vmem:[#allocation2 + $0x58] sm:$0xff] %v429
      %443 = vst [vmem:[#allocation2 + $0xa0] sm:$0xff] %v431
      %444 = vst [vmem:[#allocation2 + $0xe8] sm:$0xff] %v433
      %445 = vst [vmem:[#allocation2 + $0x130] sm:$0xff] %v435
      %v446 = vld [vmem:[%s234 + $0x4] sm:$0xe]
      %v447 = vld [vmem:[%s234 + $0x8] sm:$0xf]
      %v448 = vld [vmem:[%s234 + $0xc] sm:$0xf]
      %v449 = vld [vmem:[%s234 + $0x10] sm:$0xf]
      %v450 = vld [vmem:[%s234 + $0x14] sm:$0xf]
      %v451 = vld [vmem:[%s234 + $0x18] sm:$0xf]
      %v452 = vld [vmem:[%s234 + $0x1c] sm:$0xf]
      %v453 = vld [vmem:[%s234 + $0x20] sm:$0xf]
      %v454 = vld [vmem:[%s234 + $0x24] sm:$0xf]
      %v455 = vld [vmem:[%s234 + $0x28] sm:$0xf]
      %v456 = vld [vmem:[%s234 + $0x2c] sm:$0x1]
      %v468 = vunpack.c.l.b16 %v446
      %v469 = vunpack.c.l.b16 %v447
      %v470 = vunpack.c.l.b16 %v448
      %v471 = vunpack.c.l.b16 %v449
      %v472 = vunpack.c.l.b16 %v450
      %v473 = vunpack.c.l.b16 %v451
      %v474 = vunpack.c.l.b16 %v452
      %v475 = vunpack.c.l.b16 %v453
      %v476 = vunpack.c.l.b16 %v454
      %v477 = vunpack.c.l.b16 %v455
      %v478 = vunpack.c.l.b16 %v456
      %v479 = vpack.c.b16 %v469, %v468
      %v480 = vpack.c.b16 %v471, %v470
      %v481 = vpack.c.b16 %v473, %v472
      %v482 = vpack.c.b16 %v475, %v474
      %v483 = vpack.c.b16 %v477, %v476
      %v484 = vpack.c.b16 %v478, %v478
      %v485 = vrot.slane %v479, 1
      %v486 = vrot.slane %v480, 1
      %v487 = vsel %vm424, %v485, %v486
      %v488 = vrot.slane %v481, 1
      %v489 = vsel %vm424, %v486, %v488
      %v490 = vrot.slane %v482, 1
      %v491 = vsel %vm424, %v488, %v490
      %v492 = vrot.slane %v483, 1
      %v493 = vsel %vm424, %v490, %v492
      %v494 = vrot.slane %v484, 1
      %v495 = vsel %vm424, %v492, %v494
      %501 = vst [vmem:[#allocation2 + $0x18] sm:$0xff] %v487
      %502 = vst [vmem:[#allocation2 + $0x60] sm:$0xff] %v489
      %503 = vst [vmem:[#allocation2 + $0xa8] sm:$0xff] %v491
      %504 = vst [vmem:[#allocation2 + $0xf0] sm:$0xff] %v493
      %505 = vst [vmem:[#allocation2 + $0x138] sm:$0xff] %v495
      %v506 = vld [vmem:[%s234 + $0x4] sm:$0xe]
      %v507 = vld [vmem:[%s234 + $0x8] sm:$0xf]
      %v508 = vld [vmem:[%s234 + $0xc] sm:$0xf]
      %v509 = vld [vmem:[%s234 + $0x10] sm:$0xf]
      %v510 = vld [vmem:[%s234 + $0x14] sm:$0xf]
      %v511 = vld [vmem:[%s234 + $0x18] sm:$0xf]
      %v512 = vld [vmem:[%s234 + $0x1c] sm:$0xf]
      %v513 = vld [vmem:[%s234 + $0x20] sm:$0xf]
      %v514 = vld [vmem:[%s234 + $0x24] sm:$0xf]
      %v515 = vld [vmem:[%s234 + $0x28] sm:$0xf]
      %v516 = vld [vmem:[%s234 + $0x2c] sm:$0x3]
      %v528 = vunpack.c.l.b16 %v506
      %v529 = vunpack.c.l.b16 %v507
      %v530 = vunpack.c.l.b16 %v508
      %v531 = vunpack.c.l.b16 %v509
      %v532 = vunpack.c.l.b16 %v510
      %v533 = vunpack.c.l.b16 %v511
      %v534 = vunpack.c.l.b16 %v512
      %v535 = vunpack.c.l.b16 %v513
      %v536 = vunpack.c.l.b16 %v514
      %v537 = vunpack.c.l.b16 %v515
      %v538 = vunpack.c.l.b16 %v516
      %v539 = vpack.c.b16 %v529, %v528
      %v540 = vpack.c.b16 %v531, %v530
      %v541 = vpack.c.b16 %v533, %v532
      %v542 = vpack.c.b16 %v535, %v534
      %v543 = vpack.c.b16 %v537, %v536
      %v544 = vpack.c.b16 %v538, %v538
      %vm545 = vsmask.f32 6400
      %v547 = vshrl.u32 %v539, 16
      %v549 = vrot.slane %v547, 1
      %v550 = vshll.u32 %v539, 16
      %v552 = vrot.slane %v550, 2
      %v553 = vor.u32 %v549, %v552
      %v555 = vshrl.u32 %v540, 16
      %v557 = vrot.slane %v555, 1
      %v558 = vshll.u32 %v540, 16
      %v560 = vrot.slane %v558, 2
      %v561 = vor.u32 %v557, %v560
      %v562 = vsel %vm545, %v553, %v561
      %v564 = vshrl.u32 %v541, 16
      %v566 = vrot.slane %v564, 1
      %v567 = vshll.u32 %v541, 16
      %v569 = vrot.slane %v567, 2
      %v570 = vor.u32 %v566, %v569
      %v571 = vsel %vm545, %v561, %v570
      %v573 = vshrl.u32 %v542, 16
      %v575 = vrot.slane %v573, 1
      %v576 = vshll.u32 %v542, 16
      %v578 = vrot.slane %v576, 2
      %v579 = vor.u32 %v575, %v578
      %v580 = vsel %vm545, %v570, %v579
      %v582 = vshrl.u32 %v543, 16
      %v584 = vrot.slane %v582, 1
      %v585 = vshll.u32 %v543, 16
      %v587 = vrot.slane %v585, 2
      %v588 = vor.u32 %v584, %v587
      %v589 = vsel %vm545, %v579, %v588
      %v591 = vshrl.u32 %v544, 16
      %v593 = vrot.slane %v591, 1
      %v594 = vshll.u32 %v544, 16
      %v596 = vrot.slane %v594, 2
      %v597 = vor.u32 %v593, %v596
      %v598 = vsel %vm545, %v588, %v597
      %604 = vst [vmem:[#allocation2 + $0x20] sm:$0xff] %v562
      %605 = vst [vmem:[#allocation2 + $0x68] sm:$0xff] %v571
      %606 = vst [vmem:[#allocation2 + $0xb0] sm:$0xff] %v580
      %607 = vst [vmem:[#allocation2 + $0xf8] sm:$0xff] %v589
      %608 = vst [vmem:[#allocation2 + $0x140] sm:$0xff] %v598
      %v609 = vld [vmem:[%s234 + $0x4] sm:$0xc]
      %v610 = vld [vmem:[%s234 + $0x8] sm:$0xf]
      %v611 = vld [vmem:[%s234 + $0xc] sm:$0xf]
      %v612 = vld [vmem:[%s234 + $0x10] sm:$0xf]
      %v613 = vld [vmem:[%s234 + $0x14] sm:$0xf]
      %v614 = vld [vmem:[%s234 + $0x18] sm:$0xf]
      %v615 = vld [vmem:[%s234 + $0x1c] sm:$0xf]
      %v616 = vld [vmem:[%s234 + $0x20] sm:$0xf]
      %v617 = vld [vmem:[%s234 + $0x24] sm:$0xf]
      %v618 = vld [vmem:[%s234 + $0x28] sm:$0xf]
      %v619 = vld [vmem:[%s234 + $0x2c] sm:$0x3]
      %v631 = vunpack.c.l.b16 %v609
      %v632 = vunpack.c.l.b16 %v610
      %v633 = vunpack.c.l.b16 %v611
      %v634 = vunpack.c.l.b16 %v612
      %v635 = vunpack.c.l.b16 %v613
      %v636 = vunpack.c.l.b16 %v614
      %v637 = vunpack.c.l.b16 %v615
      %v638 = vunpack.c.l.b16 %v616
      %v639 = vunpack.c.l.b16 %v617
      %v640 = vunpack.c.l.b16 %v618
      %v641 = vunpack.c.l.b16 %v619
      %v642 = vpack.c.b16 %v632, %v631
      %v643 = vpack.c.b16 %v634, %v633
      %v644 = vpack.c.b16 %v636, %v635
      %v645 = vpack.c.b16 %v638, %v637
      %v646 = vpack.c.b16 %v640, %v639
      %v647 = vpack.c.b16 %v641, %v641
      %vm648 = vcmask 1045504
      %v649 = vrot.slane %v642, 2
      %v650 = vrot.slane %v643, 2
      %v651 = vsel %vm648, %v649, %v650
      %v652 = vrot.slane %v644, 2
      %v653 = vsel %vm648, %v650, %v652
      %v654 = vrot.slane %v645, 2
      %v655 = vsel %vm648, %v652, %v654
      %v656 = vrot.slane %v646, 2
      %v657 = vsel %vm648, %v654, %v656
      %v658 = vrot.slane %v647, 2
      %v659 = vsel %vm648, %v656, %v658
      %665 = vst [vmem:[#allocation2 + $0x28] sm:$0xff] %v651
      %666 = vst [vmem:[#allocation2 + $0x70] sm:$0xff] %v653
      %667 = vst [vmem:[#allocation2 + $0xb8] sm:$0xff] %v655
      %668 = vst [vmem:[#allocation2 + $0x100] sm:$0xff] %v657
      %669 = vst [vmem:[#allocation2 + $0x148] sm:$0xff] %v659
      %v670 = vld [vmem:[%s234 + $0x8] sm:$0xc]
      %v671 = vld [vmem:[%s234 + $0xc] sm:$0xf]
      %v672 = vld [vmem:[%s234 + $0x10] sm:$0xf]
      %v673 = vld [vmem:[%s234 + $0x14] sm:$0xf]
      %v674 = vld [vmem:[%s234 + $0x18] sm:$0xf]
      %v675 = vld [vmem:[%s234 + $0x1c] sm:$0xf]
      %v676 = vld [vmem:[%s234 + $0x20] sm:$0xf]
      %v677 = vld [vmem:[%s234 + $0x24] sm:$0xf]
      %v678 = vld [vmem:[%s234 + $0x28] sm:$0xf]
      %v679 = vld [vmem:[%s234 + $0x2c] sm:$0xf]
      %v680 = vld [vmem:[%s234 + $0x30] sm:$0x3]
      %v692 = vunpack.c.l.b16 %v670
      %v693 = vunpack.c.l.b16 %v671
      %v694 = vunpack.c.l.b16 %v672
      %v695 = vunpack.c.l.b16 %v673
      %v696 = vunpack.c.l.b16 %v674
      %v697 = vunpack.c.l.b16 %v675
      %v698 = vunpack.c.l.b16 %v676
      %v699 = vunpack.c.l.b16 %v677
      %v700 = vunpack.c.l.b16 %v678
      %v701 = vunpack.c.l.b16 %v679
      %v702 = vunpack.c.l.b16 %v680
      %v703 = vpack.c.b16 %v693, %v692
      %v704 = vpack.c.b16 %v695, %v694
      %v705 = vpack.c.b16 %v697, %v696
      %v706 = vpack.c.b16 %v699, %v698
      %v707 = vpack.c.b16 %v701, %v700
      %v708 = vpack.c.b16 %v702, %v702
      %v709 = vrot.slane %v703, 2
      %v710 = vrot.slane %v704, 2
      %v711 = vsel %vm648, %v709, %v710
      %v712 = vrot.slane %v705, 2
      %v713 = vsel %vm648, %v710, %v712
      %v714 = vrot.slane %v706, 2
      %v715 = vsel %vm648, %v712, %v714
      %v716 = vrot.slane %v707, 2
      %v717 = vsel %vm648, %v714, %v716
      %v718 = vrot.slane %v708, 2
      %v719 = vsel %vm648, %v716, %v718
      %725 = vst [vmem:[#allocation2 + $0x30] sm:$0xff] %v711
      %726 = vst [vmem:[#allocation2 + $0x78] sm:$0xff] %v713
      %727 = vst [vmem:[#allocation2 + $0xc0] sm:$0xff] %v715
      %728 = vst [vmem:[#allocation2 + $0x108] sm:$0xff] %v717
      %729 = vst [vmem:[#allocation2 + $0x150] sm:$0xff] %v719
      %v730 = vld [vmem:[%s234 + $0x8] sm:$0xc]
      %v731 = vld [vmem:[%s234 + $0xc] sm:$0xf]
      %v732 = vld [vmem:[%s234 + $0x10] sm:$0xf]
      %v733 = vld [vmem:[%s234 + $0x14] sm:$0xf]
      %v734 = vld [vmem:[%s234 + $0x18] sm:$0xf]
      %v735 = vld [vmem:[%s234 + $0x1c] sm:$0xf]
      %v736 = vld [vmem:[%s234 + $0x20] sm:$0xf]
      %v737 = vld [vmem:[%s234 + $0x24] sm:$0xf]
      %v738 = vld [vmem:[%s234 + $0x28] sm:$0xf]
      %v739 = vld [vmem:[%s234 + $0x2c] sm:$0xf]
      %v740 = vld [vmem:[%s234 + $0x30] sm:$0x7]
      %v752 = vunpack.c.l.b16 %v730
      %v753 = vunpack.c.l.b16 %v731
      %v754 = vunpack.c.l.b16 %v732
      %v755 = vunpack.c.l.b16 %v733
      %v756 = vunpack.c.l.b16 %v734
      %v757 = vunpack.c.l.b16 %v735
      %v758 = vunpack.c.l.b16 %v736
      %v759 = vunpack.c.l.b16 %v737
      %v760 = vunpack.c.l.b16 %v738
      %v761 = vunpack.c.l.b16 %v739
      %v762 = vunpack.c.l.b16 %v740
      %v763 = vpack.c.b16 %v753, %v752
      %v764 = vpack.c.b16 %v755, %v754
      %v765 = vpack.c.b16 %v757, %v756
      %v766 = vpack.c.b16 %v759, %v758
      %v767 = vpack.c.b16 %v761, %v760
      %v768 = vpack.c.b16 %v762, %v762
      %vm769 = vsmask.f32 5376
      %v771 = vshrl.u32 %v763, 16
      %v773 = vrot.slane %v771, 2
      %v774 = vshll.u32 %v763, 16
      %v776 = vrot.slane %v774, 3
      %v777 = vor.u32 %v773, %v776
      %v779 = vshrl.u32 %v764, 16
      %v781 = vrot.slane %v779, 2
      %v782 = vshll.u32 %v764, 16
      %v784 = vrot.slane %v782, 3
      %v785 = vor.u32 %v781, %v784
      %v786 = vsel %vm769, %v777, %v785
      %v788 = vshrl.u32 %v765, 16
      %v790 = vrot.slane %v788, 2
      %v791 = vshll.u32 %v765, 16
      %v793 = vrot.slane %v791, 3
      %v794 = vor.u32 %v790, %v793
      %v795 = vsel %vm769, %v785, %v794
      %v797 = vshrl.u32 %v766, 16
      %v799 = vrot.slane %v797, 2
      %v800 = vshll.u32 %v766, 16
      %v802 = vrot.slane %v800, 3
      %v803 = vor.u32 %v799, %v802
      %v804 = vsel %vm769, %v794, %v803
      %v806 = vshrl.u32 %v767, 16
      %v808 = vrot.slane %v806, 2
      %v809 = vshll.u32 %v767, 16
      %v811 = vrot.slane %v809, 3
      %v812 = vor.u32 %v808, %v811
      %v813 = vsel %vm769, %v803, %v812
      %v815 = vshrl.u32 %v768, 16
      %v817 = vrot.slane %v815, 2
      %v818 = vshll.u32 %v768, 16
      %v820 = vrot.slane %v818, 3
      %v821 = vor.u32 %v817, %v820
      %v822 = vsel %vm769, %v812, %v821
      %828 = vst [vmem:[#allocation2 + $0x38] sm:$0xff] %v786
      %829 = vst [vmem:[#allocation2 + $0x80] sm:$0xff] %v795
      %830 = vst [vmem:[#allocation2 + $0xc8] sm:$0xff] %v804
      %831 = vst [vmem:[#allocation2 + $0x110] sm:$0xff] %v813
      %832 = vst [vmem:[#allocation2 + $0x158] sm:$0xff] %v822
      %v833 = vld [vmem:[%s234 + $0x8] sm:$0x8]
      %v834 = vld [vmem:[%s234 + $0xc] sm:$0xf]
      %v835 = vld [vmem:[%s234 + $0x10] sm:$0xf]
      %v836 = vld [vmem:[%s234 + $0x14] sm:$0xf]
      %v837 = vld [vmem:[%s234 + $0x18] sm:$0xf]
      %v838 = vld [vmem:[%s234 + $0x1c] sm:$0xf]
      %v839 = vld [vmem:[%s234 + $0x20] sm:$0xf]
      %v840 = vld [vmem:[%s234 + $0x24] sm:$0xf]
      %v841 = vld [vmem:[%s234 + $0x28] sm:$0xf]
      %v842 = vld [vmem:[%s234 + $0x2c] sm:$0xf]
      %v843 = vld [vmem:[%s234 + $0x30] sm:$0x7]
      %v855 = vunpack.c.l.b16 %v833
      %v856 = vunpack.c.l.b16 %v834
      %v857 = vunpack.c.l.b16 %v835
      %v858 = vunpack.c.l.b16 %v836
      %v859 = vunpack.c.l.b16 %v837
      %v860 = vunpack.c.l.b16 %v838
      %v861 = vunpack.c.l.b16 %v839
      %v862 = vunpack.c.l.b16 %v840
      %v863 = vunpack.c.l.b16 %v841
      %v864 = vunpack.c.l.b16 %v842
      %v865 = vunpack.c.l.b16 %v843
      %v866 = vpack.c.b16 %v856, %v855
      %v867 = vpack.c.b16 %v858, %v857
      %v868 = vpack.c.b16 %v860, %v859
      %v869 = vpack.c.b16 %v862, %v861
      %v870 = vpack.c.b16 %v864, %v863
      %v871 = vpack.c.b16 %v865, %v865
      %vm872 = vcmask 1044480
      %v873 = vrot.slane %v866, 3
      %v874 = vrot.slane %v867, 3
      %v875 = vsel %vm872, %v873, %v874
      %v876 = vrot.slane %v868, 3
      %v877 = vsel %vm872, %v874, %v876
      %v878 = vrot.slane %v869, 3
      %v879 = vsel %vm872, %v876, %v878
      %v880 = vrot.slane %v870, 3
      %v881 = vsel %vm872, %v878, %v880
      %v882 = vrot.slane %v871, 3
      %v883 = vsel %vm872, %v880, %v882
      %889 = vst [vmem:[#allocation2 + $0x40] sm:$0xff] %v875
      %890 = vst [vmem:[#allocation2 + $0x88] sm:$0xff] %v877
      %891 = vst [vmem:[#allocation2 + $0xd0] sm:$0xff] %v879
      %892 = vst [vmem:[#allocation2 + $0x118] sm:$0xff] %v881
      %893 = vst [vmem:[#allocation2 + $0x160] sm:$0xff] %v883
      %v894 = vld [vmem:[#allocation2] sm:$0xff]
      %v895 = vld [vmem:[#allocation2 + $0x8] sm:$0xff]
      %v896 = vld [vmem:[#allocation2 + $0x10] sm:$0xff]
      %v897 = vld [vmem:[#allocation2 + $0x18] sm:$0xff]
      %v898 = vld [vmem:[#allocation2 + $0x20] sm:$0xff]
      %v899 = vld [vmem:[#allocation2 + $0x28] sm:$0xff]
      %v900 = vld [vmem:[#allocation2 + $0x30] sm:$0xff]
      %v901 = vld [vmem:[#allocation2 + $0x38] sm:$0xff]
      %v902 = vld [vmem:[#allocation2 + $0x40] sm:$0xff]
      %v903 = vld [vmem:[#allocation2 + $0x48] sm:$0xff]
      %v904 = vld [vmem:[#allocation2 + $0x50] sm:$0xff]
      %v905 = vld [vmem:[#allocation2 + $0x58] sm:$0xff]
      %v906 = vld [vmem:[#allocation2 + $0x60] sm:$0xff]
      %v907 = vld [vmem:[#allocation2 + $0x68] sm:$0xff]
      %v908 = vld [vmem:[#allocation2 + $0x70] sm:$0xff]
      %v909 = vld [vmem:[#allocation2 + $0x78] sm:$0xff]
      %v910 = vld [vmem:[#allocation2 + $0x80] sm:$0xff]
      %v911 = vld [vmem:[#allocation2 + $0x88] sm:$0xff]
      %v912 = vld [vmem:[#allocation2 + $0x90] sm:$0xff]
      %v913 = vld [vmem:[#allocation2 + $0x98] sm:$0xff]
      %v914 = vld [vmem:[#allocation2 + $0xa0] sm:$0xff]
      %v915 = vld [vmem:[#allocation2 + $0xa8] sm:$0xff]
      %v916 = vld [vmem:[#allocation2 + $0xb0] sm:$0xff]
      %v917 = vld [vmem:[#allocation2 + $0xb8] sm:$0xff]
      %v918 = vld [vmem:[#allocation2 + $0xc0] sm:$0xff]
      %v919 = vld [vmem:[#allocation2 + $0xc8] sm:$0xff]
      %v920 = vld [vmem:[#allocation2 + $0xd0] sm:$0xff]
      %v921 = vld [vmem:[#allocation2 + $0xd8] sm:$0xff]
      %v922 = vld [vmem:[#allocation2 + $0xe0] sm:$0xff]
      %v923 = vld [vmem:[#allocation2 + $0xe8] sm:$0xff]
      %v924 = vld [vmem:[#allocation2 + $0xf0] sm:$0xff]
      %v925 = vld [vmem:[#allocation2 + $0xf8] sm:$0xff]
      %v926 = vld [vmem:[#allocation2 + $0x100] sm:$0xff]
      %v927 = vld [vmem:[#allocation2 + $0x108] sm:$0xff]
      %v928 = vld [vmem:[#allocation2 + $0x110] sm:$0xff]
      %v929 = vld [vmem:[#allocation2 + $0x118] sm:$0xff]
      %v930 = vld [vmem:[#allocation2 + $0x120] sm:$0xff]
      %v931 = vld [vmem:[#allocation2 + $0x128] sm:$0xff]
      %v932 = vld [vmem:[#allocation2 + $0x130] sm:$0xff]
      %v933 = vld [vmem:[#allocation2 + $0x138] sm:$0xff]
      %v934 = vld [vmem:[#allocation2 + $0x140] sm:$0xff]
      %v935 = vld [vmem:[#allocation2 + $0x148] sm:$0xff]
      %v936 = vld [vmem:[#allocation2 + $0x150] sm:$0xff]
      %v937 = vld [vmem:[#allocation2 + $0x158] sm:$0xff]
      %v938 = vld [vmem:[#allocation2 + $0x160] sm:$0xff]
      %v939 = vld [vmem:[%s1] sm:$0xf]
      %v940 = vld [vmem:[%s1 + $0x4] sm:$0xf]
      %v941 = vld [vmem:[%s1 + $0x8] sm:$0xf]
      %v942 = vld [vmem:[%s1 + $0xc] sm:$0xf]
      %v943 = vld [vmem:[%s1 + $0x10] sm:$0xf]
      %v944 = vld [vmem:[%s1 + $0x14] sm:$0xf]
      %v945 = vld [vmem:[%s1 + $0x18] sm:$0xf]
      %v946 = vld [vmem:[%s1 + $0x1c] sm:$0xf]
      %v947 = vld [vmem:[%s1 + $0x20] sm:$0xf]
      %v948 = vld [vmem:[%s1 + $0x24] sm:$0xf]
      %v949 = vld [vmem:[%s1 + $0x28] sm:$0xf]
      %v950 = vld [vmem:[%s1 + $0x2c] sm:$0xf]
      %v951 = vld [vmem:[%s1 + $0x30] sm:$0xf]
      %v952 = vld [vmem:[%s1 + $0x34] sm:$0xf]
      %v953 = vld [vmem:[%s1 + $0x38] sm:$0xf]
      %v954 = vld [vmem:[%s1 + $0x3c] sm:$0xf]
      %v955 = vld [vmem:[%s1 + $0x40] sm:$0xf]
      %v956 = vld [vmem:[%s1 + $0x44] sm:$0xf]
      %v957 = vld [vmem:[%s1 + $0x48] sm:$0xf]
      %v958 = vld [vmem:[%s1 + $0x4c] sm:$0xf]
      %v959 = vld [vmem:[%s1 + $0x50] sm:$0xf]
      %v960 = vld [vmem:[%s1 + $0x54] sm:$0xf]
      %v961 = vld [vmem:[%s1 + $0x58] sm:$0xf]
      %v962 = vld [vmem:[%s1 + $0x5c] sm:$0xf]
      %v963 = vld [vmem:[%s1 + $0x60] sm:$0xf]
      %v964 = vld [vmem:[%s1 + $0x64] sm:$0xf]
      %v965 = vld [vmem:[%s1 + $0x68] sm:$0xf]
      %v966 = vld [vmem:[%s1 + $0x6c] sm:$0xf]
      %v967 = vld [vmem:[%s1 + $0x70] sm:$0xf]
      %v968 = vld [vmem:[%s1 + $0x74] sm:$0xf]
      %v969 = vld [vmem:[%s1 + $0x78] sm:$0xf]
      %v970 = vld [vmem:[%s1 + $0x7c] sm:$0xf]
      %v971 = vld [vmem:[%s1 + $0x80] sm:$0xf]
      %v972 = vld [vmem:[%s1 + $0x84] sm:$0xf]
      %v973 = vld [vmem:[%s1 + $0x88] sm:$0xf]
      %v974 = vld [vmem:[%s1 + $0x8c] sm:$0xf]
      %v975 = vld [vmem:[%s1 + $0x90] sm:$0xf]
      %v976 = vld [vmem:[%s1 + $0x94] sm:$0xf]
      %v977 = vld [vmem:[%s1 + $0x98] sm:$0xf]
      %v978 = vld [vmem:[%s1 + $0x9c] sm:$0xf]
      %v979 = vld [vmem:[%s1 + $0xa0] sm:$0xf]
      %v980 = vld [vmem:[%s1 + $0xa4] sm:$0xf]
      %v981 = vld [vmem:[%s1 + $0xa8] sm:$0xf]
      %v982 = vld [vmem:[%s1 + $0xac] sm:$0xf]
      %v983 = vld [vmem:[%s1 + $0xb0] sm:$0xf]
      %v984 = vld [vmem:[%s1 + $0xb4] sm:$0xf]
      %v985 = vld [vmem:[%s1 + $0xb8] sm:$0xf]
      %v986 = vld [vmem:[%s1 + $0xbc] sm:$0xf]
      %v987 = vld [vmem:[%s1 + $0xc0] sm:$0xf]
      %v988 = vld [vmem:[%s1 + $0xc4] sm:$0xf]
      %v989 = vld [vmem:[%s1 + $0xc8] sm:$0xf]
      %v990 = vld [vmem:[%s1 + $0xcc] sm:$0xf]
      %v991 = vld [vmem:[%s1 + $0xd0] sm:$0xf]
      %v992 = vld [vmem:[%s1 + $0xd4] sm:$0xf]
      %v993 = vld [vmem:[%s1 + $0xd8] sm:$0xf]
      %v994 = vld [vmem:[%s1 + $0xdc] sm:$0xf]
      %v995 = vld [vmem:[%s1 + $0xe0] sm:$0xf]
      %v996 = vld [vmem:[%s1 + $0xe4] sm:$0xf]
      %v997 = vld [vmem:[%s1 + $0xe8] sm:$0xf]
      %v998 = vld [vmem:[%s1 + $0xec] sm:$0xf]
      %v999 = vld [vmem:[%s1 + $0xf0] sm:$0xf]
      %v1000 = vld [vmem:[%s1 + $0xf4] sm:$0xf]
      %v1001 = vld [vmem:[%s1 + $0xf8] sm:$0xf]
      %v1002 = vld [vmem:[%s1 + $0xfc] sm:$0xf]
      %v1003 = vld [vmem:[%s1 + $0x100] sm:$0xf]
      %v1004 = vld [vmem:[%s1 + $0x104] sm:$0xf]
      %v1005 = vld [vmem:[%s1 + $0x108] sm:$0xf]
      %v1006 = vld [vmem:[%s1 + $0x10c] sm:$0xf]
      %v1007 = vld [vmem:[%s1 + $0x110] sm:$0xf]
      %v1008 = vld [vmem:[%s1 + $0x114] sm:$0xf]
      %v1009 = vld [vmem:[%s1 + $0x118] sm:$0xf]
      %v1010 = vld [vmem:[%s1 + $0x11c] sm:$0xf]
      %v1011 = vld [vmem:[%s1 + $0x120] sm:$0xf]
      %v1012 = vld [vmem:[%s1 + $0x124] sm:$0xf]
      %v1013 = vld [vmem:[%s1 + $0x128] sm:$0xf]
      %v1014 = vld [vmem:[%s1 + $0x12c] sm:$0xf]
      %v1015 = vld [vmem:[%s1 + $0x130] sm:$0xf]
      %v1016 = vld [vmem:[%s1 + $0x134] sm:$0xf]
      %v1017 = vld [vmem:[%s1 + $0x138] sm:$0xf]
      %v1018 = vld [vmem:[%s1 + $0x13c] sm:$0xf]
      %v1019 = vld [vmem:[%s1 + $0x140] sm:$0xf]
      %v1020 = vld [vmem:[%s1 + $0x144] sm:$0xf]
      %v1021 = vld [vmem:[%s1 + $0x148] sm:$0xf]
      %v1022 = vld [vmem:[%s1 + $0x14c] sm:$0xf]
      %v1023 = vld [vmem:[%s1 + $0x150] sm:$0xf]
      %v1024 = vld [vmem:[%s1 + $0x154] sm:$0xf]
      %v1025 = vld [vmem:[%s1 + $0x158] sm:$0xf]
      %v1026 = vld [vmem:[%s1 + $0x15c] sm:$0xf]
      %v1027 = vld [vmem:[%s1 + $0x160] sm:$0xf]
      %v1028 = vld [vmem:[%s1 + $0x164] sm:$0xf]
      %v1029 = vld [vmem:[%s1 + $0x168] sm:$0xf]
      %v1030 = vld [vmem:[%s1 + $0x16c] sm:$0xf]
      %v1031 = vld [vmem:[%s1 + $0x170] sm:$0xf]
      %v1032 = vld [vmem:[%s1 + $0x174] sm:$0xf]
      %v1033 = vld [vmem:[%s1 + $0x178] sm:$0xf]
      %v1034 = vld [vmem:[%s1 + $0x17c] sm:$0xf]
      %v1035 = vld [vmem:[%s1 + $0x180] sm:$0xf]
      %v1036 = vld [vmem:[%s1 + $0x184] sm:$0xf]
      %v1037 = vld [vmem:[%s1 + $0x188] sm:$0xf]
      %v1038 = vld [vmem:[%s1 + $0x18c] sm:$0xf]
      %v1039 = vld [vmem:[%s1 + $0x190] sm:$0xf]
      %v1040 = vld [vmem:[%s1 + $0x194] sm:$0xf]
      %v1041 = vld [vmem:[%s1 + $0x198] sm:$0xf]
      %v1042 = vld [vmem:[%s1 + $0x19c] sm:$0xf]
      %v1043 = vld [vmem:[%s1 + $0x1a0] sm:$0xf]
      %v1044 = vld [vmem:[%s1 + $0x1a4] sm:$0xf]
      %v1045 = vld [vmem:[%s1 + $0x1a8] sm:$0xf]
      %v1046 = vld [vmem:[%s1 + $0x1ac] sm:$0xf]
      %v1047 = vld [vmem:[%s1 + $0x1b0] sm:$0xf]
      %v1048 = vld [vmem:[%s1 + $0x1b4] sm:$0xf]
      %v1049 = vld [vmem:[%s1 + $0x1b8] sm:$0xf]
      %v1050 = vld [vmem:[%s1 + $0x1bc] sm:$0xf]
      %v1051 = vld [vmem:[%s1 + $0x1c0] sm:$0xf]
      %v1052 = vld [vmem:[%s1 + $0x1c4] sm:$0xf]
      %v1053 = vld [vmem:[%s1 + $0x1c8] sm:$0xf]
      %v1054 = vld [vmem:[%s1 + $0x1cc] sm:$0xf]
      %v1055 = vld [vmem:[%s1 + $0x1d0] sm:$0xf]
      %v1056 = vld [vmem:[%s1 + $0x1d4] sm:$0xf]
      %v1057 = vld [vmem:[%s1 + $0x1d8] sm:$0xf]
      %v1058 = vld [vmem:[%s1 + $0x1dc] sm:$0xf]
      %v1059 = vld [vmem:[%s1 + $0x1e0] sm:$0xf]
      %v1060 = vld [vmem:[%s1 + $0x1e4] sm:$0xf]
      %v1061 = vld [vmem:[%s1 + $0x1e8] sm:$0xf]
      %v1062 = vld [vmem:[%s1 + $0x1ec] sm:$0xf]
      %v1063 = vld [vmem:[%s1 + $0x1f0] sm:$0xf]
      %v1064 = vld [vmem:[%s1 + $0x1f4] sm:$0xf]
      %v1065 = vld [vmem:[%s1 + $0x1f8] sm:$0xf]
      %v1066 = vld [vmem:[%s1 + $0x1fc] sm:$0xf]
      %v1067 = vld [vmem:[%s1 + $0x200] sm:$0xf]
      %v1068 = vld [vmem:[%s1 + $0x204] sm:$0xf]
      %v1069 = vld [vmem:[%s1 + $0x208] sm:$0xf]
      %v1070 = vld [vmem:[%s1 + $0x20c] sm:$0xf]
      %v1071 = vld [vmem:[%s1 + $0x210] sm:$0xf]
      %v1072 = vld [vmem:[%s1 + $0x214] sm:$0xf]
      %v1073 = vld [vmem:[%s1 + $0x218] sm:$0xf]
      %v1074 = vld [vmem:[%s1 + $0x21c] sm:$0xf]
      %v1075 = vld [vmem:[%s1 + $0x220] sm:$0xf]
      %v1076 = vld [vmem:[%s1 + $0x224] sm:$0xf]
      %v1077 = vld [vmem:[%s1 + $0x228] sm:$0xf]
      %v1078 = vld [vmem:[%s1 + $0x22c] sm:$0xf]
      %v1079 = vld [vmem:[%s1 + $0x230] sm:$0xf]
      %v1080 = vld [vmem:[%s1 + $0x234] sm:$0xf]
      %v1081 = vld [vmem:[%s1 + $0x238] sm:$0xf]
      %v1082 = vld [vmem:[%s1 + $0x23c] sm:$0xf]
      %v1083 = vld [vmem:[%s2] sm:$0x1]
      %v1085 = vlaneseq
      %v1086 = vshrl.u32 %v1085, 7
      %v1087 = vsub.s32 0, %v1086
      %v1088 = vrot.slane %v1083, %v1087
      %v1234 = vunpack.c.l.b16 %v939
      %v1235 = vunpack.c.l.b16 %v940
      %v1236 = vunpack.c.l.b16 %v941
      %v1237 = vunpack.c.l.b16 %v942
      %v1238 = vunpack.c.l.b16 %v943
      %v1239 = vunpack.c.l.b16 %v944
      %v1240 = vunpack.c.l.b16 %v945
      %v1241 = vunpack.c.l.b16 %v946
      %v1242 = vunpack.c.l.b16 %v947
      %v1243 = vunpack.c.l.b16 %v948
      %v1244 = vunpack.c.l.b16 %v949
      %v1245 = vunpack.c.l.b16 %v950
      %v1246 = vunpack.c.l.b16 %v951
      %v1247 = vunpack.c.l.b16 %v952
      %v1248 = vunpack.c.l.b16 %v953
      %v1249 = vunpack.c.l.b16 %v954
      %v1250 = vunpack.c.l.b16 %v955
      %v1251 = vunpack.c.l.b16 %v956
      %v1252 = vunpack.c.l.b16 %v957
      %v1253 = vunpack.c.l.b16 %v958
      %v1254 = vunpack.c.l.b16 %v959
      %v1255 = vunpack.c.l.b16 %v960
      %v1256 = vunpack.c.l.b16 %v961
      %v1257 = vunpack.c.l.b16 %v962
      %v1258 = vunpack.c.l.b16 %v963
      %v1259 = vunpack.c.l.b16 %v964
      %v1260 = vunpack.c.l.b16 %v965
      %v1261 = vunpack.c.l.b16 %v966
      %v1262 = vunpack.c.l.b16 %v967
      %v1263 = vunpack.c.l.b16 %v968
      %v1264 = vunpack.c.l.b16 %v969
      %v1265 = vunpack.c.l.b16 %v970
      %v1266 = vunpack.c.l.b16 %v971
      %v1267 = vunpack.c.l.b16 %v972
      %v1268 = vunpack.c.l.b16 %v973
      %v1269 = vunpack.c.l.b16 %v974
      %v1270 = vunpack.c.l.b16 %v975
      %v1271 = vunpack.c.l.b16 %v976
      %v1272 = vunpack.c.l.b16 %v977
      %v1273 = vunpack.c.l.b16 %v978
      %v1274 = vunpack.c.l.b16 %v979
      %v1275 = vunpack.c.l.b16 %v980
      %v1276 = vunpack.c.l.b16 %v981
      %v1277 = vunpack.c.l.b16 %v982
      %v1278 = vunpack.c.l.b16 %v983
      %v1279 = vunpack.c.l.b16 %v984
      %v1280 = vunpack.c.l.b16 %v985
      %v1281 = vunpack.c.l.b16 %v986
      %v1282 = vunpack.c.l.b16 %v987
      %v1283 = vunpack.c.l.b16 %v988
      %v1284 = vunpack.c.l.b16 %v989
      %v1285 = vunpack.c.l.b16 %v990
      %v1286 = vunpack.c.l.b16 %v991
      %v1287 = vunpack.c.l.b16 %v992
      %v1288 = vunpack.c.l.b16 %v993
      %v1289 = vunpack.c.l.b16 %v994
      %v1290 = vunpack.c.l.b16 %v995
      %v1291 = vunpack.c.l.b16 %v996
      %v1292 = vunpack.c.l.b16 %v997
      %v1293 = vunpack.c.l.b16 %v998
      %v1294 = vunpack.c.l.b16 %v999
      %v1295 = vunpack.c.l.b16 %v1000
      %v1296 = vunpack.c.l.b16 %v1001
      %v1297 = vunpack.c.l.b16 %v1002
      %v1298 = vunpack.c.l.b16 %v1003
      %v1299 = vunpack.c.l.b16 %v1004
      %v1300 = vunpack.c.l.b16 %v1005
      %v1301 = vunpack.c.l.b16 %v1006
      %v1302 = vunpack.c.l.b16 %v1007
      %v1303 = vunpack.c.l.b16 %v1008
      %v1304 = vunpack.c.l.b16 %v1009
      %v1305 = vunpack.c.l.b16 %v1010
      %v1306 = vunpack.c.l.b16 %v1011
      %v1307 = vunpack.c.l.b16 %v1012
      %v1308 = vunpack.c.l.b16 %v1013
      %v1309 = vunpack.c.l.b16 %v1014
      %v1310 = vunpack.c.l.b16 %v1015
      %v1311 = vunpack.c.l.b16 %v1016
      %v1312 = vunpack.c.l.b16 %v1017
      %v1313 = vunpack.c.l.b16 %v1018
      %v1314 = vunpack.c.l.b16 %v1019
      %v1315 = vunpack.c.l.b16 %v1020
      %v1316 = vunpack.c.l.b16 %v1021
      %v1317 = vunpack.c.l.b16 %v1022
      %v1318 = vunpack.c.l.b16 %v1023
      %v1319 = vunpack.c.l.b16 %v1024
      %v1320 = vunpack.c.l.b16 %v1025
      %v1321 = vunpack.c.l.b16 %v1026
      %v1322 = vunpack.c.l.b16 %v1027
      %v1323 = vunpack.c.l.b16 %v1028
      %v1324 = vunpack.c.l.b16 %v1029
      %v1325 = vunpack.c.l.b16 %v1030
      %v1326 = vunpack.c.l.b16 %v1031
      %v1327 = vunpack.c.l.b16 %v1032
      %v1328 = vunpack.c.l.b16 %v1033
      %v1329 = vunpack.c.l.b16 %v1034
      %v1330 = vunpack.c.l.b16 %v1035
      %v1331 = vunpack.c.l.b16 %v1036
      %v1332 = vunpack.c.l.b16 %v1037
      %v1333 = vunpack.c.l.b16 %v1038
      %v1334 = vunpack.c.l.b16 %v1039
      %v1335 = vunpack.c.l.b16 %v1040
      %v1336 = vunpack.c.l.b16 %v1041
      %v1337 = vunpack.c.l.b16 %v1042
      %v1338 = vunpack.c.l.b16 %v1043
      %v1339 = vunpack.c.l.b16 %v1044
      %v1340 = vunpack.c.l.b16 %v1045
      %v1341 = vunpack.c.l.b16 %v1046
      %v1342 = vunpack.c.l.b16 %v1047
      %v1343 = vunpack.c.l.b16 %v1048
      %v1344 = vunpack.c.l.b16 %v1049
      %v1345 = vunpack.c.l.b16 %v1050
      %v1346 = vunpack.c.l.b16 %v1051
      %v1347 = vunpack.c.l.b16 %v1052
      %v1348 = vunpack.c.l.b16 %v1053
      %v1349 = vunpack.c.l.b16 %v1054
      %v1350 = vunpack.c.l.b16 %v1055
      %v1351 = vunpack.c.l.b16 %v1056
      %v1352 = vunpack.c.l.b16 %v1057
      %v1353 = vunpack.c.l.b16 %v1058
      %v1354 = vunpack.c.l.b16 %v1059
      %v1355 = vunpack.c.l.b16 %v1060
      %v1356 = vunpack.c.l.b16 %v1061
      %v1357 = vunpack.c.l.b16 %v1062
      %v1358 = vunpack.c.l.b16 %v1063
      %v1359 = vunpack.c.l.b16 %v1064
      %v1360 = vunpack.c.l.b16 %v1065
      %v1361 = vunpack.c.l.b16 %v1066
      %v1362 = vunpack.c.l.b16 %v1067
      %v1363 = vunpack.c.l.b16 %v1068
      %v1364 = vunpack.c.l.b16 %v1069
      %v1365 = vunpack.c.l.b16 %v1070
      %v1366 = vunpack.c.l.b16 %v1071
      %v1367 = vunpack.c.l.b16 %v1072
      %v1368 = vunpack.c.l.b16 %v1073
      %v1369 = vunpack.c.l.b16 %v1074
      %v1370 = vunpack.c.l.b16 %v1075
      %v1371 = vunpack.c.l.b16 %v1076
      %v1372 = vunpack.c.l.b16 %v1077
      %v1373 = vunpack.c.l.b16 %v1078
      %v1374 = vunpack.c.l.b16 %v1079
      %v1375 = vunpack.c.l.b16 %v1080
      %v1376 = vunpack.c.l.b16 %v1081
      %v1377 = vunpack.c.l.b16 %v1082
      %v1378 = vpack.c.b16 %v1235, %v1234
      %v1379 = vpack.c.b16 %v1237, %v1236
      %v1380 = vpack.c.b16 %v1239, %v1238
      %v1381 = vpack.c.b16 %v1241, %v1240
      %v1382 = vpack.c.b16 %v1243, %v1242
      %v1383 = vpack.c.b16 %v1245, %v1244
      %v1384 = vpack.c.b16 %v1247, %v1246
      %v1385 = vpack.c.b16 %v1249, %v1248
      %v1386 = vpack.c.b16 %v1251, %v1250
      %v1387 = vpack.c.b16 %v1253, %v1252
      %v1388 = vpack.c.b16 %v1255, %v1254
      %v1389 = vpack.c.b16 %v1257, %v1256
      %v1390 = vpack.c.b16 %v1259, %v1258
      %v1391 = vpack.c.b16 %v1261, %v1260
      %v1392 = vpack.c.b16 %v1263, %v1262
      %v1393 = vpack.c.b16 %v1265, %v1264
      %v1394 = vpack.c.b16 %v1267, %v1266
      %v1395 = vpack.c.b16 %v1269, %v1268
      %v1396 = vpack.c.b16 %v1271, %v1270
      %v1397 = vpack.c.b16 %v1273, %v1272
      %v1398 = vpack.c.b16 %v1275, %v1274
      %v1399 = vpack.c.b16 %v1277, %v1276
      %v1400 = vpack.c.b16 %v1279, %v1278
      %v1401 = vpack.c.b16 %v1281, %v1280
      %v1402 = vpack.c.b16 %v1283, %v1282
      %v1403 = vpack.c.b16 %v1285, %v1284
      %v1404 = vpack.c.b16 %v1287, %v1286
      %v1405 = vpack.c.b16 %v1289, %v1288
      %v1406 = vpack.c.b16 %v1291, %v1290
      %v1407 = vpack.c.b16 %v1293, %v1292
      %v1408 = vpack.c.b16 %v1295, %v1294
      %v1409 = vpack.c.b16 %v1297, %v1296
      %v1410 = vpack.c.b16 %v1299, %v1298
      %v1411 = vpack.c.b16 %v1301, %v1300
      %v1412 = vpack.c.b16 %v1303, %v1302
      %v1413 = vpack.c.b16 %v1305, %v1304
      %v1414 = vpack.c.b16 %v1307, %v1306
      %v1415 = vpack.c.b16 %v1309, %v1308
      %v1416 = vpack.c.b16 %v1311, %v1310
      %v1417 = vpack.c.b16 %v1313, %v1312
      %v1418 = vpack.c.b16 %v1315, %v1314
      %v1419 = vpack.c.b16 %v1317, %v1316
      %v1420 = vpack.c.b16 %v1319, %v1318
      %v1421 = vpack.c.b16 %v1321, %v1320
      %v1422 = vpack.c.b16 %v1323, %v1322
      %v1423 = vpack.c.b16 %v1325, %v1324
      %v1424 = vpack.c.b16 %v1327, %v1326
      %v1425 = vpack.c.b16 %v1329, %v1328
      %v1426 = vpack.c.b16 %v1331, %v1330
      %v1427 = vpack.c.b16 %v1333, %v1332
      %v1428 = vpack.c.b16 %v1335, %v1334
      %v1429 = vpack.c.b16 %v1337, %v1336
      %v1430 = vpack.c.b16 %v1339, %v1338
      %v1431 = vpack.c.b16 %v1341, %v1340
      %v1432 = vpack.c.b16 %v1343, %v1342
      %v1433 = vpack.c.b16 %v1345, %v1344
      %v1434 = vpack.c.b16 %v1347, %v1346
      %v1435 = vpack.c.b16 %v1349, %v1348
      %v1436 = vpack.c.b16 %v1351, %v1350
      %v1437 = vpack.c.b16 %v1353, %v1352
      %v1438 = vpack.c.b16 %v1355, %v1354
      %v1439 = vpack.c.b16 %v1357, %v1356
      %v1440 = vpack.c.b16 %v1359, %v1358
      %v1441 = vpack.c.b16 %v1361, %v1360
      %v1442 = vpack.c.b16 %v1363, %v1362
      %v1443 = vpack.c.b16 %v1365, %v1364
      %v1444 = vpack.c.b16 %v1367, %v1366
      %v1445 = vpack.c.b16 %v1369, %v1368
      %v1446 = vpack.c.b16 %v1371, %v1370
      %v1447 = vpack.c.b16 %v1373, %v1372
      %v1448 = vpack.c.b16 %v1375, %v1374
      %v1449 = vpack.c.b16 %v1377, %v1376
      %1522 = vmatprep.subr.bf16.mxu0 0
      %1523 = vmatpush1.bf16.msra.mxu0 %v1378
      %1524 = vmatprep.subr.bf16.mxu0 0
      %1525 = vmatpush1.bf16.msra.mxu0 %v1379
      %1526 = vmatprep.subr.bf16.mxu0 0
      %1527 = vmatpush1.bf16.msra.mxu0 %v1380
      %1528 = vmatprep.subr.bf16.mxu0 0
      %1529 = vmatpush1.bf16.msra.mxu0 %v1381
      %1530 = vmatprep.subr.bf16.mxu0 0
      %1531 = vmatpush1.bf16.msra.mxu0 %v1382
      %1532 = vmatprep.subr.bf16.mxu0 0
      %1533 = vmatpush1.bf16.msra.mxu0 %v1383
      %1534 = vmatprep.subr.bf16.mxu0 0
      %1535 = vmatpush1.bf16.msra.mxu0 %v1384
      %1536 = vmatprep.subr.bf16.mxu0 0
      %1537 = vmatpush1.bf16.msra.mxu0 %v1385
      %1538 = vmatprep.subr.bf16.mxu0 0
      %1539 = vmatpush1.bf16.msra.mxu0 %v1386
      %1540 = vmatprep.subr.bf16.mxu0 0
      %1541 = vmatpush1.bf16.msra.mxu0 %v1387
      %1542 = vmatprep.subr.bf16.mxu0 0
      %1543 = vmatpush1.bf16.msra.mxu0 %v1388
      %1544 = vmatprep.subr.bf16.mxu0 0
      %1545 = vmatpush1.bf16.msra.mxu0 %v1389
      %1546 = vmatprep.subr.bf16.mxu0 0
      %1547 = vmatpush1.bf16.msra.mxu0 %v1390
      %1548 = vmatprep.subr.bf16.mxu0 0
      %1549 = vmatpush1.bf16.msra.mxu0 %v1391
      %1550 = vmatprep.subr.bf16.mxu0 0
      %1551 = vmatpush1.bf16.msra.mxu0 %v1392
      %1552 = vmatprep.subr.bf16.mxu0 0
      %1553 = vmatpush1.bf16.msra.mxu0 %v1393
      %1554 = vmatprep.mubr.bf16.mxu0 %v895
      %1555 = vmatmul.mubr.bf16.gmra.mrb[0].mxu0 %v894
      %v1556 = vpop.f32.mrb[0].mxu0
      %v1557 = vadd.f32 %v1088, %v1556
      %v1558 = vpop.f32.mrb[0].mxu0
      %v1559 = vpop.f32.mrb[0].mxu0
      %v1560 = vadd.f32 %v1088, %v1559
      %v1561 = vpop.f32.mrb[0].mxu0
      %1562 = vmatprep.mubr.bf16.mxu0 %v904
      %1563 = vmatmul.mubr.bf16.gmra.mrb[0].mxu0 %v903
      %v1564 = vpop.f32.mrb[0].mxu0
      %v1565 = vadd.f32 %v1088, %v1564
      %v1566 = vpop.f32.mrb[0].mxu0
      %v1567 = vpop.f32.mrb[0].mxu0
      %v1568 = vadd.f32 %v1088, %v1567
      %v1569 = vpop.f32.mrb[0].mxu0
      %1570 = vmatprep.mubr.bf16.mxu0 %v913
      %1571 = vmatmul.mubr.bf16.gmra.mrb[0].mxu0 %v912
      %v1572 = vpop.f32.mrb[0].mxu0
      %v1573 = vadd.f32 %v1088, %v1572
      %v1574 = vpop.f32.mrb[0].mxu0
      %v1575 = vpop.f32.mrb[0].mxu0
      %v1576 = vadd.f32 %v1088, %v1575
      %v1577 = vpop.f32.mrb[0].mxu0
      %1578 = vmatprep.mubr.bf16.mxu0 %v922
      %1579 = vmatmul.mubr.bf16.gmra.mrb[0].mxu0 %v921
      %v1580 = vpop.f32.mrb[0].mxu0
      %v1581 = vadd.f32 %v1088, %v1580
      %v1582 = vpop.f32.mrb[0].mxu0
      %v1583 = vpop.f32.mrb[0].mxu0
      %v1584 = vadd.f32 %v1088, %v1583
      %v1585 = vpop.f32.mrb[0].mxu0
      %1586 = vmatprep.mubr.bf16.mxu0 %v931
      %1587 = vmatmul.mubr.bf16.gmra.mrb[0].mxu0 %v930
      %v1588 = vpop.f32.mrb[0].mxu0
      %v1589 = vadd.f32 %v1088, %v1588
      %v1590 = vpop.f32.mrb[0].mxu0
      %v1591 = vpop.f32.mrb[0].mxu0
      %v1592 = vadd.f32 %v1088, %v1591
      %v1593 = vpop.f32.mrb[0].mxu0
      %1594 = vdwg.mxu0
      %1595 = vmatprep.subr.bf16.mxu0 0
      %1596 = vmatpush1.bf16.msra.mxu0 %v1394
      %1597 = vmatprep.subr.bf16.mxu0 0
      %1598 = vmatpush1.bf16.msra.mxu0 %v1395
      %1599 = vmatprep.subr.bf16.mxu0 0
      %1600 = vmatpush1.bf16.msra.mxu0 %v1396
      %1601 = vmatprep.subr.bf16.mxu0 0
      %1602 = vmatpush1.bf16.msra.mxu0 %v1397
      %1603 = vmatprep.subr.bf16.mxu0 0
      %1604 = vmatpush1.bf16.msra.mxu0 %v1398
      %1605 = vmatprep.subr.bf16.mxu0 0
      %1606 = vmatpush1.bf16.msra.mxu0 %v1399
      %1607 = vmatprep.subr.bf16.mxu0 0
      %1608 = vmatpush1.bf16.msra.mxu0 %v1400
      %1609 = vmatprep.subr.bf16.mxu0 0
      %1610 = vmatpush1.bf16.msra.mxu0 %v1401
      %1611 = vmatprep.subr.bf16.mxu0 0
      %1612 = vmatpush1.bf16.msra.mxu0 %v1402
      %1613 = vmatprep.subr.bf16.mxu0 0
      %1614 = vmatpush1.bf16.msra.mxu0 %v1403
      %1615 = vmatprep.subr.bf16.mxu0 0
      %1616 = vmatpush1.bf16.msra.mxu0 %v1404
      %1617 = vmatprep.subr.bf16.mxu0 0
      %1618 = vmatpush1.bf16.msra.mxu0 %v1405
      %1619 = vmatprep.subr.bf16.mxu0 0
      %1620 = vmatpush1.bf16.msra.mxu0 %v1406
      %1621 = vmatprep.subr.bf16.mxu0 0
      %1622 = vmatpush1.bf16.msra.mxu0 %v1407
      %1623 = vmatprep.subr.bf16.mxu0 0
      %1624 = vmatpush1.bf16.msra.mxu0 %v1408
      %1625 = vmatprep.subr.bf16.mxu0 0
      %1626 = vmatpush1.bf16.msra.mxu0 %v1409
      %1627 = vmatprep.mubr.bf16.mxu0 %v897
      %1628 = vmatmul.mubr.bf16.gmra.mrb[0].mxu0 %v896
      %v1629 = vpop.f32.mrb[0].mxu0
      %v1630 = vadd.f32 %v1557, %v1629
      %v1631 = vpop.f32.mrb[0].mxu0
      %v1632 = vpop.f32.mrb[0].mxu0
      %v1633 = vadd.f32 %v1560, %v1632
      %v1634 = vpop.f32.mrb[0].mxu0
      %1635 = vmatprep.mubr.bf16.mxu0 %v906
      %1636 = vmatmul.mubr.bf16.gmra.mrb[0].mxu0 %v905
      %v1637 = vpop.f32.mrb[0].mxu0
      %v1638 = vadd.f32 %v1565, %v1637
      %v1639 = vpop.f32.mrb[0].mxu0
      %v1640 = vpop.f32.mrb[0].mxu0
      %v1641 = vadd.f32 %v1568, %v1640
      %v1642 = vpop.f32.mrb[0].mxu0
      %1643 = vmatprep.mubr.bf16.mxu0 %v915
      %1644 = vmatmul.mubr.bf16.gmra.mrb[0].mxu0 %v914
      %v1645 = vpop.f32.mrb[0].mxu0
      %v1646 = vadd.f32 %v1573, %v1645
      %v1647 = vpop.f32.mrb[0].mxu0
      %v1648 = vpop.f32.mrb[0].mxu0
      %v1649 = vadd.f32 %v1576, %v1648
      %v1650 = vpop.f32.mrb[0].mxu0
      %1651 = vmatprep.mubr.bf16.mxu0 %v924
      %1652 = vmatmul.mubr.bf16.gmra.mrb[0].mxu0 %v923
      %v1653 = vpop.f32.mrb[0].mxu0
      %v1654 = vadd.f32 %v1581, %v1653
      %v1655 = vpop.f32.mrb[0].mxu0
      %v1656 = vpop.f32.mrb[0].mxu0
      %v1657 = vadd.f32 %v1584, %v1656
      %v1658 = vpop.f32.mrb[0].mxu0
      %1659 = vmatprep.mubr.bf16.mxu0 %v933
      %1660 = vmatmul.mubr.bf16.gmra.mrb[0].mxu0 %v932
      %v1661 = vpop.f32.mrb[0].mxu0
      %v1662 = vadd.f32 %v1589, %v1661
      %v1663 = vpop.f32.mrb[0].mxu0
      %v1664 = vpop.f32.mrb[0].mxu0
      %v1665 = vadd.f32 %v1592, %v1664
      %v1666 = vpop.f32.mrb[0].mxu0
      %1667 = vdwg.mxu0
      %1668 = vmatprep.subr.bf16.mxu0 0
      %1669 = vmatpush1.bf16.msra.mxu0 %v1410
      %1670 = vmatprep.subr.bf16.mxu0 0
      %1671 = vmatpush1.bf16.msra.mxu0 %v1411
      %1672 = vmatprep.subr.bf16.mxu0 0
      %1673 = vmatpush1.bf16.msra.mxu0 %v1412
      %1674 = vmatprep.subr.bf16.mxu0 0
      %1675 = vmatpush1.bf16.msra.mxu0 %v1413
      %1676 = vmatprep.subr.bf16.mxu0 0
      %1677 = vmatpush1.bf16.msra.mxu0 %v1414
      %1678 = vmatprep.subr.bf16.mxu0 0
      %1679 = vmatpush1.bf16.msra.mxu0 %v1415
      %1680 = vmatprep.subr.bf16.mxu0 0
      %1681 = vmatpush1.bf16.msra.mxu0 %v1416
      %1682 = vmatprep.subr.bf16.mxu0 0
      %1683 = vmatpush1.bf16.msra.mxu0 %v1417
      %1684 = vmatprep.subr.bf16.mxu0 0
      %1685 = vmatpush1.bf16.msra.mxu0 %v1418
      %1686 = vmatprep.subr.bf16.mxu0 0
      %1687 = vmatpush1.bf16.msra.mxu0 %v1419
      %1688 = vmatprep.subr.bf16.mxu0 0
      %1689 = vmatpush1.bf16.msra.mxu0 %v1420
      %1690 = vmatprep.subr.bf16.mxu0 0
      %1691 = vmatpush1.bf16.msra.mxu0 %v1421
      %1692 = vmatprep.subr.bf16.mxu0 0
      %1693 = vmatpush1.bf16.msra.mxu0 %v1422
      %1694 = vmatprep.subr.bf16.mxu0 0
      %1695 = vmatpush1.bf16.msra.mxu0 %v1423
      %1696 = vmatprep.subr.bf16.mxu0 0
      %1697 = vmatpush1.bf16.msra.mxu0 %v1424
      %1698 = vmatprep.subr.bf16.mxu0 0
      %1699 = vmatpush1.bf16.msra.mxu0 %v1425
      %1700 = vmatprep.mubr.bf16.mxu0 %v899
      %1701 = vmatmul.mubr.bf16.gmra.mrb[0].mxu0 %v898
      %v1702 = vpop.f32.mrb[0].mxu0
      %v1703 = vadd.f32 %v1630, %v1702
      %v1704 = vpop.f32.mrb[0].mxu0
      %v1705 = vpop.f32.mrb[0].mxu0
      %v1706 = vadd.f32 %v1633, %v1705
      %v1707 = vpop.f32.mrb[0].mxu0
      %1708 = vmatprep.mubr.bf16.mxu0 %v908
      %1709 = vmatmul.mubr.bf16.gmra.mrb[0].mxu0 %v907
      %v1710 = vpop.f32.mrb[0].mxu0
      %v1711 = vadd.f32 %v1638, %v1710
      %v1712 = vpop.f32.mrb[0].mxu0
      %v1713 = vpop.f32.mrb[0].mxu0
      %v1714 = vadd.f32 %v1641, %v1713
      %v1715 = vpop.f32.mrb[0].mxu0
      %1716 = vmatprep.mubr.bf16.mxu0 %v917
      %1717 = vmatmul.mubr.bf16.gmra.mrb[0].mxu0 %v916
      %v1718 = vpop.f32.mrb[0].mxu0
      %v1719 = vadd.f32 %v1646, %v1718
      %v1720 = vpop.f32.mrb[0].mxu0
      %v1721 = vpop.f32.mrb[0].mxu0
      %v1722 = vadd.f32 %v1649, %v1721
      %v1723 = vpop.f32.mrb[0].mxu0
      %1724 = vmatprep.mubr.bf16.mxu0 %v926
      %1725 = vmatmul.mubr.bf16.gmra.mrb[0].mxu0 %v925
      %v1726 = vpop.f32.mrb[0].mxu0
      %v1727 = vadd.f32 %v1654, %v1726
      %v1728 = vpop.f32.mrb[0].mxu0
      %v1729 = vpop.f32.mrb[0].mxu0
      %v1730 = vadd.f32 %v1657, %v1729
      %v1731 = vpop.f32.mrb[0].mxu0
      %1732 = vmatprep.mubr.bf16.mxu0 %v935
      %1733 = vmatmul.mubr.bf16.gmra.mrb[0].mxu0 %v934
      %v1734 = vpop.f32.mrb[0].mxu0
      %v1735 = vadd.f32 %v1662, %v1734
      %v1736 = vpop.f32.mrb[0].mxu0
      %v1737 = vpop.f32.mrb[0].mxu0
      %v1738 = vadd.f32 %v1665, %v1737
      %v1739 = vpop.f32.mrb[0].mxu0
      %1740 = vdwg.mxu0
      %1741 = vmatprep.subr.bf16.mxu0 0
      %1742 = vmatpush1.bf16.msra.mxu0 %v1426
      %1743 = vmatprep.subr.bf16.mxu0 0
      %1744 = vmatpush1.bf16.msra.mxu0 %v1427
      %1745 = vmatprep.subr.bf16.mxu0 0
      %1746 = vmatpush1.bf16.msra.mxu0 %v1428
      %1747 = vmatprep.subr.bf16.mxu0 0
      %1748 = vmatpush1.bf16.msra.mxu0 %v1429
      %1749 = vmatprep.subr.bf16.mxu0 0
      %1750 = vmatpush1.bf16.msra.mxu0 %v1430
      %1751 = vmatprep.subr.bf16.mxu0 0
      %1752 = vmatpush1.bf16.msra.mxu0 %v1431
      %1753 = vmatprep.subr.bf16.mxu0 0
      %1754 = vmatpush1.bf16.msra.mxu0 %v1432
      %1755 = vmatprep.subr.bf16.mxu0 0
      %1756 = vmatpush1.bf16.msra.mxu0 %v1433
      %1757 = vmatprep.subr.bf16.mxu0 0
      %1758 = vmatpush1.bf16.msra.mxu0 %v1434
      %1759 = vmatprep.subr.bf16.mxu0 0
      %1760 = vmatpush1.bf16.msra.mxu0 %v1435
      %1761 = vmatprep.subr.bf16.mxu0 0
      %1762 = vmatpush1.bf16.msra.mxu0 %v1436
      %1763 = vmatprep.subr.bf16.mxu0 0
      %1764 = vmatpush1.bf16.msra.mxu0 %v1437
      %1765 = vmatprep.subr.bf16.mxu0 0
      %1766 = vmatpush1.bf16.msra.mxu0 %v1438
      %1767 = vmatprep.subr.bf16.mxu0 0
      %1768 = vmatpush1.bf16.msra.mxu0 %v1439
      %1769 = vmatprep.subr.bf16.mxu0 0
      %1770 = vmatpush1.bf16.msra.mxu0 %v1440
      %1771 = vmatprep.subr.bf16.mxu0 0
      %1772 = vmatpush1.bf16.msra.mxu0 %v1441
      %1773 = vmatprep.mubr.bf16.mxu0 %v901
      %1774 = vmatmul.mubr.bf16.gmra.mrb[0].mxu0 %v900
      %v1775 = vpop.f32.mrb[0].mxu0
      %v1776 = vadd.f32 %v1703, %v1775
      %v1777 = vpop.f32.mrb[0].mxu0
      %v1778 = vpop.f32.mrb[0].mxu0
      %v1779 = vadd.f32 %v1706, %v1778
      %v1780 = vpop.f32.mrb[0].mxu0
      %1781 = vmatprep.mubr.bf16.mxu0 %v910
      %1782 = vmatmul.mubr.bf16.gmra.mrb[0].mxu0 %v909
      %v1783 = vpop.f32.mrb[0].mxu0
      %v1784 = vadd.f32 %v1711, %v1783
      %v1785 = vpop.f32.mrb[0].mxu0
      %v1786 = vpop.f32.mrb[0].mxu0
      %v1787 = vadd.f32 %v1714, %v1786
      %v1788 = vpop.f32.mrb[0].mxu0
      %1789 = vmatprep.mubr.bf16.mxu0 %v919
      %1790 = vmatmul.mubr.bf16.gmra.mrb[0].mxu0 %v918
      %v1791 = vpop.f32.mrb[0].mxu0
      %v1792 = vadd.f32 %v1719, %v1791
      %v1793 = vpop.f32.mrb[0].mxu0
      %v1794 = vpop.f32.mrb[0].mxu0
      %v1795 = vadd.f32 %v1722, %v1794
      %v1796 = vpop.f32.mrb[0].mxu0
      %1797 = vmatprep.mubr.bf16.mxu0 %v928
      %1798 = vmatmul.mubr.bf16.gmra.mrb[0].mxu0 %v927
      %v1799 = vpop.f32.mrb[0].mxu0
      %v1800 = vadd.f32 %v1727, %v1799
      %v1801 = vpop.f32.mrb[0].mxu0
      %v1802 = vpop.f32.mrb[0].mxu0
      %v1803 = vadd.f32 %v1730, %v1802
      %v1804 = vpop.f32.mrb[0].mxu0
      %1805 = vmatprep.mubr.bf16.mxu0 %v937
      %1806 = vmatmul.mubr.bf16.gmra.mrb[0].mxu0 %v936
      %v1807 = vpop.f32.mrb[0].mxu0
      %v1808 = vadd.f32 %v1735, %v1807
      %v1809 = vpop.f32.mrb[0].mxu0
      %v1810 = vpop.f32.mrb[0].mxu0
      %v1811 = vadd.f32 %v1738, %v1810
      %v1812 = vpop.f32.mrb[0].mxu0
      %1813 = vdwg.mxu0
      %1814 = vmatprep.subr.bf16.mxu0 0
      %1815 = vmatpush1.bf16.msra.mxu0 %v1442
      %1816 = vmatprep.subr.bf16.mxu0 0
      %1817 = vmatpush1.bf16.msra.mxu0 %v1443
      %1818 = vmatprep.subr.bf16.mxu0 0
      %1819 = vmatpush1.bf16.msra.mxu0 %v1444
      %1820 = vmatprep.subr.bf16.mxu0 0
      %1821 = vmatpush1.bf16.msra.mxu0 %v1445
      %1822 = vmatprep.subr.bf16.mxu0 0
      %1823 = vmatpush1.bf16.msra.mxu0 %v1446
      %1824 = vmatprep.subr.bf16.mxu0 0
      %1825 = vmatpush1.bf16.msra.mxu0 %v1447
      %1826 = vmatprep.subr.bf16.mxu0 0
      %1827 = vmatpush1.bf16.msra.mxu0 %v1448
      %1828 = vmatprep.subr.bf16.mxu0 0
      %1829 = vmatpush1.bf16.msra.mxu0 %v1449
      %1830 = vmatprep.subr.bf16.mxu0 0
      %1831 = vmatpush1.bf16.msra.mxu0 0
      %1832 = vmatprep.subr.bf16.mxu0 0
      %1833 = vmatpush1.bf16.msra.mxu0 0
      %1834 = vmatprep.subr.bf16.mxu0 0
      %1835 = vmatpush1.bf16.msra.mxu0 0
      %1836 = vmatprep.subr.bf16.mxu0 0
      %1837 = vmatpush1.bf16.msra.mxu0 0
      %1838 = vmatprep.subr.bf16.mxu0 0
      %1839 = vmatpush1.bf16.msra.mxu0 0
      %1840 = vmatprep.subr.bf16.mxu0 0
      %1841 = vmatpush1.bf16.msra.mxu0 0
      %1842 = vmatprep.subr.bf16.mxu0 0
      %1843 = vmatpush1.bf16.msra.mxu0 0
      %1844 = vmatprep.subr.bf16.mxu0 0
      %1845 = vmatpush1.bf16.msra.mxu0 0
      %1846 = vmatprep.mubr.bf16.mxu0 0
      %1847 = vmatmul.mubr.bf16.gmra.mrb[0].mxu0 %v902
      %v1848 = vpop.f32.mrb[0].mxu0
      %v1849 = vadd.f32 %v1776, %v1848
      %v1850 = vpop.f32.mrb[0].mxu0
      %v1851 = vpop.f32.mrb[0].mxu0
      %v1852 = vadd.f32 %v1779, %v1851
      %v1853 = vpop.f32.mrb[0].mxu0
      %1854 = vmatprep.mubr.bf16.mxu0 0
      %1855 = vmatmul.mubr.bf16.gmra.mrb[0].mxu0 %v911
      %v1856 = vpop.f32.mrb[0].mxu0
      %v1857 = vadd.f32 %v1784, %v1856
      %v1858 = vpop.f32.mrb[0].mxu0
      %v1859 = vpop.f32.mrb[0].mxu0
      %v1860 = vadd.f32 %v1787, %v1859
      %v1861 = vpop.f32.mrb[0].mxu0
      %1862 = vmatprep.mubr.bf16.mxu0 0
      %1863 = vmatmul.mubr.bf16.gmra.mrb[0].mxu0 %v920
      %v1864 = vpop.f32.mrb[0].mxu0
      %v1865 = vadd.f32 %v1792, %v1864
      %v1866 = vpop.f32.mrb[0].mxu0
      %v1867 = vpop.f32.mrb[0].mxu0
      %v1868 = vadd.f32 %v1795, %v1867
      %v1869 = vpop.f32.mrb[0].mxu0
      %1870 = vmatprep.mubr.bf16.mxu0 0
      %1871 = vmatmul.mubr.bf16.gmra.mrb[0].mxu0 %v929
      %v1872 = vpop.f32.mrb[0].mxu0
      %v1873 = vadd.f32 %v1800, %v1872
      %v1874 = vpop.f32.mrb[0].mxu0
      %v1875 = vpop.f32.mrb[0].mxu0
      %v1876 = vadd.f32 %v1803, %v1875
      %v1877 = vpop.f32.mrb[0].mxu0
      %1878 = vmatprep.mubr.bf16.mxu0 0
      %1879 = vmatmul.mubr.bf16.gmra.mrb[0].mxu0 %v938
      %v1880 = vpop.f32.mrb[0].mxu0
      %v1881 = vadd.f32 %v1808, %v1880
      %v1882 = vpop.f32.mrb[0].mxu0
      %v1883 = vpop.f32.mrb[0].mxu0
      %v1884 = vadd.f32 %v1811, %v1883
      %v1885 = vpop.f32.mrb[0].mxu0
      %1886 = vdwg.mxu0
      %v1887 = vld [vmem:[%s239] sm:$0xf]
      %v1888 = vld [vmem:[%s239 + $0x4] sm:$0xf]
      %v1889 = vld [vmem:[%s239 + $0x8] sm:$0xf]
      %v1890 = vld [vmem:[%s239 + $0xc] sm:$0xf]
      %v1891 = vld [vmem:[%s239 + $0x10] sm:$0xf]
      %v1892 = vld [vmem:[%s239 + $0x14] sm:$0xf]
      %v1893 = vld [vmem:[%s239 + $0x18] sm:$0xf]
      %v1894 = vld [vmem:[%s239 + $0x1c] sm:$0xf]
      %v1895 = vld [vmem:[%s239 + $0x20] sm:$0xf]
      %v1896 = vld [vmem:[%s239 + $0x24] sm:$0xf]
      %v1897 = vld [vmem:[%s4] sm:$0xf]
      %v1898 = vld [vmem:[%s4 + $0x4] sm:$0xf]
      %v1899 = vld [vmem:[%s4 + $0x8] sm:$0xf]
      %v1900 = vld [vmem:[%s4 + $0xc] sm:$0xf]
      %v1901 = vld [vmem:[%s4 + $0x10] sm:$0xf]
      %v1902 = vld [vmem:[%s4 + $0x14] sm:$0xf]
      %v1903 = vld [vmem:[%s4 + $0x18] sm:$0xf]
      %v1904 = vld [vmem:[%s4 + $0x1c] sm:$0xf]
      %v1905 = vld [vmem:[%s4 + $0x20] sm:$0xf]
      %v1906 = vld [vmem:[%s4 + $0x24] sm:$0xf]
      %v1907 = vld [vmem:[%s4 + $0x28] sm:$0xf]
      %v1908 = vld [vmem:[%s4 + $0x2c] sm:$0xf]
      %v1909 = vld [vmem:[%s4 + $0x30] sm:$0xf]
      %v1910 = vld [vmem:[%s4 + $0x34] sm:$0xf]
      %v1911 = vld [vmem:[%s4 + $0x38] sm:$0xf]
      %v1912 = vld [vmem:[%s4 + $0x3c] sm:$0xf]
      %v1923 = vunpack.c.l.b16 %v1887
      %v1924 = vunpack.c.l.b16 %v1888
      %v1925 = vunpack.c.l.b16 %v1889
      %v1926 = vunpack.c.l.b16 %v1890
      %v1927 = vunpack.c.l.b16 %v1891
      %v1928 = vunpack.c.l.b16 %v1892
      %v1929 = vunpack.c.l.b16 %v1893
      %v1930 = vunpack.c.l.b16 %v1894
      %v1931 = vunpack.c.l.b16 %v1895
      %v1932 = vunpack.c.l.b16 %v1896
      %v1933 = vpack.c.b16 %v1924, %v1923
      %v1934 = vpack.c.b16 %v1926, %v1925
      %v1935 = vpack.c.b16 %v1928, %v1927
      %v1936 = vpack.c.b16 %v1930, %v1929
      %v1937 = vpack.c.b16 %v1932, %v1931
      %v1959 = vunpack.c.l.b16 %v1897
      %v1960 = vunpack.c.l.b16 %v1898
      %v1961 = vunpack.c.l.b16 %v1899
      %v1962 = vunpack.c.l.b16 %v1900
      %v1963 = vunpack.c.l.b16 %v1901
      %v1964 = vunpack.c.l.b16 %v1902
      %v1965 = vunpack.c.l.b16 %v1903
      %v1966 = vunpack.c.l.b16 %v1904
      %v1967 = vunpack.c.l.b16 %v1905
      %v1968 = vunpack.c.l.b16 %v1906
      %v1969 = vunpack.c.l.b16 %v1907
      %v1970 = vunpack.c.l.b16 %v1908
      %v1971 = vunpack.c.l.b16 %v1909
      %v1972 = vunpack.c.l.b16 %v1910
      %v1973 = vunpack.c.l.b16 %v1911
      %v1974 = vunpack.c.l.b16 %v1912
      %v1975 = vpack.c.b16 %v1960, %v1959
      %v1976 = vpack.c.b16 %v1962, %v1961
      %v1977 = vpack.c.b16 %v1964, %v1963
      %v1978 = vpack.c.b16 %v1966, %v1965
      %v1979 = vpack.c.b16 %v1968, %v1967
      %v1980 = vpack.c.b16 %v1970, %v1969
      %v1981 = vpack.c.b16 %v1972, %v1971
      %v1982 = vpack.c.b16 %v1974, %v1973
      %1991 = vmatprep.subr.bf16.mxu0 0
      %1992 = vmatpush1.bf16.msra.mxu0 %v1975
      %1993 = vmatprep.subr.bf16.mxu0 0
      %1994 = vmatpush1.bf16.msra.mxu0 %v1976
      %1995 = vmatprep.subr.bf16.mxu0 0
      %1996 = vmatpush1.bf16.msra.mxu0 %v1977
      %1997 = vmatprep.subr.bf16.mxu0 0
      %1998 = vmatpush1.bf16.msra.mxu0 %v1978
      %1999 = vmatprep.subr.bf16.mxu0 0
      %2000 = vmatpush1.bf16.msra.mxu0 %v1979
      %2001 = vmatprep.subr.bf16.mxu0 0
      %2002 = vmatpush1.bf16.msra.mxu0 %v1980
      %2003 = vmatprep.subr.bf16.mxu0 0
      %2004 = vmatpush1.bf16.msra.mxu0 %v1981
      %2005 = vmatprep.subr.bf16.mxu0 0
      %2006 = vmatpush1.bf16.msra.mxu0 %v1982
      %2007 = vmatprep.subr.bf16.mxu0 0
      %2008 = vmatpush1.bf16.msra.mxu0 0
      %2009 = vmatprep.subr.bf16.mxu0 0
      %2010 = vmatpush1.bf16.msra.mxu0 0
      %2011 = vmatprep.subr.bf16.mxu0 0
      %2012 = vmatpush1.bf16.msra.mxu0 0
      %2013 = vmatprep.subr.bf16.mxu0 0
      %2014 = vmatpush1.bf16.msra.mxu0 0
      %2015 = vmatprep.subr.bf16.mxu0 0
      %2016 = vmatpush1.bf16.msra.mxu0 0
      %2017 = vmatprep.subr.bf16.mxu0 0
      %2018 = vmatpush1.bf16.msra.mxu0 0
      %2019 = vmatprep.subr.bf16.mxu0 0
      %2020 = vmatpush1.bf16.msra.mxu0 0
      %2021 = vmatprep.subr.bf16.mxu0 0
      %2022 = vmatpush1.bf16.msra.mxu0 0
      %2023 = vmatprep.mubr.bf16.mxu0 0
      %2024 = vmatmul.mubr.bf16.gmra.mrb[0].mxu0 %v1933
      %v2025 = vpop.f32.mrb[0].mxu0
      %v2026 = vadd.f32 0.0, %v2025
      %v2027 = vpop.f32.mrb[0].mxu0
      %v2028 = vpop.f32.mrb[0].mxu0
      %v2029 = vadd.f32 0.0, %v2028
      %v2030 = vpop.f32.mrb[0].mxu0
      %2031 = vmatprep.mubr.bf16.mxu0 0
      %2032 = vmatmul.mubr.bf16.gmra.mrb[0].mxu0 %v1934
      %v2033 = vpop.f32.mrb[0].mxu0
      %v2034 = vadd.f32 0.0, %v2033
      %v2035 = vpop.f32.mrb[0].mxu0
      %v2036 = vpop.f32.mrb[0].mxu0
      %v2037 = vadd.f32 0.0, %v2036
      %v2038 = vpop.f32.mrb[0].mxu0
      %2039 = vmatprep.mubr.bf16.mxu0 0
      %2040 = vmatmul.mubr.bf16.gmra.mrb[0].mxu0 %v1935
      %v2041 = vpop.f32.mrb[0].mxu0
      %v2042 = vadd.f32 0.0, %v2041
      %v2043 = vpop.f32.mrb[0].mxu0
      %v2044 = vpop.f32.mrb[0].mxu0
      %v2045 = vadd.f32 0.0, %v2044
      %v2046 = vpop.f32.mrb[0].mxu0
      %2047 = vmatprep.mubr.bf16.mxu0 0
      %2048 = vmatmul.mubr.bf16.gmra.mrb[0].mxu0 %v1936
      %v2049 = vpop.f32.mrb[0].mxu0
      %v2050 = vadd.f32 0.0, %v2049
      %v2051 = vpop.f32.mrb[0].mxu0
      %v2052 = vpop.f32.mrb[0].mxu0
      %v2053 = vadd.f32 0.0, %v2052
      %v2054 = vpop.f32.mrb[0].mxu0
      %2055 = vmatprep.mubr.bf16.mxu0 0
      %2056 = vmatmul.mubr.bf16.gmra.mrb[0].mxu0 %v1937
      %v2057 = vpop.f32.mrb[0].mxu0
      %v2058 = vadd.f32 0.0, %v2057
      %v2059 = vpop.f32.mrb[0].mxu0
      %v2060 = vpop.f32.mrb[0].mxu0
      %v2061 = vadd.f32 0.0, %v2060
      %v2062 = vpop.f32.mrb[0].mxu0
      %2063 = vdwg.mxu0
      %v2064 = vadd.f32 %v1849, %v2026
      %v2065 = vadd.f32 %v1852, %v2029
      %v2066 = vadd.f32 %v1857, %v2034
      %v2067 = vadd.f32 %v1860, %v2037
      %v2068 = vadd.f32 %v1865, %v2042
      %v2069 = vadd.f32 %v1868, %v2045
      %v2070 = vadd.f32 %v1873, %v2050
      %v2071 = vadd.f32 %v1876, %v2053
      %v2072 = vadd.f32 %v1881, %v2058
      %v2073 = vadd.f32 %v1884, %v2061
      %v2074 = vmax.f32 %v2064, -1.0
      %v2075 = vmax.f32 %v2065, -1.0
      %v2076 = vmax.f32 %v2066, -1.0
      %v2077 = vmax.f32 %v2067, -1.0
      %v2078 = vmax.f32 %v2068, -1.0
      %v2079 = vmax.f32 %v2069, -1.0
      %v2080 = vmax.f32 %v2070, -1.0
      %v2081 = vmax.f32 %v2071, -1.0
      %v2082 = vmax.f32 %v2072, -1.0
      %v2083 = vmax.f32 %v2073, -1.0
      %v2084 = vmin.f32 %v2074, 1.0
      %v2085 = vmin.f32 %v2075, 1.0
      %v2086 = vmin.f32 %v2076, 1.0
      %v2087 = vmin.f32 %v2077, 1.0
      %v2088 = vmin.f32 %v2078, 1.0
      %v2089 = vmin.f32 %v2079, 1.0
      %v2090 = vmin.f32 %v2080, 1.0
      %v2091 = vmin.f32 %v2081, 1.0
      %v2092 = vmin.f32 %v2082, 1.0
      %v2093 = vmin.f32 %v2083, 1.0
      %v2094 = vmul.f32 %v2084, 7.5
      %v2095 = vmul.f32 %v2085, 7.5
      %v2096 = vmul.f32 %v2086, 7.5
      %v2097 = vmul.f32 %v2087, 7.5
      %v2098 = vmul.f32 %v2088, 7.5
      %v2099 = vmul.f32 %v2089, 7.5
      %v2100 = vmul.f32 %v2090, 7.5
      %v2101 = vmul.f32 %v2091, 7.5
      %v2102 = vmul.f32 %v2092, 7.5
      %v2103 = vmul.f32 %v2093, 7.5
      %v2104 = vadd.f32 %v2094, 7.5
      %v2105 = vadd.f32 %v2095, 7.5
      %v2106 = vadd.f32 %v2096, 7.5
      %v2107 = vadd.f32 %v2097, 7.5
      %v2108 = vadd.f32 %v2098, 7.5
      %v2109 = vadd.f32 %v2099, 7.5
      %v2110 = vadd.f32 %v2100, 7.5
      %v2111 = vadd.f32 %v2101, 7.5
      %v2112 = vadd.f32 %v2102, 7.5
      %v2113 = vadd.f32 %v2103, 7.5
      %v2114 = vround.ne.pseudo %v2104
      %v2115 = vround.ne.pseudo %v2105
      %v2116 = vround.ne.pseudo %v2106
      %v2117 = vround.ne.pseudo %v2107
      %v2118 = vround.ne.pseudo %v2108
      %v2119 = vround.ne.pseudo %v2109
      %v2120 = vround.ne.pseudo %v2110
      %v2121 = vround.ne.pseudo %v2111
      %v2122 = vround.ne.pseudo %v2112
      %v2123 = vround.ne.pseudo %v2113
      %v2124 = vmul.f32 %v2114, 0.13333334
      %v2125 = vmul.f32 %v2115, 0.13333334
      %v2126 = vmul.f32 %v2116, 0.13333334
      %v2127 = vmul.f32 %v2117, 0.13333334
      %v2128 = vmul.f32 %v2118, 0.13333334
      %v2129 = vmul.f32 %v2119, 0.13333334
      %v2130 = vmul.f32 %v2120, 0.13333334
      %v2131 = vmul.f32 %v2121, 0.13333334
      %v2132 = vmul.f32 %v2122, 0.13333334
      %v2133 = vmul.f32 %v2123, 0.13333334
      %v2134 = vsub.f32 %v2124, 1.0
      %v2135 = vsub.f32 %v2125, 1.0
      %v2136 = vsub.f32 %v2126, 1.0
      %v2137 = vsub.f32 %v2127, 1.0
      %v2138 = vsub.f32 %v2128, 1.0
      %v2139 = vsub.f32 %v2129, 1.0
      %v2140 = vsub.f32 %v2130, 1.0
      %v2141 = vsub.f32 %v2131, 1.0
      %v2142 = vsub.f32 %v2132, 1.0
      %v2143 = vsub.f32 %v2133, 1.0
      %v2144 = vpack.c.bf16 %v2135, %v2134
      %v2145 = vpack.c.bf16 %v2137, %v2136
      %v2146 = vpack.c.bf16 %v2139, %v2138
      %v2147 = vpack.c.bf16 %v2141, %v2140
      %v2148 = vpack.c.bf16 %v2143, %v2142
      %v2154 = vunpack.c.l.b16 %v2144
      %v2155 = vunpack.c.h.b16 %v2144
      %v2156 = vunpack.c.l.b16 %v2145
      %v2157 = vunpack.c.h.b16 %v2145
      %v2158 = vunpack.c.l.b16 %v2146
      %v2159 = vunpack.c.h.b16 %v2146
      %v2160 = vunpack.c.l.b16 %v2147
      %v2161 = vunpack.c.h.b16 %v2147
      %v2162 = vunpack.c.l.b16 %v2148
      %v2163 = vunpack.c.h.b16 %v2148
      %v2164 = vpack.c.b16 %v2154, %v2154
      %v2165 = vpack.c.b16 %v2155, %v2155
      %v2166 = vpack.c.b16 %v2156, %v2156
      %v2167 = vpack.c.b16 %v2157, %v2157
      %v2168 = vpack.c.b16 %v2158, %v2158
      %v2169 = vpack.c.b16 %v2159, %v2159
      %v2170 = vpack.c.b16 %v2160, %v2160
      %v2171 = vpack.c.b16 %v2161, %v2161
      %v2172 = vpack.c.b16 %v2162, %v2162
      %v2173 = vpack.c.b16 %v2163, %v2163
      %2184 = vst [vmem:[%s244] sm:$0xf] %v2164
      %2185 = vst [vmem:[%s244 + $0x4] sm:$0xf] %v2165
      %2186 = vst [vmem:[%s244 + $0x8] sm:$0xf] %v2166
      %2187 = vst [vmem:[%s244 + $0xc] sm:$0xf] %v2167
      %2188 = vst [vmem:[%s244 + $0x10] sm:$0xf] %v2168
      %2189 = vst [vmem:[%s244 + $0x14] sm:$0xf] %v2169
      %2190 = vst [vmem:[%s244 + $0x18] sm:$0xf] %v2170
      %2191 = vst [vmem:[%s244 + $0x1c] sm:$0xf] %v2171
      %2192 = vst [vmem:[%s244 + $0x20] sm:$0xf] %v2172
      %2193 = vst [vmem:[%s244 + $0x24] sm:$0xf] %v2173
      %p2194 = scmp.lt.s32.totalorder %s16, 1
      %s2195 = scalar_select %p2194, %s16, 1
      %s2196 = smul.addr %s2195, 10
      %s2197 = smul.addr %s2196, 4
      %s2198 = scalar_lea.vmem %s5, %s2197
      // Predicated region
      $region41: #{basic_block_forward.3} parent=39 // pred_check
        %p2199 = pneg %p149
      $region42: #{basic_block_forward.3} parent=39 // pred_check_branch
        %2201 = sbr.rel (%p2199) target = $region44
      $region43: #{basic_block_forward.3} parent=39 // pred_region
        _
      $region44: #{basic_block_forward.3} parent=39 // pred_fallthru
        _
    $region40: #{basic_block_forward.3} parent=5 // pred_fallthru
      _
    %p2202 = scmp.le.s32.totalorder 2, %s11
    // Predicated region
    $region45: #{basic_block_forward.3} parent=5 // pred_check
      %p2203 = pneg %p2202
    $region46: #{basic_block_forward.3} parent=5 // pred_check_branch
      %2205 = sbr.rel (%p2203) target = $region48
    $region47: #{basic_block_forward.3} parent=5 // pred_region
      %s2206 = ssub.s32 %s11, 2
      // Predicated region
      $region49: #{basic_block_forward.3} parent=47 // pred_check
        %p2207 = pneg %p155
      $region50: #{basic_block_forward.3} parent=47 // pred_check_branch
        %2209 = sbr.rel (%p2207) target = $region52
      $region51: #{basic_block_forward.3} parent=47 // pred_region
        %p2210 = scmp.lt.s32.totalorder %s17, 1
        %s2211 = scalar_select %p2210, %s17, 1
        %s2212 = smul.addr %s2211, 10
        %s2213 = smul.addr %s2212, 4
        %s2214 = scalar_lea.vmem %s5, %s2213
      $region52: #{basic_block_forward.3} parent=47 // pred_fallthru
        _
    $region48: #{basic_block_forward.3} parent=5 // pred_fallthru
      _
  $region6: #{basic_block_forward.3} parent=0 // loop_footer
    %s15 = sadd.s32 1, %s11
  $region7: #{basic_block_forward.3} parent=0 // loop_footer_branch
    %10 = sbr.rel target = $region3
  $region8: #{basic_block_forward.3} parent=0 // loop_exit
    _

</llo_original>
